<compile_context>
chip_gen: v6e
topology: v6e:2x2x1
jax: 0.10.0
libtpu: 0.0.40
codegen_flags: <defaults>
</compile_context>

<pallas_src>
import functools

import jax
import jax.numpy as jnp
from jax.experimental import pallas as pl
from jax.experimental.pallas import tpu as pltpu

LANES = 128


def _round_up(x, m):
    return ((x + m - 1) // m) * m


def _cdiv(a, b):
    return (a + b - 1) // b


def _pick_tm(M):
    # <=512-row tiles, >=2 grid steps when M allows (v7x: 2 TensorCores),
    # 8-aligned, and avoid Mp nearly doubling when M is just above k*512.
    if M <= 8:
        return 8
    n_tiles = max(2, _cdiv(M, 512))
    return _round_up(_cdiv(M, n_tiles), 8)


# ----------------------------------------------------------------------------
# Kernel 1: 1x1 conv (matmul over channels) + bias + ReLU
#   f32 input read straight from HBM, bf16 cast in-kernel, bf16 output.
# ----------------------------------------------------------------------------
def _pw_conv_kernel(x_ref, w_ref, b_ref, o_ref):
    xb = x_ref[...].astype(jnp.bfloat16)                  # in-kernel cast (VPU)
    y = jnp.dot(xb, w_ref[...], preferred_element_type=jnp.float32) + b_ref[...]
    o_ref[...] = jnp.maximum(y, 0.0).astype(o_ref.dtype)


def pw_conv_bias_relu(x2d, w, b):
    M, Cin = x2d.shape
    Cp = w.shape[-1]
    tm = _pick_tm(M)
    Mp = _round_up(M, tm)
    if Mp != M:
        x2d = jnp.pad(x2d, ((0, Mp - M), (0, 0)))
    out = pl.pallas_call(
        _pw_conv_kernel,
        out_shape=jax.ShapeDtypeStruct((Mp, Cp), jnp.bfloat16),
        grid=(Mp // tm,),
        in_specs=[
            pl.BlockSpec((tm, Cin), lambda i: (i, 0)),
            pl.BlockSpec((Cin, Cp), lambda i: (0, 0)),
            pl.BlockSpec((1, Cp), lambda i: (0, 0)),
        ],
        out_specs=pl.BlockSpec((tm, Cp), lambda i: (i, 0)),
        compiler_params=pltpu.CompilerParams(
            dimension_semantics=("parallel",)),
    )(x2d, w, b)
    return out[:M] if Mp != M else out


# ----------------------------------------------------------------------------
# Kernel 2: 3x3 conv (stride, pad=1) + bias + ReLU
#   One grid step per batch image; halo built in VMEM; kh-concat => 3 matmuls
#   with K = 3*Cp.  No Ref indexing other than full-block reads/writes.
# ----------------------------------------------------------------------------
def _conv3x3_kernel(x_ref, wk0_ref, wk1_ref, wk2_ref, b_ref, o_ref, *,
                    stride, H, W, Ho, Wo):
    Cp = b_ref.shape[-1]
    x = x_ref[...].reshape(H, W, Cp)                      # bf16 value
    # pad=1 halo, built in VMEM (no HBM pad pass)
    zr = jnp.zeros((1, W, Cp), x.dtype)
    xp = jnp.concatenate([zr, x, zr], axis=0)             # (H+2, W, Cp)
    zc = jnp.zeros((H + 2, 1, Cp), x.dtype)
    xp = jnp.concatenate([zc, xp, zc], axis=1)            # (H+2, W+2, Cp)

    hi = (Ho - 1) * stride + 1
    wi = (Wo - 1) * stride + 1
    w_refs = (wk0_ref, wk1_ref, wk2_ref)

    acc = jnp.zeros((Ho * Wo, Cp), jnp.float32)
    for kw in range(3):
        # concatenate the three kh taps along the contraction dim -> K = 3*Cp
        taps = [xp[kh:kh + hi:stride, kw:kw + wi:stride, :] for kh in range(3)]
        patch = jnp.concatenate(taps, axis=-1).reshape(Ho * Wo, 3 * Cp)
        acc = acc + jnp.dot(patch, w_refs[kw][...],
                            preferred_element_type=jnp.float32)
    y = jnp.maximum(acc + b_ref[...], 0.0)
    o_ref[...] = y.reshape(1, Ho, Wo, Cp).astype(o_ref.dtype)


def conv3x3_bias_relu(x4d, w_list, b, *, stride, Ho, Wo):
    N, H, W, Cp = x4d.shape
    kernel = functools.partial(_conv3x3_kernel, stride=stride,
                               H=H, W=W, Ho=Ho, Wo=Wo)
    wspec = pl.BlockSpec((3 * Cp, Cp), lambda n: (0, 0))
    return pl.pallas_call(
        kernel,
        out_shape=jax.ShapeDtypeStruct((N, Ho, Wo, Cp), jnp.bfloat16),
        grid=(N,),
        in_specs=[
            pl.BlockSpec((1, H, W, Cp), lambda n: (n, 0, 0, 0)),
            wspec, wspec, wspec,
            pl.BlockSpec((1, Cp), lambda n: (0, 0)),
        ],
        out_specs=pl.BlockSpec((1, Ho, Wo, Cp), lambda n: (n, 0, 0, 0)),
        compiler_params=pltpu.CompilerParams(
            dimension_semantics=("parallel",)),
    )(x4d, *w_list, b)


# ----------------------------------------------------------------------------
# Kernel 3a: fused conv3 (1x1) + bias + identity shortcut + add + ReLU
# ----------------------------------------------------------------------------
def _fused_identity_kernel(h_ref, sc_ref, w3_ref, b3_ref, o_ref):
    y = jnp.dot(h_ref[...], w3_ref[...],
                preferred_element_type=jnp.float32) + b3_ref[...]
    o_ref[...] = jnp.maximum(y + sc_ref[...].astype(jnp.float32),
                             0.0).astype(o_ref.dtype)


def fused_identity(h2d, sc2d, w3, b3):
    M, Pp = h2d.shape
    Cout = w3.shape[-1]
    tm = _pick_tm(M)
    Mp = _round_up(M, tm)
    if Mp != M:
        h2d = jnp.pad(h2d, ((0, Mp - M), (0, 0)))
        sc2d = jnp.pad(sc2d, ((0, Mp - M), (0, 0)))
    out = pl.pallas_call(
        _fused_identity_kernel,
        out_shape=jax.ShapeDtypeStruct((Mp, Cout), jnp.bfloat16),
        grid=(Mp // tm,),
        in_specs=[
            pl.BlockSpec((tm, Pp), lambda i: (i, 0)),
            pl.BlockSpec((tm, Cout), lambda i: (i, 0)),
            pl.BlockSpec((Pp, Cout), lambda i: (0, 0)),
            pl.BlockSpec((1, Cout), lambda i: (0, 0)),
        ],
        out_specs=pl.BlockSpec((tm, Cout), lambda i: (i, 0)),
        compiler_params=pltpu.CompilerParams(
            dimension_semantics=("parallel",)),
    )(h2d, sc2d, w3, b3)
    return out[:M] if Mp != M else out


# ----------------------------------------------------------------------------
# Kernel 3b: fused conv3 (1x1) + bias + projection shortcut (1x1, stride) +
#            add + ReLU.  The stride-s spatial subsample of x is done on the
#            resident block (no JAX strided-gather pass over the input).
# ----------------------------------------------------------------------------
def _fused_proj_kernel(h_ref, x_ref, w3_ref, wsc_ref, b3_ref, bsc_ref, o_ref,
                       *, stride, H, W, Ho, Wo):
    Pp = h_ref.shape[-1]
    Cin = x_ref.shape[-1]
    Cout = o_ref.shape[-1]

    h = h_ref[...].reshape(Ho * Wo, Pp)
    y = jnp.dot(h, w3_ref[...],
                preferred_element_type=jnp.float32) + b3_ref[...]

    xv = x_ref[...].reshape(H, W, Cin)
    if stride > 1:
        xv = xv[::stride, ::stride, :]                    # (Ho, Wo, Cin)
    s = jnp.dot(xv.reshape(Ho * Wo, Cin).astype(jnp.bfloat16), wsc_ref[...],
                preferred_element_type=jnp.float32) + bsc_ref[...]

    o = jnp.maximum(y + s, 0.0)
    o_ref[...] = o.reshape(1, Ho, Wo, Cout).astype(o_ref.dtype)


def fused_proj(h4d, x4d, w3, wsc, b3, bsc, *, stride, Ho, Wo):
    N, H, W, Cin = x4d.shape
    Pp = h4d.shape[-1]
    Cout = w3.shape[-1]
    kernel = functools.partial(_fused_proj_kernel, stride=stride,
                               H=H, W=W, Ho=Ho, Wo=Wo)
    return pl.pallas_call(
        kernel,
        out_shape=jax.ShapeDtypeStruct((N, Ho, Wo, Cout), jnp.bfloat16),
        grid=(N,),
        in_specs=[
            pl.BlockSpec((1, Ho, Wo, Pp), lambda n: (n, 0, 0, 0)),
            pl.BlockSpec((1, H, W, Cin), lambda n: (n, 0, 0, 0)),
            pl.BlockSpec((Pp, Cout), lambda n: (0, 0)),
            pl.BlockSpec((Cin, Cout), lambda n: (0, 0)),
            pl.BlockSpec((1, Cout), lambda n: (0, 0)),
            pl.BlockSpec((1, Cout), lambda n: (0, 0)),
        ],
        out_specs=pl.BlockSpec((1, Ho, Wo, Cout), lambda n: (n, 0, 0, 0)),
        compiler_params=pltpu.CompilerParams(
            dimension_semantics=("parallel",)),
    )(h4d, x4d, w3, wsc, b3, bsc)


# ----------------------------------------------------------------------------
# Parameter folding (inference-mode BN scale folded into the conv weights)
# ----------------------------------------------------------------------------
def _fold_params(params):
    p = {"w1": params["w1"] * params["s1"], "b1": params["b1"],
         "w2": params["w2"] * params["s2"][None], "b2": params["b2"],
         "w3": params["w3"] * params["s3"], "b3": params["b3"]}
    if "wsc" in params:
        p["wsc"] = params["wsc"] * params["ssc"]
        p["bsc"] = params["bsc"]
    return p


# ----------------------------------------------------------------------------
# Bottleneck forward
# ----------------------------------------------------------------------------
def bottleneck_forward(x_nchw, params, stride=1):
    N, Cin, H, W = x_nchw.shape
    p = _fold_params(params)
    planes = p["w1"].shape[1]
    Cout = p["w3"].shape[1]
    has_sc = "wsc" in p
    if not has_sc:
        assert stride == 1 and Cin == Cout, \
            "identity shortcut requires stride==1 and Cin==Cout"

    Pp = _round_up(planes, LANES)        # intermediate channels lane-padded

    # single interface transpose (module spec is NCHW); activations stay NHWC
    x = jnp.transpose(x_nchw, (0, 2, 3, 1)).astype(jnp.float32)

    # ---- conv1 (1x1) + bn1 + relu : bf16, lane-dense Pp channels ----
    w1 = jnp.pad(p["w1"], ((0, 0), (0, Pp - planes))).astype(jnp.bfloat16)
    b1 = jnp.pad(p["b1"].astype(jnp.float32), ((0, 0), (0, Pp - planes)))
    out1 = pw_conv_bias_relu(x.reshape(N * H * W, Cin), w1, b1)
    out1 = out1.reshape(N, H, W, Pp)

    # ---- conv2 (3x3, stride, pad=1) + bn2 + relu ----
    Ho = (H - 1) // stride + 1
    Wo = (W - 1) // stride + 1
    w2p = jnp.pad(p["w2"], ((0, 0), (0, Pp - planes), (0, Pp - planes)))
    # kh-concat weight packing: one (3*Pp, Pp) matrix per kw
    w2_list = [jnp.concatenate([w2p[3 * 0 + kw], w2p[3 * 1 + kw],
                                w2p[3 * 2 + kw]], axis=0).astype(jnp.bfloat16)
               for kw in range(3)]
    b2 = jnp.pad(p["b2"].astype(jnp.float32), ((0, 0), (0, Pp - planes)))
    out2 = conv3x3_bias_relu(out1, w2_list, b2, stride=stride, Ho=Ho, Wo=Wo)

    # ---- fused conv3 (1x1) + bn3 + shortcut + add + relu ----
    w3 = jnp.pad(p["w3"], ((0, Pp - planes), (0, 0))).astype(jnp.bfloat16)
    b3 = p["b3"].astype(jnp.float32)
    if has_sc:
        wsc = p["wsc"].astype(jnp.bfloat16)
        bsc = p["bsc"].astype(jnp.float32)
        out = fused_proj(out2, x, w3, wsc, b3, bsc, stride=stride,
                         Ho=Ho, Wo=Wo)                       # (N,Ho,Wo,Cout)
    else:
        Mo = N * H * W
        out = fused_identity(out2.reshape(Mo, Pp),
                             x.reshape(Mo, Cout), w3, b3)    # (Mo, Cout)
        out = out.reshape(N, Ho, Wo, Cout)

    return jnp.transpose(out, (0, 3, 1, 2)).astype(jnp.float32)  # NCHW


# ----------------------------------------------------------------------------
# Pure-JAX reference (same folded-BN / bf16-matmul numerics) for verification
# ----------------------------------------------------------------------------
def reference_forward(x_nchw, params, stride=1):
    p = _fold_params(params)
    x = jnp.transpose(x_nchw, (0, 2, 3, 1)).astype(jnp.float32)
    Cin = x.shape[-1]
    planes = p["w1"].shape[1]
    Cout = p["w3"].shape[1]

    def conv(inp, w_hwio, s, pad):
        return jax.lax.conv_general_dilated(
            inp.astype(jnp.bfloat16), w_hwio.astype(jnp.bfloat16), (s, s), pad,
            dimension_numbers=("NHWC", "HWIO", "NHWC"),
            preferred_element_type=jnp.float32)

    o = conv(x, p["w1"].reshape(1, 1, Cin, planes), 1, "VALID") + p["b1"]
    o = jax.nn.relu(o)
    o = conv(o, p["w2"].reshape(3, 3, planes, planes), stride,
             ((1, 1), (1, 1))) + p["b2"]
    o = jax.nn.relu(o)
    o = conv(o, p["w3"].reshape(1, 1, planes, Cout), 1, "VALID") + p["b3"]
    if "wsc" in p:
        sc = conv(x, p["wsc"].reshape(1, 1, Cin, Cout), stride, "VALID")
        sc = sc + p["bsc"]
    else:
        sc = x
    o = jax.nn.relu(o + sc)
    return jnp.transpose(o, (0, 3, 1, 2))


# ----------------------------------------------------------------------------
def _fold_bn(gamma, beta, mean, var, eps=1e-5):
    scale = gamma / jnp.sqrt(var + eps)
    bias = beta - mean * scale
    return scale[None, :], bias[None, :]


def make_params(key, in_planes, planes, stride, expansion=4):
    Cout = expansion * planes
    ks = jax.random.split(key, 20)
    p = {}
    p["w1"] = 0.3 * jax.random.normal(ks[0], (in_planes, planes), jnp.float32)
    p["w2"] = 0.3 * jax.random.normal(ks[1], (9, planes, planes), jnp.float32)
    p["w3"] = 0.3 * jax.random.normal(ks[2], (planes, Cout), jnp.float32)

    def bn(k, c):
        k1, k2, k3, k4 = jax.random.split(k, 4)
        gamma = 1.0 + 0.1 * jax.random.normal(k1, (c,), jnp.float32)
        beta = 0.1 * jax.random.normal(k2, (c,), jnp.float32)
        mean = 0.1 * jax.random.normal(k3, (c,), jnp.float32)
        var = jax.random.uniform(k4, (c,), jnp.float32, 0.5, 1.5)
        return _fold_bn(gamma, beta, mean, var)

    p["s1"], p["b1"] = bn(ks[3], planes)
    p["s2"], p["b2"] = bn(ks[4], planes)
    p["s3"], p["b3"] = bn(ks[5], Cout)

    if stride != 1 or in_planes != Cout:
        p["wsc"] = 0.3 * jax.random.normal(ks[6], (in_planes, Cout),
                                           jnp.float32)
        p["ssc"], p["bsc"] = bn(ks[7], Cout)
    return p


if __name__ == "__main__":
    key = jax.random.PRNGKey(0)
    configs = [
        # (N, in_planes, planes, stride, H, W)
        (2, 4, 4, 1, 16, 16),    # projection shortcut, stride 1
        (2, 16, 4, 1, 16, 16),   # identity shortcut
        (2, 8, 4, 2, 16, 16),    # projection shortcut, stride 2
    ]
    for idx, (N, in_planes, planes, stride, H, W) in enumerate(configs):
        kx, kp, key = jax.random.split(key, 3)
        x = jax.random.normal(kx, (N, in_planes, H, W), jnp.float32)
        params = make_params(kp, in_planes, planes, stride)

        fwd = jax.jit(functools.partial(bottleneck_forward, stride=stride))
        out = jax.block_until_ready(fwd(x, params))
        ref = reference_forward(x, params, stride=stride)

        Cout = 4 * planes
        Ho = (H - 1) // stride + 1
        Wo = (W - 1) // stride + 1
        assert out.shape == (N, Cout, Ho, Wo), (out.shape, (N, Cout, Ho, Wo))
        max_err = float(jnp.max(jnp.abs(out - ref)))
        assert jnp.allclose(out, ref, rtol=2e-2, atol=2e-2), \
            f"config {idx}: max abs err {max_err}"

    print("KERNEL_OK")
</pallas_src>

<mosaic_0001>
module attributes {stable_mosaic.version = 11 : i64} {
  func.func @_conv3x3_kernel(%arg0: i32, %arg1: memref<1x16x16x128xbf16, #tpu.memory_space<vmem>>, %arg2: memref<384x128xbf16, #tpu.memory_space<vmem>>, %arg3: memref<384x128xbf16, #tpu.memory_space<vmem>>, %arg4: memref<384x128xbf16, #tpu.memory_space<vmem>>, %arg5: memref<1x128xf32, #tpu.memory_space<vmem>>, %arg6: memref<1x16x16x128xbf16, #tpu.memory_space<vmem>>) attributes {dimension_semantics = [#tpu.dimension_semantics<parallel>], iteration_bounds = array<i64: 2>, scalar_prefetch = 0 : i64, scratch_operands = 0 : i64, tpu.core_type = #tpu.core_type<tc>, window_params = [{transform_indices = @transform_0, window_bounds = array<i64: 1, 16, 16, 128>}, {pipeline_mode = #tpu.pipeline_mode<synchronous>, transform_indices = @transform_1, window_bounds = array<i64: 384, 128>}, {pipeline_mode = #tpu.pipeline_mode<synchronous>, transform_indices = @transform_2, window_bounds = array<i64: 384, 128>}, {pipeline_mode = #tpu.pipeline_mode<synchronous>, transform_indices = @transform_3, window_bounds = array<i64: 384, 128>}, {pipeline_mode = #tpu.pipeline_mode<synchronous>, transform_indices = @transform_4, window_bounds = array<i64: 1, 128>}, {transform_indices = @transform_5, window_bounds = array<i64: 1, 16, 16, 128>}]} {
    %c0 = arith.constant 0 : index
    %c0_0 = arith.constant 0 : index
    %c0_1 = arith.constant 0 : index
    %c0_2 = arith.constant 0 : index
    %0 = vector.load %arg1[%c0, %c0_0, %c0_1, %c0_2] : memref<1x16x16x128xbf16, #tpu.memory_space<vmem>>, vector<1x16x16x128xbf16>
    %1 = vector.shape_cast %0 : vector<1x16x16x128xbf16> to vector<16x16x128xbf16>
    %cst = arith.constant 0.000000e+00 : bf16
    %2 = vector.broadcast %cst : bf16 to vector<1x16x128xbf16>
    %3 = tpu.concatenate %2, %1, %2 in 0 : vector<1x16x128xbf16>, vector<16x16x128xbf16>, vector<1x16x128xbf16> -> vector<18x16x128xbf16>
    %cst_3 = arith.constant 0.000000e+00 : bf16
    %4 = vector.broadcast %cst_3 : bf16 to vector<18x1x128xbf16>
    %5 = tpu.concatenate %4, %3, %4 in 1 : vector<18x1x128xbf16>, vector<18x16x128xbf16>, vector<18x1x128xbf16> -> vector<18x18x128xbf16>
    %cst_4 = arith.constant 0.000000e+00 : f32
    %6 = vector.broadcast %cst_4 : f32 to vector<256x128xf32>
    %7 = vector.extract_strided_slice %5 {offsets = [0, 0, 0], sizes = [16, 16, 128], strides = [1, 1, 1]} : vector<18x18x128xbf16> to vector<16x16x128xbf16>
    %8 = vector.extract_strided_slice %5 {offsets = [1, 0, 0], sizes = [16, 16, 128], strides = [1, 1, 1]} : vector<18x18x128xbf16> to vector<16x16x128xbf16>
    %9 = vector.extract_strided_slice %5 {offsets = [2, 0, 0], sizes = [16, 16, 128], strides = [1, 1, 1]} : vector<18x18x128xbf16> to vector<16x16x128xbf16>
    %10 = tpu.concatenate %7, %8, %9 in 2 : vector<16x16x128xbf16>, vector<16x16x128xbf16>, vector<16x16x128xbf16> -> vector<16x16x384xbf16>
    %11 = vector.shape_cast %10 : vector<16x16x384xbf16> to vector<256x384xbf16>
    %c0_5 = arith.constant 0 : index
    %c0_6 = arith.constant 0 : index
    %12 = vector.load %arg2[%c0_5, %c0_6] : memref<384x128xbf16, #tpu.memory_space<vmem>>, vector<384x128xbf16>
    %cst_7 = arith.constant dense<0.000000e+00> : vector<256x128xf32>
    %13 = tpu.matmul %11, %12, %cst_7 {dimension_numbers = #tpu.dot_dimension_numbers<[1], [0], [0], [1], [0, 0, 1, 1], [], []>} : vector<256x384xbf16>, vector<384x128xbf16>, vector<256x128xf32> -> vector<256x128xf32>
    %14 = arith.addf %6, %13 : vector<256x128xf32>
    %15 = vector.extract_strided_slice %5 {offsets = [0, 1, 0], sizes = [16, 16, 128], strides = [1, 1, 1]} : vector<18x18x128xbf16> to vector<16x16x128xbf16>
    %16 = vector.extract_strided_slice %5 {offsets = [1, 1, 0], sizes = [16, 16, 128], strides = [1, 1, 1]} : vector<18x18x128xbf16> to vector<16x16x128xbf16>
    %17 = vector.extract_strided_slice %5 {offsets = [2, 1, 0], sizes = [16, 16, 128], strides = [1, 1, 1]} : vector<18x18x128xbf16> to vector<16x16x128xbf16>
    %18 = tpu.concatenate %15, %16, %17 in 2 : vector<16x16x128xbf16>, vector<16x16x128xbf16>, vector<16x16x128xbf16> -> vector<16x16x384xbf16>
    %19 = vector.shape_cast %18 : vector<16x16x384xbf16> to vector<256x384xbf16>
    %c0_8 = arith.constant 0 : index
    %c0_9 = arith.constant 0 : index
    %20 = vector.load %arg3[%c0_8, %c0_9] : memref<384x128xbf16, #tpu.memory_space<vmem>>, vector<384x128xbf16>
    %cst_10 = arith.constant dense<0.000000e+00> : vector<256x128xf32>
    %21 = tpu.matmul %19, %20, %cst_10 {dimension_numbers = #tpu.dot_dimension_numbers<[1], [0], [0], [1], [0, 0, 1, 1], [], []>} : vector<256x384xbf16>, vector<384x128xbf16>, vector<256x128xf32> -> vector<256x128xf32>
    %22 = arith.addf %14, %21 : vector<256x128xf32>
    %23 = vector.extract_strided_slice %5 {offsets = [0, 2, 0], sizes = [16, 16, 128], strides = [1, 1, 1]} : vector<18x18x128xbf16> to vector<16x16x128xbf16>
    %24 = vector.extract_strided_slice %5 {offsets = [1, 2, 0], sizes = [16, 16, 128], strides = [1, 1, 1]} : vector<18x18x128xbf16> to vector<16x16x128xbf16>
    %25 = vector.extract_strided_slice %5 {offsets = [2, 2, 0], sizes = [16, 16, 128], strides = [1, 1, 1]} : vector<18x18x128xbf16> to vector<16x16x128xbf16>
    %26 = tpu.concatenate %23, %24, %25 in 2 : vector<16x16x128xbf16>, vector<16x16x128xbf16>, vector<16x16x128xbf16> -> vector<16x16x384xbf16>
    %27 = vector.shape_cast %26 : vector<16x16x384xbf16> to vector<256x384xbf16>
    %c0_11 = arith.constant 0 : index
    %c0_12 = arith.constant 0 : index
    %28 = vector.load %arg4[%c0_11, %c0_12] : memref<384x128xbf16, #tpu.memory_space<vmem>>, vector<384x128xbf16>
    %cst_13 = arith.constant dense<0.000000e+00> : vector<256x128xf32>
    %29 = tpu.matmul %27, %28, %cst_13 {dimension_numbers = #tpu.dot_dimension_numbers<[1], [0], [0], [1], [0, 0, 1, 1], [], []>} : vector<256x384xbf16>, vector<384x128xbf16>, vector<256x128xf32> -> vector<256x128xf32>
    %30 = arith.addf %22, %29 : vector<256x128xf32>
    %c0_14 = arith.constant 0 : index
    %c0_15 = arith.constant 0 : index
    %31 = vector.load %arg5[%c0_14, %c0_15] : memref<1x128xf32, #tpu.memory_space<vmem>>, vector<1x128xf32>
    %32 = vector.broadcast %31 : vector<1x128xf32> to vector<256x128xf32>
    %33 = arith.addf %30, %32 : vector<256x128xf32>
    %cst_16 = arith.constant 0.000000e+00 : f32
    %34 = vector.broadcast %cst_16 : f32 to vector<256x128xf32>
    %35 = arith.maximumf %33, %34 : vector<256x128xf32>
    %36 = vector.shape_cast %35 : vector<256x128xf32> to vector<1x16x16x128xf32>
    %37 = arith.truncf %36 : vector<1x16x16x128xf32> to vector<1x16x16x128xbf16>
    %c0_17 = arith.constant 0 : index
    %c0_18 = arith.constant 0 : index
    %c0_19 = arith.constant 0 : index
    %c0_20 = arith.constant 0 : index
    %38 = vector.load %arg6[%c0_17, %c0_18, %c0_19, %c0_20] : memref<1x16x16x128xbf16, #tpu.memory_space<vmem>>, vector<1x16x16x128xbf16>
    tpu.vector_store %arg6[%c0_17, %c0_18, %c0_19, %c0_20], %37 {strides = array<i32>} : memref<1x16x16x128xbf16, #tpu.memory_space<vmem>>, vector<1x16x16x128xbf16>,
    return
  }
  func.func @transform_0(%arg0: i32) -> (i32, i32, i32, i32) {
    %c0_i32 = arith.constant 0 : i32
    %c0_i32_0 = arith.constant 0 : i32
    %c0_i32_1 = arith.constant 0 : i32
    %c0_i32_2 = arith.constant 0 : i32
    return %arg0, %c0_i32, %c0_i32_0, %c0_i32_1 : i32, i32, i32, i32
  }
  func.func @transform_1(%arg0: i32) -> (i32, i32) {
    %c0_i32 = arith.constant 0 : i32
    %c0_i32_0 = arith.constant 0 : i32
    %c0_i32_1 = arith.constant 0 : i32
    return %c0_i32, %c0_i32_0 : i32, i32
  }
  func.func @transform_2(%arg0: i32) -> (i32, i32) {
    %c0_i32 = arith.constant 0 : i32
    %c0_i32_0 = arith.constant 0 : i32
    %c0_i32_1 = arith.constant 0 : i32
    return %c0_i32, %c0_i32_0 : i32, i32
  }
  func.func @transform_3(%arg0: i32) -> (i32, i32) {
    %c0_i32 = arith.constant 0 : i32
    %c0_i32_0 = arith.constant 0 : i32
    %c0_i32_1 = arith.constant 0 : i32
    return %c0_i32, %c0_i32_0 : i32, i32
  }
  func.func @transform_4(%arg0: i32) -> (i32, i32) {
    %c0_i32 = arith.constant 0 : i32
    %c0_i32_0 = arith.constant 0 : i32
    %c0_i32_1 = arith.constant 0 : i32
    return %c0_i32, %c0_i32_0 : i32, i32
  }
  func.func @transform_5(%arg0: i32) -> (i32, i32, i32, i32) {
    %c0_i32 = arith.constant 0 : i32
    %c0_i32_0 = arith.constant 0 : i32
    %c0_i32_1 = arith.constant 0 : i32
    %c0_i32_2 = arith.constant 0 : i32
    return %arg0, %c0_i32, %c0_i32_0, %c0_i32_1 : i32, i32, i32, i32
  }
}

module attributes {stable_mosaic.version = 11 : i64} {
  func.func @_pw_conv_kernel(%arg0: i32, %arg1: memref<256x4xf32, #tpu.memory_space<vmem>>, %arg2: memref<4x128xbf16, #tpu.memory_space<vmem>>, %arg3: memref<1x128xf32, #tpu.memory_space<vmem>>, %arg4: memref<256x128xbf16, #tpu.memory_space<vmem>>) attributes {dimension_semantics = [#tpu.dimension_semantics<parallel>], iteration_bounds = array<i64: 2>, scalar_prefetch = 0 : i64, scratch_operands = 0 : i64, tpu.core_type = #tpu.core_type<tc>, window_params = [{transform_indices = @transform_0, window_bounds = array<i64: 256, 4>}, {pipeline_mode = #tpu.pipeline_mode<synchronous>, transform_indices = @transform_1, window_bounds = array<i64: 4, 128>}, {pipeline_mode = #tpu.pipeline_mode<synchronous>, transform_indices = @transform_2, window_bounds = array<i64: 1, 128>}, {transform_indices = @transform_3, window_bounds = array<i64: 256, 128>}]} {
    %c0 = arith.constant 0 : index
    %c0_0 = arith.constant 0 : index
    %0 = vector.load %arg1[%c0, %c0_0] : memref<256x4xf32, #tpu.memory_space<vmem>>, vector<256x4xf32>
    %1 = arith.truncf %0 : vector<256x4xf32> to vector<256x4xbf16>
    %c0_1 = arith.constant 0 : index
    %c0_2 = arith.constant 0 : index
    %2 = vector.load %arg2[%c0_1, %c0_2] : memref<4x128xbf16, #tpu.memory_space<vmem>>, vector<4x128xbf16>
    %cst = arith.constant dense<0.000000e+00> : vector<256x128xf32>
    %3 = tpu.matmul %1, %2, %cst {dimension_numbers = #tpu.dot_dimension_numbers<[1], [0], [0], [1], [0, 0, 1, 1], [], []>} : vector<256x4xbf16>, vector<4x128xbf16>, vector<256x128xf32> -> vector<256x128xf32>
    %c0_3 = arith.constant 0 : index
    %c0_4 = arith.constant 0 : index
    %4 = vector.load %arg3[%c0_3, %c0_4] : memref<1x128xf32, #tpu.memory_space<vmem>>, vector<1x128xf32>
    %5 = vector.broadcast %4 : vector<1x128xf32> to vector<256x128xf32>
    %6 = arith.addf %3, %5 : vector<256x128xf32>
    %cst_5 = arith.constant 0.000000e+00 : f32
    %7 = vector.broadcast %cst_5 : f32 to vector<256x128xf32>
    %8 = arith.maximumf %6, %7 : vector<256x128xf32>
    %9 = arith.truncf %8 : vector<256x128xf32> to vector<256x128xbf16>
    %c0_6 = arith.constant 0 : index
    %c0_7 = arith.constant 0 : index
    %10 = vector.load %arg4[%c0_6, %c0_7] : memref<256x128xbf16, #tpu.memory_space<vmem>>, vector<256x128xbf16>
    tpu.vector_store %arg4[%c0_6, %c0_7], %9 {strides = array<i32>} : memref<256x128xbf16, #tpu.memory_space<vmem>>, vector<256x128xbf16>,
    return
  }
  func.func @transform_0(%arg0: i32) -> (i32, i32) {
    %c0_i32 = arith.constant 0 : i32
    %c0_i32_0 = arith.constant 0 : i32
    return %arg0, %c0_i32 : i32, i32
  }
  func.func @transform_1(%arg0: i32) -> (i32, i32) {
    %c0_i32 = arith.constant 0 : i32
    %c0_i32_0 = arith.constant 0 : i32
    %c0_i32_1 = arith.constant 0 : i32
    return %c0_i32, %c0_i32_0 : i32, i32
  }
  func.func @transform_2(%arg0: i32) -> (i32, i32) {
    %c0_i32 = arith.constant 0 : i32
    %c0_i32_0 = arith.constant 0 : i32
    %c0_i32_1 = arith.constant 0 : i32
    return %c0_i32, %c0_i32_0 : i32, i32
  }
  func.func @transform_3(%arg0: i32) -> (i32, i32) {
    %c0_i32 = arith.constant 0 : i32
    %c0_i32_0 = arith.constant 0 : i32
    return %arg0, %c0_i32 : i32, i32
  }
}

module attributes {stable_mosaic.version = 11 : i64} {
  func.func @_fused_proj_kernel(%arg0: i32, %arg1: memref<1x16x16x128xbf16, #tpu.memory_space<vmem>>, %arg2: memref<1x16x16x4xf32, #tpu.memory_space<vmem>>, %arg3: memref<128x16xbf16, #tpu.memory_space<vmem>>, %arg4: memref<4x16xbf16, #tpu.memory_space<vmem>>, %arg5: memref<1x16xf32, #tpu.memory_space<vmem>>, %arg6: memref<1x16xf32, #tpu.memory_space<vmem>>, %arg7: memref<1x16x16x16xbf16, #tpu.memory_space<vmem>>) attributes {dimension_semantics = [#tpu.dimension_semantics<parallel>], iteration_bounds = array<i64: 2>, scalar_prefetch = 0 : i64, scratch_operands = 0 : i64, tpu.core_type = #tpu.core_type<tc>, window_params = [{transform_indices = @transform_0, window_bounds = array<i64: 1, 16, 16, 128>}, {transform_indices = @transform_1, window_bounds = array<i64: 1, 16, 16, 4>}, {pipeline_mode = #tpu.pipeline_mode<synchronous>, transform_indices = @transform_2, window_bounds = array<i64: 128, 16>}, {pipeline_mode = #tpu.pipeline_mode<synchronous>, transform_indices = @transform_3, window_bounds = array<i64: 4, 16>}, {pipeline_mode = #tpu.pipeline_mode<synchronous>, transform_indices = @transform_4, window_bounds = array<i64: 1, 16>}, {pipeline_mode = #tpu.pipeline_mode<synchronous>, transform_indices = @transform_5, window_bounds = array<i64: 1, 16>}, {transform_indices = @transform_6, window_bounds = array<i64: 1, 16, 16, 16>}]} {
    %c0 = arith.constant 0 : index
    %c0_0 = arith.constant 0 : index
    %c0_1 = arith.constant 0 : index
    %c0_2 = arith.constant 0 : index
    %0 = vector.load %arg1[%c0, %c0_0, %c0_1, %c0_2] : memref<1x16x16x128xbf16, #tpu.memory_space<vmem>>, vector<1x16x16x128xbf16>
    %1 = vector.shape_cast %0 : vector<1x16x16x128xbf16> to vector<256x128xbf16>
    %c0_3 = arith.constant 0 : index
    %c0_4 = arith.constant 0 : index
    %2 = vector.load %arg3[%c0_3, %c0_4] : memref<128x16xbf16, #tpu.memory_space<vmem>>, vector<128x16xbf16>
    %cst = arith.constant dense<0.000000e+00> : vector<256x16xf32>
    %3 = tpu.matmul %1, %2, %cst {dimension_numbers = #tpu.dot_dimension_numbers<[1], [0], [0], [1], [0, 0, 1, 1], [], []>} : vector<256x128xbf16>, vector<128x16xbf16>, vector<256x16xf32> -> vector<256x16xf32>
    %c0_5 = arith.constant 0 : index
    %c0_6 = arith.constant 0 : index
    %4 = vector.load %arg5[%c0_5, %c0_6] : memref<1x16xf32, #tpu.memory_space<vmem>>, vector<1x16xf32>
    %5 = vector.broadcast %4 : vector<1x16xf32> to vector<256x16xf32>
    %6 = arith.addf %3, %5 : vector<256x16xf32>
    %c0_7 = arith.constant 0 : index
    %c0_8 = arith.constant 0 : index
    %c0_9 = arith.constant 0 : index
    %c0_10 = arith.constant 0 : index
    %7 = vector.load %arg2[%c0_7, %c0_8, %c0_9, %c0_10] : memref<1x16x16x4xf32, #tpu.memory_space<vmem>>, vector<1x16x16x4xf32>
    %8 = vector.shape_cast %7 : vector<1x16x16x4xf32> to vector<16x16x4xf32>
    %9 = vector.shape_cast %8 : vector<16x16x4xf32> to vector<256x4xf32>
    %10 = arith.truncf %9 : vector<256x4xf32> to vector<256x4xbf16>
    %c0_11 = arith.constant 0 : index
    %c0_12 = arith.constant 0 : index
    %11 = vector.load %arg4[%c0_11, %c0_12] : memref<4x16xbf16, #tpu.memory_space<vmem>>, vector<4x16xbf16>
    %cst_13 = arith.constant dense<0.000000e+00> : vector<256x16xf32>
    %12 = tpu.matmul %10, %11, %cst_13 {dimension_numbers = #tpu.dot_dimension_numbers<[1], [0], [0], [1], [0, 0, 1, 1], [], []>} : vector<256x4xbf16>, vector<4x16xbf16>, vector<256x16xf32> -> vector<256x16xf32>
    %c0_14 = arith.constant 0 : index
    %c0_15 = arith.constant 0 : index
    %13 = vector.load %arg6[%c0_14, %c0_15] : memref<1x16xf32, #tpu.memory_space<vmem>>, vector<1x16xf32>
    %14 = vector.broadcast %13 : vector<1x16xf32> to vector<256x16xf32>
    %15 = arith.addf %12, %14 : vector<256x16xf32>
    %16 = arith.addf %6, %15 : vector<256x16xf32>
    %cst_16 = arith.constant 0.000000e+00 : f32
    %17 = vector.broadcast %cst_16 : f32 to vector<256x16xf32>
    %18 = arith.maximumf %16, %17 : vector<256x16xf32>
    %19 = vector.shape_cast %18 : vector<256x16xf32> to vector<1x16x16x16xf32>
    %20 = arith.truncf %19 : vector<1x16x16x16xf32> to vector<1x16x16x16xbf16>
    %c0_17 = arith.constant 0 : index
    %c0_18 = arith.constant 0 : index
    %c0_19 = arith.constant 0 : index
    %c0_20 = arith.constant 0 : index
    %21 = vector.load %arg7[%c0_17, %c0_18, %c0_19, %c0_20] : memref<1x16x16x16xbf16, #tpu.memory_space<vmem>>, vector<1x16x16x16xbf16>
    tpu.vector_store %arg7[%c0_17, %c0_18, %c0_19, %c0_20], %20 {strides = array<i32>} : memref<1x16x16x16xbf16, #tpu.memory_space<vmem>>, vector<1x16x16x16xbf16>,
    return
  }
  func.func @transform_0(%arg0: i32) -> (i32, i32, i32, i32) {
    %c0_i32 = arith.constant 0 : i32
    %c0_i32_0 = arith.constant 0 : i32
    %c0_i32_1 = arith.constant 0 : i32
    %c0_i32_2 = arith.constant 0 : i32
    return %arg0, %c0_i32, %c0_i32_0, %c0_i32_1 : i32, i32, i32, i32
  }
  func.func @transform_1(%arg0: i32) -> (i32, i32, i32, i32) {
    %c0_i32 = arith.constant 0 : i32
    %c0_i32_0 = arith.constant 0 : i32
    %c0_i32_1 = arith.constant 0 : i32
    %c0_i32_2 = arith.constant 0 : i32
    return %arg0, %c0_i32, %c0_i32_0, %c0_i32_1 : i32, i32, i32, i32
  }
  func.func @transform_2(%arg0: i32) -> (i32, i32) {
    %c0_i32 = arith.constant 0 : i32
    %c0_i32_0 = arith.constant 0 : i32
    %c0_i32_1 = arith.constant 0 : i32
    return %c0_i32, %c0_i32_0 : i32, i32
  }
  func.func @transform_3(%arg0: i32) -> (i32, i32) {
    %c0_i32 = arith.constant 0 : i32
    %c0_i32_0 = arith.constant 0 : i32
    %c0_i32_1 = arith.constant 0 : i32
    return %c0_i32, %c0_i32_0 : i32, i32
  }
  func.func @transform_4(%arg0: i32) -> (i32, i32) {
    %c0_i32 = arith.constant 0 : i32
    %c0_i32_0 = arith.constant 0 : i32
    %c0_i32_1 = arith.constant 0 : i32
    return %c0_i32, %c0_i32_0 : i32, i32
  }
  func.func @transform_5(%arg0: i32) -> (i32, i32) {
    %c0_i32 = arith.constant 0 : i32
    %c0_i32_0 = arith.constant 0 : i32
    %c0_i32_1 = arith.constant 0 : i32
    return %c0_i32, %c0_i32_0 : i32, i32
  }
  func.func @transform_6(%arg0: i32) -> (i32, i32, i32, i32) {
    %c0_i32 = arith.constant 0 : i32
    %c0_i32_0 = arith.constant 0 : i32
    %c0_i32_1 = arith.constant 0 : i32
    %c0_i32_2 = arith.constant 0 : i32
    return %arg0, %c0_i32, %c0_i32_0, %c0_i32_1 : i32, i32, i32, i32
  }
}

</mosaic_0001>

<llo_original>
// kernel: bottleneck_forward.3
$region0: #{bottleneck_forward.3}
  #allocation0 [shape = 'u32[]', space=smem, size = 0x4, offset = 0x4, fixed_abs, tag = 'smem constant byte address 0x4 - core index']
  #allocation1 [shape = 'u32[144,128]{1,0:T(1,128)}', space=vmem, size = 0x12000, scoped, tag = 'internal scratch']
  %s0 = inlined_call_operand.vmem [shape: f32[512,4], index: 0, kind: input, shape index: {}]
  %s1 = inlined_call_operand.vmem [shape: bf16[4,128], index: 1, kind: input, shape index: {}]
  %s2 = inlined_call_operand.vmem [shape: f32[1,128], index: 2, kind: input, shape index: {}]
  %s3 = inlined_call_operand.vmem [shape: bf16[512,128], index: 3, kind: output, shape index: {}]
  %s4 = sld [smem:[#allocation0]]
  $region45: #{bottleneck_forward.3} parent=0
    _
  %s6 = ssub.s32 1, %s4
  %s7 = scalar_select 0, %s6, %s4
  loop: start=0, step=1, limit=4
  $region2: #{bottleneck_forward.3} parent=0 // loop_pre_header
    _
  $region3: #{bottleneck_forward.3} parent=0 // loop_header
    %s9 = sphi 0, %s13
    %p10 = scmp.ge.s32.totalorder %s9, 4
    %s19 = sphi 0, %s21
    %s22 = sphi 0, %s19
    %s23 = sphi 0, %s22
    %s39 = sphi 0, %s23
    %s43 = sphi 0, %s43
    %s45 = sphi 0, %s43
    %s46 = sphi 0, %s45
    %s60 = sphi 0, %s46
    %s64 = sphi 0, %s64
    %s66 = sphi 0, %s64
    %s67 = sphi 0, %s66
    %s81 = sphi 0, %s67
    %s87 = sphi 0, %s89
    %s90 = sphi 0, %s87
    %s91 = sphi 0, %s90
    %s107 = sphi 0, %s91
  $region4: #{bottleneck_forward.3} parent=0 // loop_header_branch
    %12 = sbr.rel (%p10) target = $region8
  $region5: #{bottleneck_forward.3} parent=0 // loop_body
    %s14 = ssub.s32 %s9, 1
    %s15 = ssub.s32 %s9, 2
    %s16 = sadd.s32 %s9, 1
    %s17 = ssub.s32 %s9, %s16
    %p18 = scmp.eq.s32.totalorder %s17, 0
    %s20 = sadd.s32 %s19, 1
    %s21 = scalar_select %p18, %s19, %s20
    %p24 = pneg %p18
    %p25 = scmp.eq.s32.totalorder %s9, 1
    %p26 = por %p24, %p25
    %p27 = scmp.ne.s32.totalorder %s19, %s22
    %p28 = scmp.eq.s32.totalorder %s9, 0
    %p29 = por %p27, %p28
    %p30 = scmp.ne.s32.totalorder %s19, %s22
    %p31 = scmp.eq.s32.totalorder %s14, 1
    %p32 = por %p30, %p31
    %p33 = scmp.ne.s32.totalorder %s22, %s23
    %p34 = scmp.eq.s32.totalorder %s14, 0
    %p35 = por %p33, %p34
    %p36 = scmp.ne.s32.totalorder %s22, %s23
    %p37 = scmp.eq.s32.totalorder %s15, 1
    %p38 = por %p36, %p37
    %p40 = scmp.ne.s32.totalorder %s23, %s39
    %p41 = scmp.eq.s32.totalorder %s15, 0
    %p42 = por %p40, %p41
    %s44 = sadd.s32 %s43, 1
    %p47 = scmp.eq.s32.totalorder %s9, 1
    %p48 = scmp.ne.s32.totalorder %s43, %s45
    %p49 = scmp.eq.s32.totalorder %s9, 0
    %p50 = por %p48, %p49
    %p51 = scmp.ne.s32.totalorder %s43, %s45
    %p52 = scmp.eq.s32.totalorder %s14, 1
    %p53 = por %p51, %p52
    %p54 = scmp.ne.s32.totalorder %s45, %s46
    %p55 = scmp.eq.s32.totalorder %s14, 0
    %p56 = por %p54, %p55
    %p57 = scmp.ne.s32.totalorder %s45, %s46
    %p58 = scmp.eq.s32.totalorder %s15, 1
    %p59 = por %p57, %p58
    %p61 = scmp.ne.s32.totalorder %s46, %s60
    %p62 = scmp.eq.s32.totalorder %s15, 0
    %p63 = por %p61, %p62
    %s65 = sadd.s32 %s64, 1
    %p68 = scmp.eq.s32.totalorder %s9, 1
    %p69 = scmp.ne.s32.totalorder %s64, %s66
    %p70 = scmp.eq.s32.totalorder %s9, 0
    %p71 = por %p69, %p70
    %p72 = scmp.ne.s32.totalorder %s64, %s66
    %p73 = scmp.eq.s32.totalorder %s14, 1
    %p74 = por %p72, %p73
    %p75 = scmp.ne.s32.totalorder %s66, %s67
    %p76 = scmp.eq.s32.totalorder %s14, 0
    %p77 = por %p75, %p76
    %p78 = scmp.ne.s32.totalorder %s66, %s67
    %p79 = scmp.eq.s32.totalorder %s15, 1
    %p80 = por %p78, %p79
    %p82 = scmp.ne.s32.totalorder %s67, %s81
    %p83 = scmp.eq.s32.totalorder %s15, 0
    %p84 = por %p82, %p83
    %s85 = ssub.s32 %s9, %s16
    %p86 = scmp.eq.s32.totalorder %s85, 0
    %s88 = sadd.s32 %s87, 1
    %s89 = scalar_select %p86, %s87, %s88
    %p92 = pneg %p86
    %p93 = scmp.eq.s32.totalorder %s9, 1
    %p94 = por %p92, %p93
    %p95 = scmp.ne.s32.totalorder %s87, %s90
    %p96 = scmp.eq.s32.totalorder %s9, 0
    %p97 = por %p95, %p96
    %p98 = scmp.ne.s32.totalorder %s87, %s90
    %p99 = scmp.eq.s32.totalorder %s14, 1
    %p100 = por %p98, %p99
    %p101 = scmp.ne.s32.totalorder %s90, %s91
    %p102 = scmp.eq.s32.totalorder %s14, 0
    %p103 = por %p101, %p102
    %p104 = scmp.ne.s32.totalorder %s90, %s91
    %p105 = scmp.eq.s32.totalorder %s15, 1
    %p106 = por %p104, %p105
    %p108 = scmp.ne.s32.totalorder %s91, %s107
    %p109 = scmp.eq.s32.totalorder %s15, 0
    %p110 = por %p108, %p109
    %p111 = scmp.le.s32.totalorder 1, %s9
    %p112 = scmp.lt.s32.totalorder %s9, 3
    %p113 = pnand %p111, %p112
    %p114 = pneg %p113
    // Predicated region
    $region9: #{bottleneck_forward.3} parent=5 // pred_check
      _
    $region10: #{bottleneck_forward.3} parent=5 // pred_check_branch
      %116 = sbr.rel (%p113) target = $region12
    $region11: #{bottleneck_forward.3} parent=5 // pred_region
      %s117 = ssub.s32 %s9, 1
      // Predicated region
      $region13: #{bottleneck_forward.3} parent=11 // pred_check
        %p118 = pneg %p56
      $region14: #{bottleneck_forward.3} parent=11 // pred_check_branch
        %120 = sbr.rel (%p118) target = $region16
      $region15: #{bottleneck_forward.3} parent=11 // pred_region
        _
      $region16: #{bottleneck_forward.3} parent=11 // pred_fallthru
        _
      // Predicated region
      $region17: #{bottleneck_forward.3} parent=11 // pred_check
        %p121 = pneg %p77
      $region18: #{bottleneck_forward.3} parent=11 // pred_check_branch
        %123 = sbr.rel (%p121) target = $region20
      $region19: #{bottleneck_forward.3} parent=11 // pred_region
        _
      $region20: #{bottleneck_forward.3} parent=11 // pred_fallthru
        _
    $region12: #{bottleneck_forward.3} parent=5 // pred_fallthru
      _
    %p124 = scmp.lt.s32.totalorder %s9, 2
    // Predicated region
    $region21: #{bottleneck_forward.3} parent=5 // pred_check
      %p125 = pneg %p124
    $region22: #{bottleneck_forward.3} parent=5 // pred_check_branch
      %127 = sbr.rel (%p125) target = $region24
    $region23: #{bottleneck_forward.3} parent=5 // pred_region
      // Predicated region
      $region25: #{bottleneck_forward.3} parent=23 // pred_check
        %p128 = pneg %p29
      $region26: #{bottleneck_forward.3} parent=23 // pred_check_branch
        %130 = sbr.rel (%p128) target = $region28
      $region27: #{bottleneck_forward.3} parent=23 // pred_region
        %s131 = smul.u32 32, %s9
        %p132 = scmp.lt.s32.totalorder %s131, 63
        %s133 = scalar_select %p132, %s131, 63
        %s134 = smul.addr %s133, 8
        %s135 = scalar_lea.vmem %s0, %s134
        %s136 = smul.u32 32, %s9
      $region28: #{bottleneck_forward.3} parent=23 // pred_fallthru
        _
    $region24: #{bottleneck_forward.3} parent=5 // pred_fallthru
      _
    %p137 = scmp.le.s32.totalorder 1, %s9
    %p138 = scmp.lt.s32.totalorder %s9, 3
    %p139 = pnand %p137, %p138
    %p140 = pneg %p139
    // Predicated region
    $region29: #{bottleneck_forward.3} parent=5 // pred_check
      _
    $region30: #{bottleneck_forward.3} parent=5 // pred_check_branch
      %142 = sbr.rel (%p139) target = $region32
    $region31: #{bottleneck_forward.3} parent=5 // pred_region
      %s143 = ssub.s32 %s9, 1
      %s144 = smul.u32 32, %s14
      %p145 = scmp.lt.s32.totalorder %s144, 63
      %s146 = scalar_select %p145, %s144, 63
      %s147 = smul.addr %s146, 8
      %s148 = scalar_lea.vmem %s0, %s147
      %p149 = pneg %p35
      %p150 = pneg %p32
      %p151 = pneg %p56
      %p152 = pneg %p53
      %p153 = pneg %p77
      %p154 = pneg %p74
      %p155 = pneg %p103
      %p156 = pneg %p100
      %s157 = smul.u32 32, %s14
      %p158 = scmp.lt.s32.totalorder %s157, 63
      %s159 = scalar_select %p158, %s157, 63
      %s160 = smul.addr %s159, 4
      %s161 = scalar_lea.vmem %s3, %s160
      %s162 = smul.u32 32, %s14
      %p163 = scmp.lt.s32.totalorder %s162, 63
      %s164 = scalar_select %p163, %s162, 63
      %s165 = smul.addr %s164, 8
      %s166 = scalar_lea.vmem %s0, %s165
      %s167 = smul.u32 32, %s14
      %s168 = smul.u32 32, %s14
      %p169 = scmp.lt.s32.totalorder %s168, 63
      %s170 = scalar_select %p169, %s168, 63
      %s171 = smul.addr %s170, 4
      %s172 = scalar_lea.vmem %s3, %s171
      %s173 = smul.u32 32, %s14
      %v175 = vld [vmem:[%s166] sm:$0xff]
      %v176 = vld [vmem:[%s166 + $0x8] sm:$0xff]
      %v177 = vld [vmem:[%s166 + $0x10] sm:$0xff]
      %v178 = vld [vmem:[%s166 + $0x18] sm:$0xff]
      %v179 = vld [vmem:[%s166 + $0x20] sm:$0xff]
      %v180 = vld [vmem:[%s166 + $0x28] sm:$0xff]
      %v181 = vld [vmem:[%s166 + $0x30] sm:$0xff]
      %v182 = vld [vmem:[%s166 + $0x38] sm:$0xff]
      %v183 = vld [vmem:[%s166 + $0x40] sm:$0xff]
      %v184 = vld [vmem:[%s166 + $0x48] sm:$0xff]
      %v185 = vld [vmem:[%s166 + $0x50] sm:$0xff]
      %v186 = vld [vmem:[%s166 + $0x58] sm:$0xff]
      %v187 = vld [vmem:[%s166 + $0x60] sm:$0xff]
      %v188 = vld [vmem:[%s166 + $0x68] sm:$0xff]
      %v189 = vld [vmem:[%s166 + $0x70] sm:$0xff]
      %v190 = vld [vmem:[%s166 + $0x78] sm:$0xff]
      %v191 = vld [vmem:[%s166 + $0x80] sm:$0xff]
      %v192 = vld [vmem:[%s166 + $0x88] sm:$0xff]
      %v193 = vld [vmem:[%s166 + $0x90] sm:$0xff]
      %v194 = vld [vmem:[%s166 + $0x98] sm:$0xff]
      %v195 = vld [vmem:[%s166 + $0xa0] sm:$0xff]
      %v196 = vld [vmem:[%s166 + $0xa8] sm:$0xff]
      %v197 = vld [vmem:[%s166 + $0xb0] sm:$0xff]
      %v198 = vld [vmem:[%s166 + $0xb8] sm:$0xff]
      %v199 = vld [vmem:[%s166 + $0xc0] sm:$0xff]
      %v200 = vld [vmem:[%s166 + $0xc8] sm:$0xff]
      %v201 = vld [vmem:[%s166 + $0xd0] sm:$0xff]
      %v202 = vld [vmem:[%s166 + $0xd8] sm:$0xff]
      %v203 = vld [vmem:[%s166 + $0xe0] sm:$0xff]
      %v204 = vld [vmem:[%s166 + $0xe8] sm:$0xff]
      %v205 = vld [vmem:[%s166 + $0xf0] sm:$0xff]
      %v206 = vld [vmem:[%s166 + $0xf8] sm:$0xff]
      %v207 = vpack.c.bf16 %v176, %v175
      %v208 = vpack.c.bf16 %v178, %v177
      %v209 = vpack.c.bf16 %v180, %v179
      %v210 = vpack.c.bf16 %v182, %v181
      %v211 = vpack.c.bf16 %v184, %v183
      %v212 = vpack.c.bf16 %v186, %v185
      %v213 = vpack.c.bf16 %v188, %v187
      %v214 = vpack.c.bf16 %v190, %v189
      %v215 = vpack.c.bf16 %v192, %v191
      %v216 = vpack.c.bf16 %v194, %v193
      %v217 = vpack.c.bf16 %v196, %v195
      %v218 = vpack.c.bf16 %v198, %v197
      %v219 = vpack.c.bf16 %v200, %v199
      %v220 = vpack.c.bf16 %v202, %v201
      %v221 = vpack.c.bf16 %v204, %v203
      %v222 = vpack.c.bf16 %v206, %v205
      %v223 = vld [vmem:[%s1] sm:$0x3]
      %v224 = vld [vmem:[%s2] sm:$0x1]
      %v226 = vlaneseq
      %v227 = vshrl.u32 %v226, 7
      %v228 = vsub.s32 0, %v227
      %v229 = vrot.slane %v224, %v228
      %vm231 = vcmask 31744
      %v233 = vsel %vm231, %v207, 0
      %v236 = vsel %vm231, %v208, 0
      %v239 = vsel %vm231, %v209, 0
      %v242 = vsel %vm231, %v210, 0
      %v245 = vsel %vm231, %v211, 0
      %v248 = vsel %vm231, %v212, 0
      %v251 = vsel %vm231, %v213, 0
      %v254 = vsel %vm231, %v214, 0
      %v257 = vsel %vm231, %v215, 0
      %v260 = vsel %vm231, %v216, 0
      %v263 = vsel %vm231, %v217, 0
      %v266 = vsel %vm231, %v218, 0
      %v269 = vsel %vm231, %v219, 0
      %v272 = vsel %vm231, %v220, 0
      %v275 = vsel %vm231, %v221, 0
      %v278 = vsel %vm231, %v222, 0
      %vm280 = vcmask 1041408
      %v282 = vsel %vm280, %v223, 0
      %284 = vmatprep.subr.bf16.mxu0 0
      %285 = vmatpush1.bf16.msra.mxu0 0
      %286 = vmatprep.subr.bf16.mxu0 0
      %287 = vmatpush1.bf16.msra.mxu0 0
      %288 = vmatprep.subr.bf16.mxu0 0
      %289 = vmatpush1.bf16.msra.mxu0 0
      %290 = vmatprep.subr.bf16.mxu0 0
      %291 = vmatpush1.bf16.msra.mxu0 0
      %292 = vmatprep.subr.bf16.mxu0 0
      %293 = vmatpush1.bf16.msra.mxu0 0
      %294 = vmatprep.subr.bf16.mxu0 0
      %295 = vmatpush1.bf16.msra.mxu0 0
      %296 = vmatprep.subr.bf16.mxu0 0
      %297 = vmatpush1.bf16.msra.mxu0 0
      %298 = vmatprep.subr.bf16.mxu0 0
      %299 = vmatpush1.bf16.msra.mxu0 %v282
      %300 = vmatprep.subr.bf16.mxu0 0
      %301 = vmatpush2.bf16.msra.mxu0 0
      %302 = vmatprep.subr.bf16.mxu0 0
      %303 = vmatpush2.bf16.msra.mxu0 0
      %304 = vmatprep.subr.bf16.mxu0 0
      %305 = vmatpush2.bf16.msra.mxu0 0
      %306 = vmatprep.subr.bf16.mxu0 0
      %307 = vmatpush2.bf16.msra.mxu0 0
      %308 = vmatprep.subr.bf16.mxu0 0
      %309 = vmatpush2.bf16.msra.mxu0 0
      %310 = vmatprep.subr.bf16.mxu0 0
      %311 = vmatpush2.bf16.msra.mxu0 0
      %312 = vmatprep.subr.bf16.mxu0 0
      %313 = vmatpush2.bf16.msra.mxu0 0
      %314 = vmatprep.subr.bf16.mxu0 0
      %315 = vmatpush2.bf16.msra.mxu0 0
      %316 = vmatprep.mubr.bf16.mxu0 0
      %317 = vmatmul.mubr.bf16.gmra.mxu0 %v233
      %v318 = vpop.f32.mrf.mxu0
      %v319 = vadd.f32 %v229, %v318
      %v320 = vpop.f32.mrf.mxu0
      %v321 = vpop.f32.mrf.mxu0
      %v322 = vadd.f32 %v229, %v321
      %v323 = vpop.f32.mrf.mxu0
      %324 = vmatprep.mubr.bf16.mxu0 0
      %325 = vmatmul.mubr.bf16.gmra.mxu0 %v236
      %v326 = vpop.f32.mrf.mxu0
      %v327 = vadd.f32 %v229, %v326
      %v328 = vpop.f32.mrf.mxu0
      %v329 = vpop.f32.mrf.mxu0
      %v330 = vadd.f32 %v229, %v329
      %v331 = vpop.f32.mrf.mxu0
      %332 = vmatprep.mubr.bf16.mxu0 0
      %333 = vmatmul.mubr.bf16.gmra.mxu0 %v239
      %v334 = vpop.f32.mrf.mxu0
      %v335 = vadd.f32 %v229, %v334
      %v336 = vpop.f32.mrf.mxu0
      %v337 = vpop.f32.mrf.mxu0
      %v338 = vadd.f32 %v229, %v337
      %v339 = vpop.f32.mrf.mxu0
      %340 = vmatprep.mubr.bf16.mxu0 0
      %341 = vmatmul.mubr.bf16.gmra.mxu0 %v242
      %v342 = vpop.f32.mrf.mxu0
      %v343 = vadd.f32 %v229, %v342
      %v344 = vpop.f32.mrf.mxu0
      %v345 = vpop.f32.mrf.mxu0
      %v346 = vadd.f32 %v229, %v345
      %v347 = vpop.f32.mrf.mxu0
      %348 = vmatprep.mubr.bf16.mxu0 0
      %349 = vmatmul.mubr.bf16.gmra.mxu0 %v245
      %v350 = vpop.f32.mrf.mxu0
      %v351 = vadd.f32 %v229, %v350
      %v352 = vpop.f32.mrf.mxu0
      %v353 = vpop.f32.mrf.mxu0
      %v354 = vadd.f32 %v229, %v353
      %v355 = vpop.f32.mrf.mxu0
      %356 = vmatprep.mubr.bf16.mxu0 0
      %357 = vmatmul.mubr.bf16.gmra.mxu0 %v248
      %v358 = vpop.f32.mrf.mxu0
      %v359 = vadd.f32 %v229, %v358
      %v360 = vpop.f32.mrf.mxu0
      %v361 = vpop.f32.mrf.mxu0
      %v362 = vadd.f32 %v229, %v361
      %v363 = vpop.f32.mrf.mxu0
      %364 = vmatprep.mubr.bf16.mxu0 0
      %365 = vmatmul.mubr.bf16.gmra.mxu0 %v251
      %v366 = vpop.f32.mrf.mxu0
      %v367 = vadd.f32 %v229, %v366
      %v368 = vpop.f32.mrf.mxu0
      %v369 = vpop.f32.mrf.mxu0
      %v370 = vadd.f32 %v229, %v369
      %v371 = vpop.f32.mrf.mxu0
      %372 = vmatprep.mubr.bf16.mxu0 0
      %373 = vmatmul.mubr.bf16.gmra.mxu0 %v254
      %v374 = vpop.f32.mrf.mxu0
      %v375 = vadd.f32 %v229, %v374
      %v376 = vpop.f32.mrf.mxu0
      %v377 = vpop.f32.mrf.mxu0
      %v378 = vadd.f32 %v229, %v377
      %v379 = vpop.f32.mrf.mxu0
      %380 = vmatprep.mubr.bf16.mxu0 0
      %381 = vmatmul.mubr.bf16.gmra.mxu0 %v257
      %v382 = vpop.f32.mrf.mxu0
      %v383 = vadd.f32 %v229, %v382
      %v384 = vpop.f32.mrf.mxu0
      %v385 = vpop.f32.mrf.mxu0
      %v386 = vadd.f32 %v229, %v385
      %v387 = vpop.f32.mrf.mxu0
      %388 = vmatprep.mubr.bf16.mxu0 0
      %389 = vmatmul.mubr.bf16.gmra.mxu0 %v260
      %v390 = vpop.f32.mrf.mxu0
      %v391 = vadd.f32 %v229, %v390
      %v392 = vpop.f32.mrf.mxu0
      %v393 = vpop.f32.mrf.mxu0
      %v394 = vadd.f32 %v229, %v393
      %v395 = vpop.f32.mrf.mxu0
      %396 = vmatprep.mubr.bf16.mxu0 0
      %397 = vmatmul.mubr.bf16.gmra.mxu0 %v263
      %v398 = vpop.f32.mrf.mxu0
      %v399 = vadd.f32 %v229, %v398
      %v400 = vpop.f32.mrf.mxu0
      %v401 = vpop.f32.mrf.mxu0
      %v402 = vadd.f32 %v229, %v401
      %v403 = vpop.f32.mrf.mxu0
      %404 = vmatprep.mubr.bf16.mxu0 0
      %405 = vmatmul.mubr.bf16.gmra.mxu0 %v266
      %v406 = vpop.f32.mrf.mxu0
      %v407 = vadd.f32 %v229, %v406
      %v408 = vpop.f32.mrf.mxu0
      %v409 = vpop.f32.mrf.mxu0
      %v410 = vadd.f32 %v229, %v409
      %v411 = vpop.f32.mrf.mxu0
      %412 = vmatprep.mubr.bf16.mxu0 0
      %413 = vmatmul.mubr.bf16.gmra.mxu0 %v269
      %v414 = vpop.f32.mrf.mxu0
      %v415 = vadd.f32 %v229, %v414
      %v416 = vpop.f32.mrf.mxu0
      %v417 = vpop.f32.mrf.mxu0
      %v418 = vadd.f32 %v229, %v417
      %v419 = vpop.f32.mrf.mxu0
      %420 = vmatprep.mubr.bf16.mxu0 0
      %421 = vmatmul.mubr.bf16.gmra.mxu0 %v272
      %v422 = vpop.f32.mrf.mxu0
      %v423 = vadd.f32 %v229, %v422
      %v424 = vpop.f32.mrf.mxu0
      %v425 = vpop.f32.mrf.mxu0
      %v426 = vadd.f32 %v229, %v425
      %v427 = vpop.f32.mrf.mxu0
      %428 = vmatprep.mubr.bf16.mxu0 0
      %429 = vmatmul.mubr.bf16.gmra.mxu0 %v275
      %v430 = vpop.f32.mrf.mxu0
      %v431 = vadd.f32 %v229, %v430
      %v432 = vpop.f32.mrf.mxu0
      %v433 = vpop.f32.mrf.mxu0
      %v434 = vadd.f32 %v229, %v433
      %v435 = vpop.f32.mrf.mxu0
      %436 = vmatprep.mubr.bf16.mxu0 0
      %437 = vmatmul.mubr.bf16.gmra.mxu0 %v278
      %v438 = vpop.f32.mrf.mxu0
      %v439 = vadd.f32 %v229, %v438
      %v440 = vpop.f32.mrf.mxu0
      %v441 = vpop.f32.mrf.mxu0
      %v442 = vadd.f32 %v229, %v441
      %v443 = vpop.f32.mrf.mxu0
      %444 = vdwg.mxu0
      %v445 = vmax.f32 %v319, 0.0
      %v446 = vmax.f32 %v322, 0.0
      %v447 = vmax.f32 %v327, 0.0
      %v448 = vmax.f32 %v330, 0.0
      %v449 = vmax.f32 %v335, 0.0
      %v450 = vmax.f32 %v338, 0.0
      %v451 = vmax.f32 %v343, 0.0
      %v452 = vmax.f32 %v346, 0.0
      %v453 = vmax.f32 %v351, 0.0
      %v454 = vmax.f32 %v354, 0.0
      %v455 = vmax.f32 %v359, 0.0
      %v456 = vmax.f32 %v362, 0.0
      %v457 = vmax.f32 %v367, 0.0
      %v458 = vmax.f32 %v370, 0.0
      %v459 = vmax.f32 %v375, 0.0
      %v460 = vmax.f32 %v378, 0.0
      %v461 = vmax.f32 %v383, 0.0
      %v462 = vmax.f32 %v386, 0.0
      %v463 = vmax.f32 %v391, 0.0
      %v464 = vmax.f32 %v394, 0.0
      %v465 = vmax.f32 %v399, 0.0
      %v466 = vmax.f32 %v402, 0.0
      %v467 = vmax.f32 %v407, 0.0
      %v468 = vmax.f32 %v410, 0.0
      %v469 = vmax.f32 %v415, 0.0
      %v470 = vmax.f32 %v418, 0.0
      %v471 = vmax.f32 %v423, 0.0
      %v472 = vmax.f32 %v426, 0.0
      %v473 = vmax.f32 %v431, 0.0
      %v474 = vmax.f32 %v434, 0.0
      %v475 = vmax.f32 %v439, 0.0
      %v476 = vmax.f32 %v442, 0.0
      %v477 = vpack.c.bf16 %v446, %v445
      %v478 = vpack.c.bf16 %v448, %v447
      %v479 = vpack.c.bf16 %v450, %v449
      %v480 = vpack.c.bf16 %v452, %v451
      %v481 = vpack.c.bf16 %v454, %v453
      %v482 = vpack.c.bf16 %v456, %v455
      %v483 = vpack.c.bf16 %v458, %v457
      %v484 = vpack.c.bf16 %v460, %v459
      %v485 = vpack.c.bf16 %v462, %v461
      %v486 = vpack.c.bf16 %v464, %v463
      %v487 = vpack.c.bf16 %v466, %v465
      %v488 = vpack.c.bf16 %v468, %v467
      %v489 = vpack.c.bf16 %v470, %v469
      %v490 = vpack.c.bf16 %v472, %v471
      %v491 = vpack.c.bf16 %v474, %v473
      %v492 = vpack.c.bf16 %v476, %v475
      %v509 = vunpack.c.l.b16 %v477
      %v510 = vunpack.c.h.b16 %v477
      %v511 = vunpack.c.l.b16 %v478
      %v512 = vunpack.c.h.b16 %v478
      %v513 = vunpack.c.l.b16 %v479
      %v514 = vunpack.c.h.b16 %v479
      %v515 = vunpack.c.l.b16 %v480
      %v516 = vunpack.c.h.b16 %v480
      %v517 = vunpack.c.l.b16 %v481
      %v518 = vunpack.c.h.b16 %v481
      %v519 = vunpack.c.l.b16 %v482
      %v520 = vunpack.c.h.b16 %v482
      %v521 = vunpack.c.l.b16 %v483
      %v522 = vunpack.c.h.b16 %v483
      %v523 = vunpack.c.l.b16 %v484
      %v524 = vunpack.c.h.b16 %v484
      %v525 = vunpack.c.l.b16 %v485
      %v526 = vunpack.c.h.b16 %v485
      %v527 = vunpack.c.l.b16 %v486
      %v528 = vunpack.c.h.b16 %v486
      %v529 = vunpack.c.l.b16 %v487
      %v530 = vunpack.c.h.b16 %v487
      %v531 = vunpack.c.l.b16 %v488
      %v532 = vunpack.c.h.b16 %v488
      %v533 = vunpack.c.l.b16 %v489
      %v534 = vunpack.c.h.b16 %v489
      %v535 = vunpack.c.l.b16 %v490
      %v536 = vunpack.c.h.b16 %v490
      %v537 = vunpack.c.l.b16 %v491
      %v538 = vunpack.c.h.b16 %v491
      %v539 = vunpack.c.l.b16 %v492
      %v540 = vunpack.c.h.b16 %v492
      %v541 = vpack.c.b16 %v509, %v509
      %v542 = vpack.c.b16 %v510, %v510
      %v543 = vpack.c.b16 %v511, %v511
      %v544 = vpack.c.b16 %v512, %v512
      %v545 = vpack.c.b16 %v513, %v513
      %v546 = vpack.c.b16 %v514, %v514
      %v547 = vpack.c.b16 %v515, %v515
      %v548 = vpack.c.b16 %v516, %v516
      %v549 = vpack.c.b16 %v517, %v517
      %v550 = vpack.c.b16 %v518, %v518
      %v551 = vpack.c.b16 %v519, %v519
      %v552 = vpack.c.b16 %v520, %v520
      %v553 = vpack.c.b16 %v521, %v521
      %v554 = vpack.c.b16 %v522, %v522
      %v555 = vpack.c.b16 %v523, %v523
      %v556 = vpack.c.b16 %v524, %v524
      %v557 = vpack.c.b16 %v525, %v525
      %v558 = vpack.c.b16 %v526, %v526
      %v559 = vpack.c.b16 %v527, %v527
      %v560 = vpack.c.b16 %v528, %v528
      %v561 = vpack.c.b16 %v529, %v529
      %v562 = vpack.c.b16 %v530, %v530
      %v563 = vpack.c.b16 %v531, %v531
      %v564 = vpack.c.b16 %v532, %v532
      %v565 = vpack.c.b16 %v533, %v533
      %v566 = vpack.c.b16 %v534, %v534
      %v567 = vpack.c.b16 %v535, %v535
      %v568 = vpack.c.b16 %v536, %v536
      %v569 = vpack.c.b16 %v537, %v537
      %v570 = vpack.c.b16 %v538, %v538
      %v571 = vpack.c.b16 %v539, %v539
      %v572 = vpack.c.b16 %v540, %v540
      %605 = vst [vmem:[%s172] sm:$0xf] %v541
      %606 = vst [vmem:[%s172 + $0x4] sm:$0xf] %v542
      %607 = vst [vmem:[%s172 + $0x8] sm:$0xf] %v543
      %608 = vst [vmem:[%s172 + $0xc] sm:$0xf] %v544
      %609 = vst [vmem:[%s172 + $0x10] sm:$0xf] %v545
      %610 = vst [vmem:[%s172 + $0x14] sm:$0xf] %v546
      %611 = vst [vmem:[%s172 + $0x18] sm:$0xf] %v547
      %612 = vst [vmem:[%s172 + $0x1c] sm:$0xf] %v548
      %613 = vst [vmem:[%s172 + $0x20] sm:$0xf] %v549
      %614 = vst [vmem:[%s172 + $0x24] sm:$0xf] %v550
      %615 = vst [vmem:[%s172 + $0x28] sm:$0xf] %v551
      %616 = vst [vmem:[%s172 + $0x2c] sm:$0xf] %v552
      %617 = vst [vmem:[%s172 + $0x30] sm:$0xf] %v553
      %618 = vst [vmem:[%s172 + $0x34] sm:$0xf] %v554
      %619 = vst [vmem:[%s172 + $0x38] sm:$0xf] %v555
      %620 = vst [vmem:[%s172 + $0x3c] sm:$0xf] %v556
      %621 = vst [vmem:[%s172 + $0x40] sm:$0xf] %v557
      %622 = vst [vmem:[%s172 + $0x44] sm:$0xf] %v558
      %623 = vst [vmem:[%s172 + $0x48] sm:$0xf] %v559
      %624 = vst [vmem:[%s172 + $0x4c] sm:$0xf] %v560
      %625 = vst [vmem:[%s172 + $0x50] sm:$0xf] %v561
      %626 = vst [vmem:[%s172 + $0x54] sm:$0xf] %v562
      %627 = vst [vmem:[%s172 + $0x58] sm:$0xf] %v563
      %628 = vst [vmem:[%s172 + $0x5c] sm:$0xf] %v564
      %629 = vst [vmem:[%s172 + $0x60] sm:$0xf] %v565
      %630 = vst [vmem:[%s172 + $0x64] sm:$0xf] %v566
      %631 = vst [vmem:[%s172 + $0x68] sm:$0xf] %v567
      %632 = vst [vmem:[%s172 + $0x6c] sm:$0xf] %v568
      %633 = vst [vmem:[%s172 + $0x70] sm:$0xf] %v569
      %634 = vst [vmem:[%s172 + $0x74] sm:$0xf] %v570
      %635 = vst [vmem:[%s172 + $0x78] sm:$0xf] %v571
      %636 = vst [vmem:[%s172 + $0x7c] sm:$0xf] %v572
      %s637 = smul.u32 32, %s14
      %p638 = scmp.lt.s32.totalorder %s637, 63
      %s639 = scalar_select %p638, %s637, 63
      %s640 = smul.addr %s639, 4
      %s641 = scalar_lea.vmem %s3, %s640
      // Predicated region
      $region33: #{bottleneck_forward.3} parent=31 // pred_check
        %p642 = pneg %p100
      $region34: #{bottleneck_forward.3} parent=31 // pred_check_branch
        %644 = sbr.rel (%p642) target = $region36
      $region35: #{bottleneck_forward.3} parent=31 // pred_region
        %s645 = smul.u32 32, %s14
      $region36: #{bottleneck_forward.3} parent=31 // pred_fallthru
        _
    $region32: #{bottleneck_forward.3} parent=5 // pred_fallthru
      _
    %p646 = scmp.le.s32.totalorder 2, %s9
    // Predicated region
    $region37: #{bottleneck_forward.3} parent=5 // pred_check
      %p647 = pneg %p646
    $region38: #{bottleneck_forward.3} parent=5 // pred_check_branch
      %649 = sbr.rel (%p647) target = $region40
    $region39: #{bottleneck_forward.3} parent=5 // pred_region
      %s650 = ssub.s32 %s9, 2
      // Predicated region
      $region41: #{bottleneck_forward.3} parent=39 // pred_check
        %p651 = pneg %p106
      $region42: #{bottleneck_forward.3} parent=39 // pred_check_branch
        %653 = sbr.rel (%p651) target = $region44
      $region43: #{bottleneck_forward.3} parent=39 // pred_region
        %s654 = smul.u32 32, %s15
        %p655 = scmp.lt.s32.totalorder %s654, 63
        %s656 = scalar_select %p655, %s654, 63
        %s657 = smul.addr %s656, 4
        %s658 = scalar_lea.vmem %s3, %s657
      $region44: #{bottleneck_forward.3} parent=39 // pred_fallthru
        _
    $region40: #{bottleneck_forward.3} parent=5 // pred_fallthru
      _
  $region6: #{bottleneck_forward.3} parent=0 // loop_footer
    %s13 = sadd.s32 1, %s9
  $region7: #{bottleneck_forward.3} parent=0 // loop_footer_branch
    %8 = sbr.rel target = $region3
  $region8: #{bottleneck_forward.3} parent=0 // loop_exit
    _

// kernel: bottleneck_forward.5
$region0: #{bottleneck_forward.5}
  #allocation0 [shape = 'u32[]', space=smem, size = 0x4, offset = 0x4, fixed_abs, tag = 'smem constant byte address 0x4 - core index']
  #allocation1 [shape = 'u32[144,128]{1,0:T(1,128)}', space=vmem, size = 0x12000, scoped, tag = 'internal scratch']
  %s0 = inlined_call_operand.vmem [shape: bf16[2,16,16,128], index: 0, kind: input, shape index: {}]
  %s1 = inlined_call_operand.vmem [shape: f32[2,16,16,4], index: 1, kind: input, shape index: {}]
  %s2 = inlined_call_operand.vmem [shape: bf16[128,16], index: 2, kind: input, shape index: {}]
  %s3 = inlined_call_operand.vmem [shape: bf16[4,16], index: 3, kind: input, shape index: {}]
  %s4 = inlined_call_operand.vmem [shape: f32[1,16], index: 4, kind: input, shape index: {}]
  %s5 = inlined_call_operand.vmem [shape: f32[1,16], index: 5, kind: input, shape index: {}]
  %s6 = inlined_call_operand.vmem [shape: bf16[2,16,16,16], index: 6, kind: output, shape index: {}]
  %s7 = sld [smem:[#allocation0]]
  $region57: #{bottleneck_forward.5} parent=0
    _
  %s9 = ssub.s32 1, %s7
  %s10 = scalar_select 0, %s9, %s7
  loop: start=0, step=1, limit=4
  $region2: #{bottleneck_forward.5} parent=0 // loop_pre_header
    _
  $region3: #{bottleneck_forward.5} parent=0 // loop_header
    %s12 = sphi 0, %s16
    %p13 = scmp.ge.s32.totalorder %s12, 4
    %s22 = sphi 0, %s24
    %s25 = sphi 0, %s22
    %s26 = sphi 0, %s25
    %s42 = sphi 0, %s26
    %s48 = sphi 0, %s50
    %s51 = sphi 0, %s48
    %s52 = sphi 0, %s51
    %s68 = sphi 0, %s52
    %s72 = sphi 0, %s72
    %s74 = sphi 0, %s72
    %s75 = sphi 0, %s74
    %s89 = sphi 0, %s75
    %s93 = sphi 0, %s93
    %s95 = sphi 0, %s93
    %s96 = sphi 0, %s95
    %s110 = sphi 0, %s96
    %s114 = sphi 0, %s114
    %s116 = sphi 0, %s114
    %s117 = sphi 0, %s116
    %s131 = sphi 0, %s117
    %s135 = sphi 0, %s135
    %s137 = sphi 0, %s135
    %s138 = sphi 0, %s137
    %s152 = sphi 0, %s138
    %s158 = sphi 0, %s160
    %s161 = sphi 0, %s158
    %s162 = sphi 0, %s161
    %s178 = sphi 0, %s162
  $region4: #{bottleneck_forward.5} parent=0 // loop_header_branch
    %15 = sbr.rel (%p13) target = $region8
  $region5: #{bottleneck_forward.5} parent=0 // loop_body
    %s17 = ssub.s32 %s12, 1
    %s18 = ssub.s32 %s12, 2
    %s19 = sadd.s32 %s12, 1
    %s20 = ssub.s32 %s12, %s19
    %p21 = scmp.eq.s32.totalorder %s20, 0
    %s23 = sadd.s32 %s22, 1
    %s24 = scalar_select %p21, %s22, %s23
    %p27 = pneg %p21
    %p28 = scmp.eq.s32.totalorder %s12, 1
    %p29 = por %p27, %p28
    %p30 = scmp.ne.s32.totalorder %s22, %s25
    %p31 = scmp.eq.s32.totalorder %s12, 0
    %p32 = por %p30, %p31
    %p33 = scmp.ne.s32.totalorder %s22, %s25
    %p34 = scmp.eq.s32.totalorder %s17, 1
    %p35 = por %p33, %p34
    %p36 = scmp.ne.s32.totalorder %s25, %s26
    %p37 = scmp.eq.s32.totalorder %s17, 0
    %p38 = por %p36, %p37
    %p39 = scmp.ne.s32.totalorder %s25, %s26
    %p40 = scmp.eq.s32.totalorder %s18, 1
    %p41 = por %p39, %p40
    %p43 = scmp.ne.s32.totalorder %s26, %s42
    %p44 = scmp.eq.s32.totalorder %s18, 0
    %p45 = por %p43, %p44
    %s46 = ssub.s32 %s12, %s19
    %p47 = scmp.eq.s32.totalorder %s46, 0
    %s49 = sadd.s32 %s48, 1
    %s50 = scalar_select %p47, %s48, %s49
    %p53 = pneg %p47
    %p54 = scmp.eq.s32.totalorder %s12, 1
    %p55 = por %p53, %p54
    %p56 = scmp.ne.s32.totalorder %s48, %s51
    %p57 = scmp.eq.s32.totalorder %s12, 0
    %p58 = por %p56, %p57
    %p59 = scmp.ne.s32.totalorder %s48, %s51
    %p60 = scmp.eq.s32.totalorder %s17, 1
    %p61 = por %p59, %p60
    %p62 = scmp.ne.s32.totalorder %s51, %s52
    %p63 = scmp.eq.s32.totalorder %s17, 0
    %p64 = por %p62, %p63
    %p65 = scmp.ne.s32.totalorder %s51, %s52
    %p66 = scmp.eq.s32.totalorder %s18, 1
    %p67 = por %p65, %p66
    %p69 = scmp.ne.s32.totalorder %s52, %s68
    %p70 = scmp.eq.s32.totalorder %s18, 0
    %p71 = por %p69, %p70
    %s73 = sadd.s32 %s72, 1
    %p76 = scmp.eq.s32.totalorder %s12, 1
    %p77 = scmp.ne.s32.totalorder %s72, %s74
    %p78 = scmp.eq.s32.totalorder %s12, 0
    %p79 = por %p77, %p78
    %p80 = scmp.ne.s32.totalorder %s72, %s74
    %p81 = scmp.eq.s32.totalorder %s17, 1
    %p82 = por %p80, %p81
    %p83 = scmp.ne.s32.totalorder %s74, %s75
    %p84 = scmp.eq.s32.totalorder %s17, 0
    %p85 = por %p83, %p84
    %p86 = scmp.ne.s32.totalorder %s74, %s75
    %p87 = scmp.eq.s32.totalorder %s18, 1
    %p88 = por %p86, %p87
    %p90 = scmp.ne.s32.totalorder %s75, %s89
    %p91 = scmp.eq.s32.totalorder %s18, 0
    %p92 = por %p90, %p91
    %s94 = sadd.s32 %s93, 1
    %p97 = scmp.eq.s32.totalorder %s12, 1
    %p98 = scmp.ne.s32.totalorder %s93, %s95
    %p99 = scmp.eq.s32.totalorder %s12, 0
    %p100 = por %p98, %p99
    %p101 = scmp.ne.s32.totalorder %s93, %s95
    %p102 = scmp.eq.s32.totalorder %s17, 1
    %p103 = por %p101, %p102
    %p104 = scmp.ne.s32.totalorder %s95, %s96
    %p105 = scmp.eq.s32.totalorder %s17, 0
    %p106 = por %p104, %p105
    %p107 = scmp.ne.s32.totalorder %s95, %s96
    %p108 = scmp.eq.s32.totalorder %s18, 1
    %p109 = por %p107, %p108
    %p111 = scmp.ne.s32.totalorder %s96, %s110
    %p112 = scmp.eq.s32.totalorder %s18, 0
    %p113 = por %p111, %p112
    %s115 = sadd.s32 %s114, 1
    %p118 = scmp.eq.s32.totalorder %s12, 1
    %p119 = scmp.ne.s32.totalorder %s114, %s116
    %p120 = scmp.eq.s32.totalorder %s12, 0
    %p121 = por %p119, %p120
    %p122 = scmp.ne.s32.totalorder %s114, %s116
    %p123 = scmp.eq.s32.totalorder %s17, 1
    %p124 = por %p122, %p123
    %p125 = scmp.ne.s32.totalorder %s116, %s117
    %p126 = scmp.eq.s32.totalorder %s17, 0
    %p127 = por %p125, %p126
    %p128 = scmp.ne.s32.totalorder %s116, %s117
    %p129 = scmp.eq.s32.totalorder %s18, 1
    %p130 = por %p128, %p129
    %p132 = scmp.ne.s32.totalorder %s117, %s131
    %p133 = scmp.eq.s32.totalorder %s18, 0
    %p134 = por %p132, %p133
    %s136 = sadd.s32 %s135, 1
    %p139 = scmp.eq.s32.totalorder %s12, 1
    %p140 = scmp.ne.s32.totalorder %s135, %s137
    %p141 = scmp.eq.s32.totalorder %s12, 0
    %p142 = por %p140, %p141
    %p143 = scmp.ne.s32.totalorder %s135, %s137
    %p144 = scmp.eq.s32.totalorder %s17, 1
    %p145 = por %p143, %p144
    %p146 = scmp.ne.s32.totalorder %s137, %s138
    %p147 = scmp.eq.s32.totalorder %s17, 0
    %p148 = por %p146, %p147
    %p149 = scmp.ne.s32.totalorder %s137, %s138
    %p150 = scmp.eq.s32.totalorder %s18, 1
    %p151 = por %p149, %p150
    %p153 = scmp.ne.s32.totalorder %s138, %s152
    %p154 = scmp.eq.s32.totalorder %s18, 0
    %p155 = por %p153, %p154
    %s156 = ssub.s32 %s12, %s19
    %p157 = scmp.eq.s32.totalorder %s156, 0
    %s159 = sadd.s32 %s158, 1
    %s160 = scalar_select %p157, %s158, %s159
    %p163 = pneg %p157
    %p164 = scmp.eq.s32.totalorder %s12, 1
    %p165 = por %p163, %p164
    %p166 = scmp.ne.s32.totalorder %s158, %s161
    %p167 = scmp.eq.s32.totalorder %s12, 0
    %p168 = por %p166, %p167
    %p169 = scmp.ne.s32.totalorder %s158, %s161
    %p170 = scmp.eq.s32.totalorder %s17, 1
    %p171 = por %p169, %p170
    %p172 = scmp.ne.s32.totalorder %s161, %s162
    %p173 = scmp.eq.s32.totalorder %s17, 0
    %p174 = por %p172, %p173
    %p175 = scmp.ne.s32.totalorder %s161, %s162
    %p176 = scmp.eq.s32.totalorder %s18, 1
    %p177 = por %p175, %p176
    %p179 = scmp.ne.s32.totalorder %s162, %s178
    %p180 = scmp.eq.s32.totalorder %s18, 0
    %p181 = por %p179, %p180
    %p182 = scmp.le.s32.totalorder 1, %s12
    %p183 = scmp.lt.s32.totalorder %s12, 3
    %p184 = pnand %p182, %p183
    %p185 = pneg %p184
    // Predicated region
    $region9: #{bottleneck_forward.5} parent=5 // pred_check
      _
    $region10: #{bottleneck_forward.5} parent=5 // pred_check_branch
      %187 = sbr.rel (%p184) target = $region12
    $region11: #{bottleneck_forward.5} parent=5 // pred_region
      %s188 = ssub.s32 %s12, 1
      // Predicated region
      $region13: #{bottleneck_forward.5} parent=11 // pred_check
        %p189 = pneg %p85
      $region14: #{bottleneck_forward.5} parent=11 // pred_check_branch
        %191 = sbr.rel (%p189) target = $region16
      $region15: #{bottleneck_forward.5} parent=11 // pred_region
        _
      $region16: #{bottleneck_forward.5} parent=11 // pred_fallthru
        _
      // Predicated region
      $region17: #{bottleneck_forward.5} parent=11 // pred_check
        %p192 = pneg %p106
      $region18: #{bottleneck_forward.5} parent=11 // pred_check_branch
        %194 = sbr.rel (%p192) target = $region20
      $region19: #{bottleneck_forward.5} parent=11 // pred_region
        _
      $region20: #{bottleneck_forward.5} parent=11 // pred_fallthru
        _
      // Predicated region
      $region21: #{bottleneck_forward.5} parent=11 // pred_check
        %p195 = pneg %p127
      $region22: #{bottleneck_forward.5} parent=11 // pred_check_branch
        %197 = sbr.rel (%p195) target = $region24
      $region23: #{bottleneck_forward.5} parent=11 // pred_region
        _
      $region24: #{bottleneck_forward.5} parent=11 // pred_fallthru
        _
      // Predicated region
      $region25: #{bottleneck_forward.5} parent=11 // pred_check
        %p198 = pneg %p148
      $region26: #{bottleneck_forward.5} parent=11 // pred_check_branch
        %200 = sbr.rel (%p198) target = $region28
      $region27: #{bottleneck_forward.5} parent=11 // pred_region
        _
      $region28: #{bottleneck_forward.5} parent=11 // pred_fallthru
        _
    $region12: #{bottleneck_forward.5} parent=5 // pred_fallthru
      _
    %p201 = scmp.lt.s32.totalorder %s12, 2
    // Predicated region
    $region29: #{bottleneck_forward.5} parent=5 // pred_check
      %p202 = pneg %p201
    $region30: #{bottleneck_forward.5} parent=5 // pred_check_branch
      %204 = sbr.rel (%p202) target = $region32
    $region31: #{bottleneck_forward.5} parent=5 // pred_region
      // Predicated region
      $region33: #{bottleneck_forward.5} parent=31 // pred_check
        %p205 = pneg %p32
      $region34: #{bottleneck_forward.5} parent=31 // pred_check_branch
        %207 = sbr.rel (%p205) target = $region36
      $region35: #{bottleneck_forward.5} parent=31 // pred_region
        %p208 = scmp.lt.s32.totalorder %s12, 1
        %s209 = scalar_select %p208, %s12, 1
        %s210 = smul.addr %s209, 32
        %s211 = smul.addr %s210, 4
        %s212 = scalar_lea.vmem %s0, %s211
      $region36: #{bottleneck_forward.5} parent=31 // pred_fallthru
        _
      // Predicated region
      $region37: #{bottleneck_forward.5} parent=31 // pred_check
        %p213 = pneg %p58
      $region38: #{bottleneck_forward.5} parent=31 // pred_check_branch
        %215 = sbr.rel (%p213) target = $region40
      $region39: #{bottleneck_forward.5} parent=31 // pred_region
        %p216 = scmp.lt.s32.totalorder %s12, 1
        %s217 = scalar_select %p216, %s12, 1
        %s218 = smul.addr %s217, 32
        %s219 = smul.addr %s218, 8
        %s220 = scalar_lea.vmem %s1, %s219
      $region40: #{bottleneck_forward.5} parent=31 // pred_fallthru
        _
    $region32: #{bottleneck_forward.5} parent=5 // pred_fallthru
      _
    %p221 = scmp.le.s32.totalorder 1, %s12
    %p222 = scmp.lt.s32.totalorder %s12, 3
    %p223 = pnand %p221, %p222
    %p224 = pneg %p223
    // Predicated region
    $region41: #{bottleneck_forward.5} parent=5 // pred_check
      _
    $region42: #{bottleneck_forward.5} parent=5 // pred_check_branch
      %226 = sbr.rel (%p223) target = $region44
    $region43: #{bottleneck_forward.5} parent=5 // pred_region
      %s227 = ssub.s32 %s12, 1
      %p228 = scmp.lt.s32.totalorder %s17, 1
      %s229 = scalar_select %p228, %s17, 1
      %s230 = smul.addr %s229, 32
      %s231 = smul.addr %s230, 4
      %s232 = scalar_lea.vmem %s0, %s231
      %p233 = pneg %p38
      %p234 = pneg %p35
      %p235 = scmp.lt.s32.totalorder %s17, 1
      %s236 = scalar_select %p235, %s17, 1
      %s237 = smul.addr %s236, 32
      %s238 = smul.addr %s237, 8
      %s239 = scalar_lea.vmem %s1, %s238
      %p240 = pneg %p64
      %p241 = pneg %p61
      %p242 = pneg %p85
      %p243 = pneg %p82
      %p244 = pneg %p106
      %p245 = pneg %p103
      %p246 = pneg %p127
      %p247 = pneg %p124
      %p248 = pneg %p148
      %p249 = pneg %p145
      %p250 = pneg %p174
      %p251 = pneg %p171
      %p252 = scmp.lt.s32.totalorder %s17, 1
      %s253 = scalar_select %p252, %s17, 1
      %s254 = smul.addr %s253, 32
      %s255 = smul.addr %s254, 4
      %s256 = scalar_lea.vmem %s6, %s255
      %p257 = scmp.lt.s32.totalorder %s17, 1
      %s258 = scalar_select %p257, %s17, 1
      %s259 = smul.addr %s258, 32
      %s260 = smul.addr %s259, 4
      %s261 = scalar_lea.vmem %s0, %s260
      %p262 = scmp.lt.s32.totalorder %s17, 1
      %s263 = scalar_select %p262, %s17, 1
      %s264 = smul.addr %s263, 32
      %s265 = smul.addr %s264, 8
      %s266 = scalar_lea.vmem %s1, %s265
      %p267 = scmp.lt.s32.totalorder %s17, 1
      %s268 = scalar_select %p267, %s17, 1
      %s269 = smul.addr %s268, 32
      %s270 = smul.addr %s269, 4
      %s271 = scalar_lea.vmem %s6, %s270
      %v273 = vld [vmem:[%s261] sm:$0xf]
      %v274 = vld [vmem:[%s261 + $0x4] sm:$0xf]
      %v275 = vld [vmem:[%s261 + $0x8] sm:$0xf]
      %v276 = vld [vmem:[%s261 + $0xc] sm:$0xf]
      %v277 = vld [vmem:[%s261 + $0x10] sm:$0xf]
      %v278 = vld [vmem:[%s261 + $0x14] sm:$0xf]
      %v279 = vld [vmem:[%s261 + $0x18] sm:$0xf]
      %v280 = vld [vmem:[%s261 + $0x1c] sm:$0xf]
      %v281 = vld [vmem:[%s261 + $0x20] sm:$0xf]
      %v282 = vld [vmem:[%s261 + $0x24] sm:$0xf]
      %v283 = vld [vmem:[%s261 + $0x28] sm:$0xf]
      %v284 = vld [vmem:[%s261 + $0x2c] sm:$0xf]
      %v285 = vld [vmem:[%s261 + $0x30] sm:$0xf]
      %v286 = vld [vmem:[%s261 + $0x34] sm:$0xf]
      %v287 = vld [vmem:[%s261 + $0x38] sm:$0xf]
      %v288 = vld [vmem:[%s261 + $0x3c] sm:$0xf]
      %v289 = vld [vmem:[%s261 + $0x40] sm:$0xf]
      %v290 = vld [vmem:[%s261 + $0x44] sm:$0xf]
      %v291 = vld [vmem:[%s261 + $0x48] sm:$0xf]
      %v292 = vld [vmem:[%s261 + $0x4c] sm:$0xf]
      %v293 = vld [vmem:[%s261 + $0x50] sm:$0xf]
      %v294 = vld [vmem:[%s261 + $0x54] sm:$0xf]
      %v295 = vld [vmem:[%s261 + $0x58] sm:$0xf]
      %v296 = vld [vmem:[%s261 + $0x5c] sm:$0xf]
      %v297 = vld [vmem:[%s261 + $0x60] sm:$0xf]
      %v298 = vld [vmem:[%s261 + $0x64] sm:$0xf]
      %v299 = vld [vmem:[%s261 + $0x68] sm:$0xf]
      %v300 = vld [vmem:[%s261 + $0x6c] sm:$0xf]
      %v301 = vld [vmem:[%s261 + $0x70] sm:$0xf]
      %v302 = vld [vmem:[%s261 + $0x74] sm:$0xf]
      %v303 = vld [vmem:[%s261 + $0x78] sm:$0xf]
      %v304 = vld [vmem:[%s261 + $0x7c] sm:$0xf]
      %v305 = vld [vmem:[%s2] sm:$0xf]
      %v306 = vld [vmem:[%s2 + $0x4] sm:$0xf]
      %v307 = vld [vmem:[%s2 + $0x8] sm:$0xf]
      %v308 = vld [vmem:[%s2 + $0xc] sm:$0xf]
      %v309 = vld [vmem:[%s2 + $0x10] sm:$0xf]
      %v310 = vld [vmem:[%s2 + $0x14] sm:$0xf]
      %v311 = vld [vmem:[%s2 + $0x18] sm:$0xf]
      %v312 = vld [vmem:[%s2 + $0x1c] sm:$0xf]
      %v313 = vld [vmem:[%s2 + $0x20] sm:$0xf]
      %v314 = vld [vmem:[%s2 + $0x24] sm:$0xf]
      %v315 = vld [vmem:[%s2 + $0x28] sm:$0xf]
      %v316 = vld [vmem:[%s2 + $0x2c] sm:$0xf]
      %v317 = vld [vmem:[%s2 + $0x30] sm:$0xf]
      %v318 = vld [vmem:[%s2 + $0x34] sm:$0xf]
      %v319 = vld [vmem:[%s2 + $0x38] sm:$0xf]
      %v320 = vld [vmem:[%s2 + $0x3c] sm:$0xf]
      %v321 = vld [vmem:[%s4] sm:$0x1]
      %v323 = vlaneseq
      %v324 = vshrl.u32 %v323, 7
      %v325 = vsub.s32 0, %v324
      %v326 = vrot.slane %v321, %v325
      %v360 = vunpack.c.l.b16 %v273
      %v361 = vunpack.c.l.b16 %v274
      %v362 = vunpack.c.l.b16 %v275
      %v363 = vunpack.c.l.b16 %v276
      %v364 = vunpack.c.l.b16 %v277
      %v365 = vunpack.c.l.b16 %v278
      %v366 = vunpack.c.l.b16 %v279
      %v367 = vunpack.c.l.b16 %v280
      %v368 = vunpack.c.l.b16 %v281
      %v369 = vunpack.c.l.b16 %v282
      %v370 = vunpack.c.l.b16 %v283
      %v371 = vunpack.c.l.b16 %v284
      %v372 = vunpack.c.l.b16 %v285
      %v373 = vunpack.c.l.b16 %v286
      %v374 = vunpack.c.l.b16 %v287
      %v375 = vunpack.c.l.b16 %v288
      %v376 = vunpack.c.l.b16 %v289
      %v377 = vunpack.c.l.b16 %v290
      %v378 = vunpack.c.l.b16 %v291
      %v379 = vunpack.c.l.b16 %v292
      %v380 = vunpack.c.l.b16 %v293
      %v381 = vunpack.c.l.b16 %v294
      %v382 = vunpack.c.l.b16 %v295
      %v383 = vunpack.c.l.b16 %v296
      %v384 = vunpack.c.l.b16 %v297
      %v385 = vunpack.c.l.b16 %v298
      %v386 = vunpack.c.l.b16 %v299
      %v387 = vunpack.c.l.b16 %v300
      %v388 = vunpack.c.l.b16 %v301
      %v389 = vunpack.c.l.b16 %v302
      %v390 = vunpack.c.l.b16 %v303
      %v391 = vunpack.c.l.b16 %v304
      %v392 = vpack.c.b16 %v361, %v360
      %v393 = vpack.c.b16 %v363, %v362
      %v394 = vpack.c.b16 %v365, %v364
      %v395 = vpack.c.b16 %v367, %v366
      %v396 = vpack.c.b16 %v369, %v368
      %v397 = vpack.c.b16 %v371, %v370
      %v398 = vpack.c.b16 %v373, %v372
      %v399 = vpack.c.b16 %v375, %v374
      %v400 = vpack.c.b16 %v377, %v376
      %v401 = vpack.c.b16 %v379, %v378
      %v402 = vpack.c.b16 %v381, %v380
      %v403 = vpack.c.b16 %v383, %v382
      %v404 = vpack.c.b16 %v385, %v384
      %v405 = vpack.c.b16 %v387, %v386
      %v406 = vpack.c.b16 %v389, %v388
      %v407 = vpack.c.b16 %v391, %v390
      %v440 = vunpack.c.l.b16 %v305
      %v441 = vunpack.c.l.b16 %v306
      %v442 = vunpack.c.l.b16 %v307
      %v443 = vunpack.c.l.b16 %v308
      %v444 = vunpack.c.l.b16 %v309
      %v445 = vunpack.c.l.b16 %v310
      %v446 = vunpack.c.l.b16 %v311
      %v447 = vunpack.c.l.b16 %v312
      %v448 = vunpack.c.l.b16 %v313
      %v449 = vunpack.c.l.b16 %v314
      %v450 = vunpack.c.l.b16 %v315
      %v451 = vunpack.c.l.b16 %v316
      %v452 = vunpack.c.l.b16 %v317
      %v453 = vunpack.c.l.b16 %v318
      %v454 = vunpack.c.l.b16 %v319
      %v455 = vunpack.c.l.b16 %v320
      %v456 = vpack.c.b16 %v441, %v440
      %v457 = vpack.c.b16 %v443, %v442
      %v458 = vpack.c.b16 %v445, %v444
      %v459 = vpack.c.b16 %v447, %v446
      %v460 = vpack.c.b16 %v449, %v448
      %v461 = vpack.c.b16 %v451, %v450
      %v462 = vpack.c.b16 %v453, %v452
      %v463 = vpack.c.b16 %v455, %v454
      %472 = vmatprep.subr.bf16.mxu0 0
      %473 = vmatpush1.bf16.msra.mxu0 %v463
      %474 = vmatprep.subr.bf16.mxu0 0
      %475 = vmatpush1.bf16.msra.mxu0 %v462
      %476 = vmatprep.subr.bf16.mxu0 0
      %477 = vmatpush1.bf16.msra.mxu0 %v461
      %478 = vmatprep.subr.bf16.mxu0 0
      %479 = vmatpush1.bf16.msra.mxu0 %v460
      %480 = vmatprep.subr.bf16.mxu0 0
      %481 = vmatpush1.bf16.msra.mxu0 %v459
      %482 = vmatprep.subr.bf16.mxu0 0
      %483 = vmatpush1.bf16.msra.mxu0 %v458
      %484 = vmatprep.subr.bf16.mxu0 0
      %485 = vmatpush1.bf16.msra.mxu0 %v457
      %486 = vmatprep.subr.bf16.mxu0 0
      %487 = vmatpush1.bf16.msra.mxu0 %v456
      %488 = vmatprep.subr.bf16.mxu0 0
      %489 = vmatpush2.bf16.msra.mxu0 0
      %490 = vmatprep.subr.bf16.mxu0 0
      %491 = vmatpush2.bf16.msra.mxu0 0
      %492 = vmatprep.subr.bf16.mxu0 0
      %493 = vmatpush2.bf16.msra.mxu0 0
      %494 = vmatprep.subr.bf16.mxu0 0
      %495 = vmatpush2.bf16.msra.mxu0 0
      %496 = vmatprep.subr.bf16.mxu0 0
      %497 = vmatpush2.bf16.msra.mxu0 0
      %498 = vmatprep.subr.bf16.mxu0 0
      %499 = vmatpush2.bf16.msra.mxu0 0
      %500 = vmatprep.subr.bf16.mxu0 0
      %501 = vmatpush2.bf16.msra.mxu0 0
      %502 = vmatprep.subr.bf16.mxu0 0
      %503 = vmatpush2.bf16.msra.mxu0 0
      %504 = vmatprep.mubr.bf16.mxu0 0
      %505 = vmatmul.mubr.bf16.gmra.mxu0 %v392
      %v506 = vpop.f32.mrf.mxu0
      %v507 = vadd.f32 %v326, %v506
      %v508 = vpop.f32.mrf.mxu0
      %v509 = vpop.f32.mrf.mxu0
      %v510 = vadd.f32 %v326, %v509
      %v511 = vpop.f32.mrf.mxu0
      %512 = vmatprep.mubr.bf16.mxu0 0
      %513 = vmatmul.mubr.bf16.gmra.mxu0 %v393
      %v514 = vpop.f32.mrf.mxu0
      %v515 = vadd.f32 %v326, %v514
      %v516 = vpop.f32.mrf.mxu0
      %v517 = vpop.f32.mrf.mxu0
      %v518 = vadd.f32 %v326, %v517
      %v519 = vpop.f32.mrf.mxu0
      %520 = vmatprep.mubr.bf16.mxu0 0
      %521 = vmatmul.mubr.bf16.gmra.mxu0 %v394
      %v522 = vpop.f32.mrf.mxu0
      %v523 = vadd.f32 %v326, %v522
      %v524 = vpop.f32.mrf.mxu0
      %v525 = vpop.f32.mrf.mxu0
      %v526 = vadd.f32 %v326, %v525
      %v527 = vpop.f32.mrf.mxu0
      %528 = vmatprep.mubr.bf16.mxu0 0
      %529 = vmatmul.mubr.bf16.gmra.mxu0 %v395
      %v530 = vpop.f32.mrf.mxu0
      %v531 = vadd.f32 %v326, %v530
      %v532 = vpop.f32.mrf.mxu0
      %v533 = vpop.f32.mrf.mxu0
      %v534 = vadd.f32 %v326, %v533
      %v535 = vpop.f32.mrf.mxu0
      %536 = vmatprep.mubr.bf16.mxu0 0
      %537 = vmatmul.mubr.bf16.gmra.mxu0 %v396
      %v538 = vpop.f32.mrf.mxu0
      %v539 = vadd.f32 %v326, %v538
      %v540 = vpop.f32.mrf.mxu0
      %v541 = vpop.f32.mrf.mxu0
      %v542 = vadd.f32 %v326, %v541
      %v543 = vpop.f32.mrf.mxu0
      %544 = vmatprep.mubr.bf16.mxu0 0
      %545 = vmatmul.mubr.bf16.gmra.mxu0 %v397
      %v546 = vpop.f32.mrf.mxu0
      %v547 = vadd.f32 %v326, %v546
      %v548 = vpop.f32.mrf.mxu0
      %v549 = vpop.f32.mrf.mxu0
      %v550 = vadd.f32 %v326, %v549
      %v551 = vpop.f32.mrf.mxu0
      %552 = vmatprep.mubr.bf16.mxu0 0
      %553 = vmatmul.mubr.bf16.gmra.mxu0 %v398
      %v554 = vpop.f32.mrf.mxu0
      %v555 = vadd.f32 %v326, %v554
      %v556 = vpop.f32.mrf.mxu0
      %v557 = vpop.f32.mrf.mxu0
      %v558 = vadd.f32 %v326, %v557
      %v559 = vpop.f32.mrf.mxu0
      %560 = vmatprep.mubr.bf16.mxu0 0
      %561 = vmatmul.mubr.bf16.gmra.mxu0 %v399
      %v562 = vpop.f32.mrf.mxu0
      %v563 = vadd.f32 %v326, %v562
      %v564 = vpop.f32.mrf.mxu0
      %v565 = vpop.f32.mrf.mxu0
      %v566 = vadd.f32 %v326, %v565
      %v567 = vpop.f32.mrf.mxu0
      %568 = vmatprep.mubr.bf16.mxu0 0
      %569 = vmatmul.mubr.bf16.gmra.mxu0 %v400
      %v570 = vpop.f32.mrf.mxu0
      %v571 = vadd.f32 %v326, %v570
      %v572 = vpop.f32.mrf.mxu0
      %v573 = vpop.f32.mrf.mxu0
      %v574 = vadd.f32 %v326, %v573
      %v575 = vpop.f32.mrf.mxu0
      %576 = vmatprep.mubr.bf16.mxu0 0
      %577 = vmatmul.mubr.bf16.gmra.mxu0 %v401
      %v578 = vpop.f32.mrf.mxu0
      %v579 = vadd.f32 %v326, %v578
      %v580 = vpop.f32.mrf.mxu0
      %v581 = vpop.f32.mrf.mxu0
      %v582 = vadd.f32 %v326, %v581
      %v583 = vpop.f32.mrf.mxu0
      %584 = vmatprep.mubr.bf16.mxu0 0
      %585 = vmatmul.mubr.bf16.gmra.mxu0 %v402
      %v586 = vpop.f32.mrf.mxu0
      %v587 = vadd.f32 %v326, %v586
      %v588 = vpop.f32.mrf.mxu0
      %v589 = vpop.f32.mrf.mxu0
      %v590 = vadd.f32 %v326, %v589
      %v591 = vpop.f32.mrf.mxu0
      %592 = vmatprep.mubr.bf16.mxu0 0
      %593 = vmatmul.mubr.bf16.gmra.mxu0 %v403
      %v594 = vpop.f32.mrf.mxu0
      %v595 = vadd.f32 %v326, %v594
      %v596 = vpop.f32.mrf.mxu0
      %v597 = vpop.f32.mrf.mxu0
      %v598 = vadd.f32 %v326, %v597
      %v599 = vpop.f32.mrf.mxu0
      %600 = vmatprep.mubr.bf16.mxu0 0
      %601 = vmatmul.mubr.bf16.gmra.mxu0 %v404
      %v602 = vpop.f32.mrf.mxu0
      %v603 = vadd.f32 %v326, %v602
      %v604 = vpop.f32.mrf.mxu0
      %v605 = vpop.f32.mrf.mxu0
      %v606 = vadd.f32 %v326, %v605
      %v607 = vpop.f32.mrf.mxu0
      %608 = vmatprep.mubr.bf16.mxu0 0
      %609 = vmatmul.mubr.bf16.gmra.mxu0 %v405
      %v610 = vpop.f32.mrf.mxu0
      %v611 = vadd.f32 %v326, %v610
      %v612 = vpop.f32.mrf.mxu0
      %v613 = vpop.f32.mrf.mxu0
      %v614 = vadd.f32 %v326, %v613
      %v615 = vpop.f32.mrf.mxu0
      %616 = vmatprep.mubr.bf16.mxu0 0
      %617 = vmatmul.mubr.bf16.gmra.mxu0 %v406
      %v618 = vpop.f32.mrf.mxu0
      %v619 = vadd.f32 %v326, %v618
      %v620 = vpop.f32.mrf.mxu0
      %v621 = vpop.f32.mrf.mxu0
      %v622 = vadd.f32 %v326, %v621
      %v623 = vpop.f32.mrf.mxu0
      %624 = vmatprep.mubr.bf16.mxu0 0
      %625 = vmatmul.mubr.bf16.gmra.mxu0 %v407
      %v626 = vpop.f32.mrf.mxu0
      %v627 = vadd.f32 %v326, %v626
      %v628 = vpop.f32.mrf.mxu0
      %v629 = vpop.f32.mrf.mxu0
      %v630 = vadd.f32 %v326, %v629
      %v631 = vpop.f32.mrf.mxu0
      %632 = vdwg.mxu0
      %v633 = vld [vmem:[%s266] sm:$0xff]
      %v634 = vld [vmem:[%s266 + $0x8] sm:$0xff]
      %v635 = vld [vmem:[%s266 + $0x10] sm:$0xff]
      %v636 = vld [vmem:[%s266 + $0x18] sm:$0xff]
      %v637 = vld [vmem:[%s266 + $0x20] sm:$0xff]
      %v638 = vld [vmem:[%s266 + $0x28] sm:$0xff]
      %v639 = vld [vmem:[%s266 + $0x30] sm:$0xff]
      %v640 = vld [vmem:[%s266 + $0x38] sm:$0xff]
      %v641 = vld [vmem:[%s266 + $0x40] sm:$0xff]
      %v642 = vld [vmem:[%s266 + $0x48] sm:$0xff]
      %v643 = vld [vmem:[%s266 + $0x50] sm:$0xff]
      %v644 = vld [vmem:[%s266 + $0x58] sm:$0xff]
      %v645 = vld [vmem:[%s266 + $0x60] sm:$0xff]
      %v646 = vld [vmem:[%s266 + $0x68] sm:$0xff]
      %v647 = vld [vmem:[%s266 + $0x70] sm:$0xff]
      %v648 = vld [vmem:[%s266 + $0x78] sm:$0xff]
      %v649 = vld [vmem:[%s266 + $0x80] sm:$0xff]
      %v650 = vld [vmem:[%s266 + $0x88] sm:$0xff]
      %v651 = vld [vmem:[%s266 + $0x90] sm:$0xff]
      %v652 = vld [vmem:[%s266 + $0x98] sm:$0xff]
      %v653 = vld [vmem:[%s266 + $0xa0] sm:$0xff]
      %v654 = vld [vmem:[%s266 + $0xa8] sm:$0xff]
      %v655 = vld [vmem:[%s266 + $0xb0] sm:$0xff]
      %v656 = vld [vmem:[%s266 + $0xb8] sm:$0xff]
      %v657 = vld [vmem:[%s266 + $0xc0] sm:$0xff]
      %v658 = vld [vmem:[%s266 + $0xc8] sm:$0xff]
      %v659 = vld [vmem:[%s266 + $0xd0] sm:$0xff]
      %v660 = vld [vmem:[%s266 + $0xd8] sm:$0xff]
      %v661 = vld [vmem:[%s266 + $0xe0] sm:$0xff]
      %v662 = vld [vmem:[%s266 + $0xe8] sm:$0xff]
      %v663 = vld [vmem:[%s266 + $0xf0] sm:$0xff]
      %v664 = vld [vmem:[%s266 + $0xf8] sm:$0xff]
      %v665 = vpack.c.bf16 %v634, %v633
      %v666 = vpack.c.bf16 %v636, %v635
      %v667 = vpack.c.bf16 %v638, %v637
      %v668 = vpack.c.bf16 %v640, %v639
      %v669 = vpack.c.bf16 %v642, %v641
      %v670 = vpack.c.bf16 %v644, %v643
      %v671 = vpack.c.bf16 %v646, %v645
      %v672 = vpack.c.bf16 %v648, %v647
      %v673 = vpack.c.bf16 %v650, %v649
      %v674 = vpack.c.bf16 %v652, %v651
      %v675 = vpack.c.bf16 %v654, %v653
      %v676 = vpack.c.bf16 %v656, %v655
      %v677 = vpack.c.bf16 %v658, %v657
      %v678 = vpack.c.bf16 %v660, %v659
      %v679 = vpack.c.bf16 %v662, %v661
      %v680 = vpack.c.bf16 %v664, %v663
      %v681 = vld [vmem:[%s3] sm:$0x3]
      %v682 = vld [vmem:[%s5] sm:$0x1]
      %v684 = vlaneseq
      %v685 = vshrl.u32 %v684, 7
      %v686 = vsub.s32 0, %v685
      %v687 = vrot.slane %v682, %v686
      %vm689 = vcmask 31744
      %v691 = vsel %vm689, %v665, 0
      %v694 = vsel %vm689, %v666, 0
      %v697 = vsel %vm689, %v667, 0
      %v700 = vsel %vm689, %v668, 0
      %v703 = vsel %vm689, %v669, 0
      %v706 = vsel %vm689, %v670, 0
      %v709 = vsel %vm689, %v671, 0
      %v712 = vsel %vm689, %v672, 0
      %v715 = vsel %vm689, %v673, 0
      %v718 = vsel %vm689, %v674, 0
      %v721 = vsel %vm689, %v675, 0
      %v724 = vsel %vm689, %v676, 0
      %v727 = vsel %vm689, %v677, 0
      %v730 = vsel %vm689, %v678, 0
      %v733 = vsel %vm689, %v679, 0
      %v736 = vsel %vm689, %v680, 0
      %vm738 = vcmask 1041408
      %v740 = vsel %vm738, %v681, 0
      %742 = vmatprep.subr.bf16.mxu0 0
      %743 = vmatpush1.bf16.msra.mxu0 0
      %744 = vmatprep.subr.bf16.mxu0 0
      %745 = vmatpush1.bf16.msra.mxu0 0
      %746 = vmatprep.subr.bf16.mxu0 0
      %747 = vmatpush1.bf16.msra.mxu0 0
      %748 = vmatprep.subr.bf16.mxu0 0
      %749 = vmatpush1.bf16.msra.mxu0 0
      %750 = vmatprep.subr.bf16.mxu0 0
      %751 = vmatpush1.bf16.msra.mxu0 0
      %752 = vmatprep.subr.bf16.mxu0 0
      %753 = vmatpush1.bf16.msra.mxu0 0
      %754 = vmatprep.subr.bf16.mxu0 0
      %755 = vmatpush1.bf16.msra.mxu0 0
      %756 = vmatprep.subr.bf16.mxu0 0
      %757 = vmatpush1.bf16.msra.mxu0 %v740
      %758 = vmatprep.subr.bf16.mxu0 0
      %759 = vmatpush2.bf16.msra.mxu0 0
      %760 = vmatprep.subr.bf16.mxu0 0
      %761 = vmatpush2.bf16.msra.mxu0 0
      %762 = vmatprep.subr.bf16.mxu0 0
      %763 = vmatpush2.bf16.msra.mxu0 0
      %764 = vmatprep.subr.bf16.mxu0 0
      %765 = vmatpush2.bf16.msra.mxu0 0
      %766 = vmatprep.subr.bf16.mxu0 0
      %767 = vmatpush2.bf16.msra.mxu0 0
      %768 = vmatprep.subr.bf16.mxu0 0
      %769 = vmatpush2.bf16.msra.mxu0 0
      %770 = vmatprep.subr.bf16.mxu0 0
      %771 = vmatpush2.bf16.msra.mxu0 0
      %772 = vmatprep.subr.bf16.mxu0 0
      %773 = vmatpush2.bf16.msra.mxu0 0
      %774 = vmatprep.mubr.bf16.mxu0 0
      %775 = vmatmul.mubr.bf16.gmra.mxu0 %v691
      %v776 = vpop.f32.mrf.mxu0
      %v777 = vadd.f32 %v687, %v776
      %v778 = vpop.f32.mrf.mxu0
      %v779 = vpop.f32.mrf.mxu0
      %v780 = vadd.f32 %v687, %v779
      %v781 = vpop.f32.mrf.mxu0
      %782 = vmatprep.mubr.bf16.mxu0 0
      %783 = vmatmul.mubr.bf16.gmra.mxu0 %v694
      %v784 = vpop.f32.mrf.mxu0
      %v785 = vadd.f32 %v687, %v784
      %v786 = vpop.f32.mrf.mxu0
      %v787 = vpop.f32.mrf.mxu0
      %v788 = vadd.f32 %v687, %v787
      %v789 = vpop.f32.mrf.mxu0
      %790 = vmatprep.mubr.bf16.mxu0 0
      %791 = vmatmul.mubr.bf16.gmra.mxu0 %v697
      %v792 = vpop.f32.mrf.mxu0
      %v793 = vadd.f32 %v687, %v792
      %v794 = vpop.f32.mrf.mxu0
      %v795 = vpop.f32.mrf.mxu0
      %v796 = vadd.f32 %v687, %v795
      %v797 = vpop.f32.mrf.mxu0
      %798 = vmatprep.mubr.bf16.mxu0 0
      %799 = vmatmul.mubr.bf16.gmra.mxu0 %v700
      %v800 = vpop.f32.mrf.mxu0
      %v801 = vadd.f32 %v687, %v800
      %v802 = vpop.f32.mrf.mxu0
      %v803 = vpop.f32.mrf.mxu0
      %v804 = vadd.f32 %v687, %v803
      %v805 = vpop.f32.mrf.mxu0
      %806 = vmatprep.mubr.bf16.mxu0 0
      %807 = vmatmul.mubr.bf16.gmra.mxu0 %v703
      %v808 = vpop.f32.mrf.mxu0
      %v809 = vadd.f32 %v687, %v808
      %v810 = vpop.f32.mrf.mxu0
      %v811 = vpop.f32.mrf.mxu0
      %v812 = vadd.f32 %v687, %v811
      %v813 = vpop.f32.mrf.mxu0
      %814 = vmatprep.mubr.bf16.mxu0 0
      %815 = vmatmul.mubr.bf16.gmra.mxu0 %v706
      %v816 = vpop.f32.mrf.mxu0
      %v817 = vadd.f32 %v687, %v816
      %v818 = vpop.f32.mrf.mxu0
      %v819 = vpop.f32.mrf.mxu0
      %v820 = vadd.f32 %v687, %v819
      %v821 = vpop.f32.mrf.mxu0
      %822 = vmatprep.mubr.bf16.mxu0 0
      %823 = vmatmul.mubr.bf16.gmra.mxu0 %v709
      %v824 = vpop.f32.mrf.mxu0
      %v825 = vadd.f32 %v687, %v824
      %v826 = vpop.f32.mrf.mxu0
      %v827 = vpop.f32.mrf.mxu0
      %v828 = vadd.f32 %v687, %v827
      %v829 = vpop.f32.mrf.mxu0
      %830 = vmatprep.mubr.bf16.mxu0 0
      %831 = vmatmul.mubr.bf16.gmra.mxu0 %v712
      %v832 = vpop.f32.mrf.mxu0
      %v833 = vadd.f32 %v687, %v832
      %v834 = vpop.f32.mrf.mxu0
      %v835 = vpop.f32.mrf.mxu0
      %v836 = vadd.f32 %v687, %v835
      %v837 = vpop.f32.mrf.mxu0
      %838 = vmatprep.mubr.bf16.mxu0 0
      %839 = vmatmul.mubr.bf16.gmra.mxu0 %v715
      %v840 = vpop.f32.mrf.mxu0
      %v841 = vadd.f32 %v687, %v840
      %v842 = vpop.f32.mrf.mxu0
      %v843 = vpop.f32.mrf.mxu0
      %v844 = vadd.f32 %v687, %v843
      %v845 = vpop.f32.mrf.mxu0
      %846 = vmatprep.mubr.bf16.mxu0 0
      %847 = vmatmul.mubr.bf16.gmra.mxu0 %v718
      %v848 = vpop.f32.mrf.mxu0
      %v849 = vadd.f32 %v687, %v848
      %v850 = vpop.f32.mrf.mxu0
      %v851 = vpop.f32.mrf.mxu0
      %v852 = vadd.f32 %v687, %v851
      %v853 = vpop.f32.mrf.mxu0
      %854 = vmatprep.mubr.bf16.mxu0 0
      %855 = vmatmul.mubr.bf16.gmra.mxu0 %v721
      %v856 = vpop.f32.mrf.mxu0
      %v857 = vadd.f32 %v687, %v856
      %v858 = vpop.f32.mrf.mxu0
      %v859 = vpop.f32.mrf.mxu0
      %v860 = vadd.f32 %v687, %v859
      %v861 = vpop.f32.mrf.mxu0
      %862 = vmatprep.mubr.bf16.mxu0 0
      %863 = vmatmul.mubr.bf16.gmra.mxu0 %v724
      %v864 = vpop.f32.mrf.mxu0
      %v865 = vadd.f32 %v687, %v864
      %v866 = vpop.f32.mrf.mxu0
      %v867 = vpop.f32.mrf.mxu0
      %v868 = vadd.f32 %v687, %v867
      %v869 = vpop.f32.mrf.mxu0
      %870 = vmatprep.mubr.bf16.mxu0 0
      %871 = vmatmul.mubr.bf16.gmra.mxu0 %v727
      %v872 = vpop.f32.mrf.mxu0
      %v873 = vadd.f32 %v687, %v872
      %v874 = vpop.f32.mrf.mxu0
      %v875 = vpop.f32.mrf.mxu0
      %v876 = vadd.f32 %v687, %v875
      %v877 = vpop.f32.mrf.mxu0
      %878 = vmatprep.mubr.bf16.mxu0 0
      %879 = vmatmul.mubr.bf16.gmra.mxu0 %v730
      %v880 = vpop.f32.mrf.mxu0
      %v881 = vadd.f32 %v687, %v880
      %v882 = vpop.f32.mrf.mxu0
      %v883 = vpop.f32.mrf.mxu0
      %v884 = vadd.f32 %v687, %v883
      %v885 = vpop.f32.mrf.mxu0
      %886 = vmatprep.mubr.bf16.mxu0 0
      %887 = vmatmul.mubr.bf16.gmra.mxu0 %v733
      %v888 = vpop.f32.mrf.mxu0
      %v889 = vadd.f32 %v687, %v888
      %v890 = vpop.f32.mrf.mxu0
      %v891 = vpop.f32.mrf.mxu0
      %v892 = vadd.f32 %v687, %v891
      %v893 = vpop.f32.mrf.mxu0
      %894 = vmatprep.mubr.bf16.mxu0 0
      %895 = vmatmul.mubr.bf16.gmra.mxu0 %v736
      %v896 = vpop.f32.mrf.mxu0
      %v897 = vadd.f32 %v687, %v896
      %v898 = vpop.f32.mrf.mxu0
      %v899 = vpop.f32.mrf.mxu0
      %v900 = vadd.f32 %v687, %v899
      %v901 = vpop.f32.mrf.mxu0
      %902 = vdwg.mxu0
      %v903 = vadd.f32 %v507, %v777
      %v904 = vadd.f32 %v510, %v780
      %v905 = vadd.f32 %v515, %v785
      %v906 = vadd.f32 %v518, %v788
      %v907 = vadd.f32 %v523, %v793
      %v908 = vadd.f32 %v526, %v796
      %v909 = vadd.f32 %v531, %v801
      %v910 = vadd.f32 %v534, %v804
      %v911 = vadd.f32 %v539, %v809
      %v912 = vadd.f32 %v542, %v812
      %v913 = vadd.f32 %v547, %v817
      %v914 = vadd.f32 %v550, %v820
      %v915 = vadd.f32 %v555, %v825
      %v916 = vadd.f32 %v558, %v828
      %v917 = vadd.f32 %v563, %v833
      %v918 = vadd.f32 %v566, %v836
      %v919 = vadd.f32 %v571, %v841
      %v920 = vadd.f32 %v574, %v844
      %v921 = vadd.f32 %v579, %v849
      %v922 = vadd.f32 %v582, %v852
      %v923 = vadd.f32 %v587, %v857
      %v924 = vadd.f32 %v590, %v860
      %v925 = vadd.f32 %v595, %v865
      %v926 = vadd.f32 %v598, %v868
      %v927 = vadd.f32 %v603, %v873
      %v928 = vadd.f32 %v606, %v876
      %v929 = vadd.f32 %v611, %v881
      %v930 = vadd.f32 %v614, %v884
      %v931 = vadd.f32 %v619, %v889
      %v932 = vadd.f32 %v622, %v892
      %v933 = vadd.f32 %v627, %v897
      %v934 = vadd.f32 %v630, %v900
      %v935 = vmax.f32 %v903, 0.0
      %v936 = vmax.f32 %v904, 0.0
      %v937 = vmax.f32 %v905, 0.0
      %v938 = vmax.f32 %v906, 0.0
      %v939 = vmax.f32 %v907, 0.0
      %v940 = vmax.f32 %v908, 0.0
      %v941 = vmax.f32 %v909, 0.0
      %v942 = vmax.f32 %v910, 0.0
      %v943 = vmax.f32 %v911, 0.0
      %v944 = vmax.f32 %v912, 0.0
      %v945 = vmax.f32 %v913, 0.0
      %v946 = vmax.f32 %v914, 0.0
      %v947 = vmax.f32 %v915, 0.0
      %v948 = vmax.f32 %v916, 0.0
      %v949 = vmax.f32 %v917, 0.0
      %v950 = vmax.f32 %v918, 0.0
      %v951 = vmax.f32 %v919, 0.0
      %v952 = vmax.f32 %v920, 0.0
      %v953 = vmax.f32 %v921, 0.0
      %v954 = vmax.f32 %v922, 0.0
      %v955 = vmax.f32 %v923, 0.0
      %v956 = vmax.f32 %v924, 0.0
      %v957 = vmax.f32 %v925, 0.0
      %v958 = vmax.f32 %v926, 0.0
      %v959 = vmax.f32 %v927, 0.0
      %v960 = vmax.f32 %v928, 0.0
      %v961 = vmax.f32 %v929, 0.0
      %v962 = vmax.f32 %v930, 0.0
      %v963 = vmax.f32 %v931, 0.0
      %v964 = vmax.f32 %v932, 0.0
      %v965 = vmax.f32 %v933, 0.0
      %v966 = vmax.f32 %v934, 0.0
      %v967 = vpack.c.bf16 %v936, %v935
      %v968 = vpack.c.bf16 %v938, %v937
      %v969 = vpack.c.bf16 %v940, %v939
      %v970 = vpack.c.bf16 %v942, %v941
      %v971 = vpack.c.bf16 %v944, %v943
      %v972 = vpack.c.bf16 %v946, %v945
      %v973 = vpack.c.bf16 %v948, %v947
      %v974 = vpack.c.bf16 %v950, %v949
      %v975 = vpack.c.bf16 %v952, %v951
      %v976 = vpack.c.bf16 %v954, %v953
      %v977 = vpack.c.bf16 %v956, %v955
      %v978 = vpack.c.bf16 %v958, %v957
      %v979 = vpack.c.bf16 %v960, %v959
      %v980 = vpack.c.bf16 %v962, %v961
      %v981 = vpack.c.bf16 %v964, %v963
      %v982 = vpack.c.bf16 %v966, %v965
      %v999 = vunpack.c.l.b16 %v967
      %v1000 = vunpack.c.h.b16 %v967
      %v1001 = vunpack.c.l.b16 %v968
      %v1002 = vunpack.c.h.b16 %v968
      %v1003 = vunpack.c.l.b16 %v969
      %v1004 = vunpack.c.h.b16 %v969
      %v1005 = vunpack.c.l.b16 %v970
      %v1006 = vunpack.c.h.b16 %v970
      %v1007 = vunpack.c.l.b16 %v971
      %v1008 = vunpack.c.h.b16 %v971
      %v1009 = vunpack.c.l.b16 %v972
      %v1010 = vunpack.c.h.b16 %v972
      %v1011 = vunpack.c.l.b16 %v973
      %v1012 = vunpack.c.h.b16 %v973
      %v1013 = vunpack.c.l.b16 %v974
      %v1014 = vunpack.c.h.b16 %v974
      %v1015 = vunpack.c.l.b16 %v975
      %v1016 = vunpack.c.h.b16 %v975
      %v1017 = vunpack.c.l.b16 %v976
      %v1018 = vunpack.c.h.b16 %v976
      %v1019 = vunpack.c.l.b16 %v977
      %v1020 = vunpack.c.h.b16 %v977
      %v1021 = vunpack.c.l.b16 %v978
      %v1022 = vunpack.c.h.b16 %v978
      %v1023 = vunpack.c.l.b16 %v979
      %v1024 = vunpack.c.h.b16 %v979
      %v1025 = vunpack.c.l.b16 %v980
      %v1026 = vunpack.c.h.b16 %v980
      %v1027 = vunpack.c.l.b16 %v981
      %v1028 = vunpack.c.h.b16 %v981
      %v1029 = vunpack.c.l.b16 %v982
      %v1030 = vunpack.c.h.b16 %v982
      %v1031 = vpack.c.b16 %v999, %v999
      %v1032 = vpack.c.b16 %v1000, %v1000
      %v1033 = vpack.c.b16 %v1001, %v1001
      %v1034 = vpack.c.b16 %v1002, %v1002
      %v1035 = vpack.c.b16 %v1003, %v1003
      %v1036 = vpack.c.b16 %v1004, %v1004
      %v1037 = vpack.c.b16 %v1005, %v1005
      %v1038 = vpack.c.b16 %v1006, %v1006
      %v1039 = vpack.c.b16 %v1007, %v1007
      %v1040 = vpack.c.b16 %v1008, %v1008
      %v1041 = vpack.c.b16 %v1009, %v1009
      %v1042 = vpack.c.b16 %v1010, %v1010
      %v1043 = vpack.c.b16 %v1011, %v1011
      %v1044 = vpack.c.b16 %v1012, %v1012
      %v1045 = vpack.c.b16 %v1013, %v1013
      %v1046 = vpack.c.b16 %v1014, %v1014
      %v1047 = vpack.c.b16 %v1015, %v1015
      %v1048 = vpack.c.b16 %v1016, %v1016
      %v1049 = vpack.c.b16 %v1017, %v1017
      %v1050 = vpack.c.b16 %v1018, %v1018
      %v1051 = vpack.c.b16 %v1019, %v1019
      %v1052 = vpack.c.b16 %v1020, %v1020
      %v1053 = vpack.c.b16 %v1021, %v1021
      %v1054 = vpack.c.b16 %v1022, %v1022
      %v1055 = vpack.c.b16 %v1023, %v1023
      %v1056 = vpack.c.b16 %v1024, %v1024
      %v1057 = vpack.c.b16 %v1025, %v1025
      %v1058 = vpack.c.b16 %v1026, %v1026
      %v1059 = vpack.c.b16 %v1027, %v1027
      %v1060 = vpack.c.b16 %v1028, %v1028
      %v1061 = vpack.c.b16 %v1029, %v1029
      %v1062 = vpack.c.b16 %v1030, %v1030
      %vm1095 = vcmask 125952
      %1096 = vst.msk [vmem:[%s271] sm:$0xf] %vm1095, %v1031
      %1097 = vst.msk [vmem:[%s271 + $0x4] sm:$0xf] %vm1095, %v1032
      %1098 = vst.msk [vmem:[%s271 + $0x8] sm:$0xf] %vm1095, %v1033
      %1099 = vst.msk [vmem:[%s271 + $0xc] sm:$0xf] %vm1095, %v1034
      %1100 = vst.msk [vmem:[%s271 + $0x10] sm:$0xf] %vm1095, %v1035
      %1101 = vst.msk [vmem:[%s271 + $0x14] sm:$0xf] %vm1095, %v1036
      %1102 = vst.msk [vmem:[%s271 + $0x18] sm:$0xf] %vm1095, %v1037
      %1103 = vst.msk [vmem:[%s271 + $0x1c] sm:$0xf] %vm1095, %v1038
      %1104 = vst.msk [vmem:[%s271 + $0x20] sm:$0xf] %vm1095, %v1039
      %1105 = vst.msk [vmem:[%s271 + $0x24] sm:$0xf] %vm1095, %v1040
      %1106 = vst.msk [vmem:[%s271 + $0x28] sm:$0xf] %vm1095, %v1041
      %1107 = vst.msk [vmem:[%s271 + $0x2c] sm:$0xf] %vm1095, %v1042
      %1108 = vst.msk [vmem:[%s271 + $0x30] sm:$0xf] %vm1095, %v1043
      %1109 = vst.msk [vmem:[%s271 + $0x34] sm:$0xf] %vm1095, %v1044
      %1110 = vst.msk [vmem:[%s271 + $0x38] sm:$0xf] %vm1095, %v1045
      %1111 = vst.msk [vmem:[%s271 + $0x3c] sm:$0xf] %vm1095, %v1046
      %1112 = vst.msk [vmem:[%s271 + $0x40] sm:$0xf] %vm1095, %v1047
      %1113 = vst.msk [vmem:[%s271 + $0x44] sm:$0xf] %vm1095, %v1048
      %1114 = vst.msk [vmem:[%s271 + $0x48] sm:$0xf] %vm1095, %v1049
      %1115 = vst.msk [vmem:[%s271 + $0x4c] sm:$0xf] %vm1095, %v1050
      %1116 = vst.msk [vmem:[%s271 + $0x50] sm:$0xf] %vm1095, %v1051
      %1117 = vst.msk [vmem:[%s271 + $0x54] sm:$0xf] %vm1095, %v1052
      %1118 = vst.msk [vmem:[%s271 + $0x58] sm:$0xf] %vm1095, %v1053
      %1119 = vst.msk [vmem:[%s271 + $0x5c] sm:$0xf] %vm1095, %v1054
      %1120 = vst.msk [vmem:[%s271 + $0x60] sm:$0xf] %vm1095, %v1055
      %1121 = vst.msk [vmem:[%s271 + $0x64] sm:$0xf] %vm1095, %v1056
      %1122 = vst.msk [vmem:[%s271 + $0x68] sm:$0xf] %vm1095, %v1057
      %1123 = vst.msk [vmem:[%s271 + $0x6c] sm:$0xf] %vm1095, %v1058
      %1124 = vst.msk [vmem:[%s271 + $0x70] sm:$0xf] %vm1095, %v1059
      %1125 = vst.msk [vmem:[%s271 + $0x74] sm:$0xf] %vm1095, %v1060
      %1126 = vst.msk [vmem:[%s271 + $0x78] sm:$0xf] %vm1095, %v1061
      %1127 = vst.msk [vmem:[%s271 + $0x7c] sm:$0xf] %vm1095, %v1062
      %p1128 = scmp.lt.s32.totalorder %s17, 1
      %s1129 = scalar_select %p1128, %s17, 1
      %s1130 = smul.addr %s1129, 32
      %s1131 = smul.addr %s1130, 4
      %s1132 = scalar_lea.vmem %s6, %s1131
      // Predicated region
      $region45: #{bottleneck_forward.5} parent=43 // pred_check
        %p1133 = pneg %p171
      $region46: #{bottleneck_forward.5} parent=43 // pred_check_branch
        %1135 = sbr.rel (%p1133) target = $region48
      $region47: #{bottleneck_forward.5} parent=43 // pred_region
        _
      $region48: #{bottleneck_forward.5} parent=43 // pred_fallthru
        _
    $region44: #{bottleneck_forward.5} parent=5 // pred_fallthru
      _
    %p1136 = scmp.le.s32.totalorder 2, %s12
    // Predicated region
    $region49: #{bottleneck_forward.5} parent=5 // pred_check
      %p1137 = pneg %p1136
    $region50: #{bottleneck_forward.5} parent=5 // pred_check_branch
      %1139 = sbr.rel (%p1137) target = $region52
    $region51: #{bottleneck_forward.5} parent=5 // pred_region
      %s1140 = ssub.s32 %s12, 2
      // Predicated region
      $region53: #{bottleneck_forward.5} parent=51 // pred_check
        %p1141 = pneg %p177
      $region54: #{bottleneck_forward.5} parent=51 // pred_check_branch
        %1143 = sbr.rel (%p1141) target = $region56
      $region55: #{bottleneck_forward.5} parent=51 // pred_region
        %p1144 = scmp.lt.s32.totalorder %s18, 1
        %s1145 = scalar_select %p1144, %s18, 1
        %s1146 = smul.addr %s1145, 32
        %s1147 = smul.addr %s1146, 4
        %s1148 = scalar_lea.vmem %s6, %s1147
      $region56: #{bottleneck_forward.5} parent=51 // pred_fallthru
        _
    $region52: #{bottleneck_forward.5} parent=5 // pred_fallthru
      _
  $region6: #{bottleneck_forward.5} parent=0 // loop_footer
    %s16 = sadd.s32 1, %s12
  $region7: #{bottleneck_forward.5} parent=0 // loop_footer_branch
    %11 = sbr.rel target = $region3
  $region8: #{bottleneck_forward.5} parent=0 // loop_exit
    _

// kernel: bottleneck_forward.4
$region0: #{bottleneck_forward.4}
  #allocation0 [shape = 'u32[]', space=smem, size = 0x4, offset = 0x4, fixed_abs, tag = 'smem constant byte address 0x4 - core index']
  #allocation1 [shape = 'u32[144,128]{1,0:T(1,128)}', space=vmem, size = 0x12000, scoped, tag = 'internal scratch']
  %s0 = inlined_call_operand.vmem [shape: bf16[2,16,16,128], index: 0, kind: input, shape index: {}]
  %s1 = inlined_call_operand.vmem [shape: bf16[384,128], index: 1, kind: input, shape index: {}]
  %s2 = inlined_call_operand.vmem [shape: bf16[384,128], index: 2, kind: input, shape index: {}]
  %s3 = inlined_call_operand.vmem [shape: bf16[384,128], index: 3, kind: input, shape index: {}]
  %s4 = inlined_call_operand.vmem [shape: f32[1,128], index: 4, kind: input, shape index: {}]
  %s5 = inlined_call_operand.vmem [shape: bf16[2,16,16,128], index: 5, kind: output, shape index: {}]
  %s6 = sld [smem:[#allocation0]]
  $region53: #{bottleneck_forward.4} parent=0
    _
  %s8 = ssub.s32 1, %s6
  %s9 = scalar_select 0, %s8, %s6
  loop: start=0, step=1, limit=4
  $region2: #{bottleneck_forward.4} parent=0 // loop_pre_header
    _
  $region3: #{bottleneck_forward.4} parent=0 // loop_header
    %s11 = sphi 0, %s15
    %p12 = scmp.ge.s32.totalorder %s11, 4
    %s21 = sphi 0, %s23
    %s24 = sphi 0, %s21
    %s25 = sphi 0, %s24
    %s41 = sphi 0, %s25
    %s45 = sphi 0, %s45
    %s47 = sphi 0, %s45
    %s48 = sphi 0, %s47
    %s62 = sphi 0, %s48
    %s66 = sphi 0, %s66
    %s68 = sphi 0, %s66
    %s69 = sphi 0, %s68
    %s83 = sphi 0, %s69
    %s87 = sphi 0, %s87
    %s89 = sphi 0, %s87
    %s90 = sphi 0, %s89
    %s104 = sphi 0, %s90
    %s108 = sphi 0, %s108
    %s110 = sphi 0, %s108
    %s111 = sphi 0, %s110
    %s125 = sphi 0, %s111
    %s131 = sphi 0, %s133
    %s134 = sphi 0, %s131
    %s135 = sphi 0, %s134
    %s151 = sphi 0, %s135
  $region4: #{bottleneck_forward.4} parent=0 // loop_header_branch
    %14 = sbr.rel (%p12) target = $region8
  $region5: #{bottleneck_forward.4} parent=0 // loop_body
    %s16 = ssub.s32 %s11, 1
    %s17 = ssub.s32 %s11, 2
    %s18 = sadd.s32 %s11, 1
    %s19 = ssub.s32 %s11, %s18
    %p20 = scmp.eq.s32.totalorder %s19, 0
    %s22 = sadd.s32 %s21, 1
    %s23 = scalar_select %p20, %s21, %s22
    %p26 = pneg %p20
    %p27 = scmp.eq.s32.totalorder %s11, 1
    %p28 = por %p26, %p27
    %p29 = scmp.ne.s32.totalorder %s21, %s24
    %p30 = scmp.eq.s32.totalorder %s11, 0
    %p31 = por %p29, %p30
    %p32 = scmp.ne.s32.totalorder %s21, %s24
    %p33 = scmp.eq.s32.totalorder %s16, 1
    %p34 = por %p32, %p33
    %p35 = scmp.ne.s32.totalorder %s24, %s25
    %p36 = scmp.eq.s32.totalorder %s16, 0
    %p37 = por %p35, %p36
    %p38 = scmp.ne.s32.totalorder %s24, %s25
    %p39 = scmp.eq.s32.totalorder %s17, 1
    %p40 = por %p38, %p39
    %p42 = scmp.ne.s32.totalorder %s25, %s41
    %p43 = scmp.eq.s32.totalorder %s17, 0
    %p44 = por %p42, %p43
    %s46 = sadd.s32 %s45, 1
    %p49 = scmp.eq.s32.totalorder %s11, 1
    %p50 = scmp.ne.s32.totalorder %s45, %s47
    %p51 = scmp.eq.s32.totalorder %s11, 0
    %p52 = por %p50, %p51
    %p53 = scmp.ne.s32.totalorder %s45, %s47
    %p54 = scmp.eq.s32.totalorder %s16, 1
    %p55 = por %p53, %p54
    %p56 = scmp.ne.s32.totalorder %s47, %s48
    %p57 = scmp.eq.s32.totalorder %s16, 0
    %p58 = por %p56, %p57
    %p59 = scmp.ne.s32.totalorder %s47, %s48
    %p60 = scmp.eq.s32.totalorder %s17, 1
    %p61 = por %p59, %p60
    %p63 = scmp.ne.s32.totalorder %s48, %s62
    %p64 = scmp.eq.s32.totalorder %s17, 0
    %p65 = por %p63, %p64
    %s67 = sadd.s32 %s66, 1
    %p70 = scmp.eq.s32.totalorder %s11, 1
    %p71 = scmp.ne.s32.totalorder %s66, %s68
    %p72 = scmp.eq.s32.totalorder %s11, 0
    %p73 = por %p71, %p72
    %p74 = scmp.ne.s32.totalorder %s66, %s68
    %p75 = scmp.eq.s32.totalorder %s16, 1
    %p76 = por %p74, %p75
    %p77 = scmp.ne.s32.totalorder %s68, %s69
    %p78 = scmp.eq.s32.totalorder %s16, 0
    %p79 = por %p77, %p78
    %p80 = scmp.ne.s32.totalorder %s68, %s69
    %p81 = scmp.eq.s32.totalorder %s17, 1
    %p82 = por %p80, %p81
    %p84 = scmp.ne.s32.totalorder %s69, %s83
    %p85 = scmp.eq.s32.totalorder %s17, 0
    %p86 = por %p84, %p85
    %s88 = sadd.s32 %s87, 1
    %p91 = scmp.eq.s32.totalorder %s11, 1
    %p92 = scmp.ne.s32.totalorder %s87, %s89
    %p93 = scmp.eq.s32.totalorder %s11, 0
    %p94 = por %p92, %p93
    %p95 = scmp.ne.s32.totalorder %s87, %s89
    %p96 = scmp.eq.s32.totalorder %s16, 1
    %p97 = por %p95, %p96
    %p98 = scmp.ne.s32.totalorder %s89, %s90
    %p99 = scmp.eq.s32.totalorder %s16, 0
    %p100 = por %p98, %p99
    %p101 = scmp.ne.s32.totalorder %s89, %s90
    %p102 = scmp.eq.s32.totalorder %s17, 1
    %p103 = por %p101, %p102
    %p105 = scmp.ne.s32.totalorder %s90, %s104
    %p106 = scmp.eq.s32.totalorder %s17, 0
    %p107 = por %p105, %p106
    %s109 = sadd.s32 %s108, 1
    %p112 = scmp.eq.s32.totalorder %s11, 1
    %p113 = scmp.ne.s32.totalorder %s108, %s110
    %p114 = scmp.eq.s32.totalorder %s11, 0
    %p115 = por %p113, %p114
    %p116 = scmp.ne.s32.totalorder %s108, %s110
    %p117 = scmp.eq.s32.totalorder %s16, 1
    %p118 = por %p116, %p117
    %p119 = scmp.ne.s32.totalorder %s110, %s111
    %p120 = scmp.eq.s32.totalorder %s16, 0
    %p121 = por %p119, %p120
    %p122 = scmp.ne.s32.totalorder %s110, %s111
    %p123 = scmp.eq.s32.totalorder %s17, 1
    %p124 = por %p122, %p123
    %p126 = scmp.ne.s32.totalorder %s111, %s125
    %p127 = scmp.eq.s32.totalorder %s17, 0
    %p128 = por %p126, %p127
    %s129 = ssub.s32 %s11, %s18
    %p130 = scmp.eq.s32.totalorder %s129, 0
    %s132 = sadd.s32 %s131, 1
    %s133 = scalar_select %p130, %s131, %s132
    %p136 = pneg %p130
    %p137 = scmp.eq.s32.totalorder %s11, 1
    %p138 = por %p136, %p137
    %p139 = scmp.ne.s32.totalorder %s131, %s134
    %p140 = scmp.eq.s32.totalorder %s11, 0
    %p141 = por %p139, %p140
    %p142 = scmp.ne.s32.totalorder %s131, %s134
    %p143 = scmp.eq.s32.totalorder %s16, 1
    %p144 = por %p142, %p143
    %p145 = scmp.ne.s32.totalorder %s134, %s135
    %p146 = scmp.eq.s32.totalorder %s16, 0
    %p147 = por %p145, %p146
    %p148 = scmp.ne.s32.totalorder %s134, %s135
    %p149 = scmp.eq.s32.totalorder %s17, 1
    %p150 = por %p148, %p149
    %p152 = scmp.ne.s32.totalorder %s135, %s151
    %p153 = scmp.eq.s32.totalorder %s17, 0
    %p154 = por %p152, %p153
    %p155 = scmp.le.s32.totalorder 1, %s11
    %p156 = scmp.lt.s32.totalorder %s11, 3
    %p157 = pnand %p155, %p156
    %p158 = pneg %p157
    // Predicated region
    $region9: #{bottleneck_forward.4} parent=5 // pred_check
      _
    $region10: #{bottleneck_forward.4} parent=5 // pred_check_branch
      %160 = sbr.rel (%p157) target = $region12
    $region11: #{bottleneck_forward.4} parent=5 // pred_region
      %s161 = ssub.s32 %s11, 1
      // Predicated region
      $region13: #{bottleneck_forward.4} parent=11 // pred_check
        %p162 = pneg %p58
      $region14: #{bottleneck_forward.4} parent=11 // pred_check_branch
        %164 = sbr.rel (%p162) target = $region16
      $region15: #{bottleneck_forward.4} parent=11 // pred_region
        _
      $region16: #{bottleneck_forward.4} parent=11 // pred_fallthru
        _
      // Predicated region
      $region17: #{bottleneck_forward.4} parent=11 // pred_check
        %p165 = pneg %p79
      $region18: #{bottleneck_forward.4} parent=11 // pred_check_branch
        %167 = sbr.rel (%p165) target = $region20
      $region19: #{bottleneck_forward.4} parent=11 // pred_region
        _
      $region20: #{bottleneck_forward.4} parent=11 // pred_fallthru
        _
      // Predicated region
      $region21: #{bottleneck_forward.4} parent=11 // pred_check
        %p168 = pneg %p100
      $region22: #{bottleneck_forward.4} parent=11 // pred_check_branch
        %170 = sbr.rel (%p168) target = $region24
      $region23: #{bottleneck_forward.4} parent=11 // pred_region
        _
      $region24: #{bottleneck_forward.4} parent=11 // pred_fallthru
        _
      // Predicated region
      $region25: #{bottleneck_forward.4} parent=11 // pred_check
        %p171 = pneg %p121
      $region26: #{bottleneck_forward.4} parent=11 // pred_check_branch
        %173 = sbr.rel (%p171) target = $region28
      $region27: #{bottleneck_forward.4} parent=11 // pred_region
        _
      $region28: #{bottleneck_forward.4} parent=11 // pred_fallthru
        _
    $region12: #{bottleneck_forward.4} parent=5 // pred_fallthru
      _
    %p174 = scmp.lt.s32.totalorder %s11, 2
    // Predicated region
    $region29: #{bottleneck_forward.4} parent=5 // pred_check
      %p175 = pneg %p174
    $region30: #{bottleneck_forward.4} parent=5 // pred_check_branch
      %177 = sbr.rel (%p175) target = $region32
    $region31: #{bottleneck_forward.4} parent=5 // pred_region
      // Predicated region
      $region33: #{bottleneck_forward.4} parent=31 // pred_check
        %p178 = pneg %p31
      $region34: #{bottleneck_forward.4} parent=31 // pred_check_branch
        %180 = sbr.rel (%p178) target = $region36
      $region35: #{bottleneck_forward.4} parent=31 // pred_region
        %p181 = scmp.lt.s32.totalorder %s11, 1
        %s182 = scalar_select %p181, %s11, 1
        %s183 = smul.addr %s182, 32
        %s184 = smul.addr %s183, 4
        %s185 = scalar_lea.vmem %s0, %s184
      $region36: #{bottleneck_forward.4} parent=31 // pred_fallthru
        _
    $region32: #{bottleneck_forward.4} parent=5 // pred_fallthru
      _
    %p186 = scmp.le.s32.totalorder 1, %s11
    %p187 = scmp.lt.s32.totalorder %s11, 3
    %p188 = pnand %p186, %p187
    %p189 = pneg %p188
    // Predicated region
    $region37: #{bottleneck_forward.4} parent=5 // pred_check
      _
    $region38: #{bottleneck_forward.4} parent=5 // pred_check_branch
      %191 = sbr.rel (%p188) target = $region40
    $region39: #{bottleneck_forward.4} parent=5 // pred_region
      %s192 = ssub.s32 %s11, 1
      %p193 = scmp.lt.s32.totalorder %s16, 1
      %s194 = scalar_select %p193, %s16, 1
      %s195 = smul.addr %s194, 32
      %s196 = smul.addr %s195, 4
      %s197 = scalar_lea.vmem %s0, %s196
      %p198 = pneg %p37
      %p199 = pneg %p34
      %p200 = pneg %p58
      %p201 = pneg %p55
      %p202 = pneg %p79
      %p203 = pneg %p76
      %p204 = pneg %p100
      %p205 = pneg %p97
      %p206 = pneg %p121
      %p207 = pneg %p118
      %p208 = pneg %p147
      %p209 = pneg %p144
      %p210 = scmp.lt.s32.totalorder %s16, 1
      %s211 = scalar_select %p210, %s16, 1
      %s212 = smul.addr %s211, 32
      %s213 = smul.addr %s212, 4
      %s214 = scalar_lea.vmem %s5, %s213
      %p215 = scmp.lt.s32.totalorder %s16, 1
      %s216 = scalar_select %p215, %s16, 1
      %s217 = smul.addr %s216, 32
      %s218 = smul.addr %s217, 4
      %s219 = scalar_lea.vmem %s0, %s218
      %p220 = scmp.lt.s32.totalorder %s16, 1
      %s221 = scalar_select %p220, %s16, 1
      %s222 = smul.addr %s221, 32
      %s223 = smul.addr %s222, 4
      %s224 = scalar_lea.vmem %s5, %s223
      %v226 = vld [vmem:[%s219] sm:$0xf]
      %v227 = vld [vmem:[%s219 + $0x4] sm:$0xf]
      %v228 = vld [vmem:[%s219 + $0x8] sm:$0xf]
      %v229 = vld [vmem:[%s219 + $0xc] sm:$0xf]
      %v230 = vld [vmem:[%s219 + $0x10] sm:$0xf]
      %v231 = vld [vmem:[%s219 + $0x14] sm:$0xf]
      %v232 = vld [vmem:[%s219 + $0x18] sm:$0xf]
      %v233 = vld [vmem:[%s219 + $0x1c] sm:$0xf]
      %v234 = vld [vmem:[%s219 + $0x20] sm:$0xf]
      %v235 = vld [vmem:[%s219 + $0x24] sm:$0xf]
      %v236 = vld [vmem:[%s219 + $0x28] sm:$0xf]
      %v237 = vld [vmem:[%s219 + $0x2c] sm:$0xf]
      %v238 = vld [vmem:[%s219 + $0x30] sm:$0xf]
      %v239 = vld [vmem:[%s219 + $0x34] sm:$0xf]
      %v240 = vld [vmem:[%s219 + $0x38] sm:$0xf]
      %v241 = vld [vmem:[%s219 + $0x3c] sm:$0xf]
      %v242 = vld [vmem:[%s219 + $0x40] sm:$0xf]
      %v243 = vld [vmem:[%s219 + $0x44] sm:$0xf]
      %v244 = vld [vmem:[%s219 + $0x48] sm:$0xf]
      %v245 = vld [vmem:[%s219 + $0x4c] sm:$0xf]
      %v246 = vld [vmem:[%s219 + $0x50] sm:$0xf]
      %v247 = vld [vmem:[%s219 + $0x54] sm:$0xf]
      %v248 = vld [vmem:[%s219 + $0x58] sm:$0xf]
      %v249 = vld [vmem:[%s219 + $0x5c] sm:$0xf]
      %v250 = vld [vmem:[%s219 + $0x60] sm:$0xf]
      %v251 = vld [vmem:[%s219 + $0x64] sm:$0xf]
      %v252 = vld [vmem:[%s219 + $0x68] sm:$0xf]
      %v253 = vld [vmem:[%s219 + $0x6c] sm:$0xf]
      %v254 = vld [vmem:[%s219 + $0x70] sm:$0xf]
      %v255 = vld [vmem:[%s219 + $0x74] sm:$0xf]
      %v256 = vld [vmem:[%s219 + $0x78] sm:$0xf]
      %v257 = vld [vmem:[%s219 + $0x7c] sm:$0xf]
      %v290 = vunpack.c.l.b16 %v226
      %v291 = vunpack.c.l.b16 %v227
      %v292 = vunpack.c.l.b16 %v228
      %v293 = vunpack.c.l.b16 %v229
      %v294 = vunpack.c.l.b16 %v230
      %v295 = vunpack.c.l.b16 %v231
      %v296 = vunpack.c.l.b16 %v232
      %v297 = vunpack.c.l.b16 %v233
      %v298 = vunpack.c.l.b16 %v234
      %v299 = vunpack.c.l.b16 %v235
      %v300 = vunpack.c.l.b16 %v236
      %v301 = vunpack.c.l.b16 %v237
      %v302 = vunpack.c.l.b16 %v238
      %v303 = vunpack.c.l.b16 %v239
      %v304 = vunpack.c.l.b16 %v240
      %v305 = vunpack.c.l.b16 %v241
      %v306 = vunpack.c.l.b16 %v242
      %v307 = vunpack.c.l.b16 %v243
      %v308 = vunpack.c.l.b16 %v244
      %v309 = vunpack.c.l.b16 %v245
      %v310 = vunpack.c.l.b16 %v246
      %v311 = vunpack.c.l.b16 %v247
      %v312 = vunpack.c.l.b16 %v248
      %v313 = vunpack.c.l.b16 %v249
      %v314 = vunpack.c.l.b16 %v250
      %v315 = vunpack.c.l.b16 %v251
      %v316 = vunpack.c.l.b16 %v252
      %v317 = vunpack.c.l.b16 %v253
      %v318 = vunpack.c.l.b16 %v254
      %v319 = vunpack.c.l.b16 %v255
      %v320 = vunpack.c.l.b16 %v256
      %v321 = vunpack.c.l.b16 %v257
      %v322 = vpack.c.b16 %v291, %v290
      %v323 = vpack.c.b16 %v293, %v292
      %v324 = vpack.c.b16 %v295, %v294
      %v325 = vpack.c.b16 %v297, %v296
      %v326 = vpack.c.b16 %v299, %v298
      %v327 = vpack.c.b16 %v301, %v300
      %v328 = vpack.c.b16 %v303, %v302
      %v329 = vpack.c.b16 %v305, %v304
      %v330 = vpack.c.b16 %v307, %v306
      %v331 = vpack.c.b16 %v309, %v308
      %v332 = vpack.c.b16 %v311, %v310
      %v333 = vpack.c.b16 %v313, %v312
      %v334 = vpack.c.b16 %v315, %v314
      %v335 = vpack.c.b16 %v317, %v316
      %v336 = vpack.c.b16 %v319, %v318
      %v337 = vpack.c.b16 %v321, %v320
      %v339 = vshrl.u32 0, 16
      %v341 = vrot.slane %v339, 7
      %v342 = vshll.u32 0, 16
      %v344 = vor.u32 %v341, %v342
      %v346 = vshrl.u32 %v322, 16
      %v348 = vrot.slane %v346, 7
      %v349 = vshll.u32 %v322, 16
      %v351 = vor.u32 %v348, %v349
      %v353 = vshrl.u32 %v323, 16
      %v355 = vrot.slane %v353, 7
      %v356 = vshll.u32 %v323, 16
      %v358 = vor.u32 %v355, %v356
      %v360 = vshrl.u32 %v324, 16
      %v362 = vrot.slane %v360, 7
      %v363 = vshll.u32 %v324, 16
      %v365 = vor.u32 %v362, %v363
      %v367 = vshrl.u32 %v325, 16
      %v369 = vrot.slane %v367, 7
      %v370 = vshll.u32 %v325, 16
      %v372 = vor.u32 %v369, %v370
      %v374 = vshrl.u32 %v326, 16
      %v376 = vrot.slane %v374, 7
      %v377 = vshll.u32 %v326, 16
      %v379 = vor.u32 %v376, %v377
      %v381 = vshrl.u32 %v327, 16
      %v383 = vrot.slane %v381, 7
      %v384 = vshll.u32 %v327, 16
      %v386 = vor.u32 %v383, %v384
      %v388 = vshrl.u32 %v328, 16
      %v390 = vrot.slane %v388, 7
      %v391 = vshll.u32 %v328, 16
      %v393 = vor.u32 %v390, %v391
      %v395 = vshrl.u32 %v329, 16
      %v397 = vrot.slane %v395, 7
      %v398 = vshll.u32 %v329, 16
      %v400 = vor.u32 %v397, %v398
      %v402 = vshrl.u32 %v330, 16
      %v404 = vrot.slane %v402, 7
      %v405 = vshll.u32 %v330, 16
      %v407 = vor.u32 %v404, %v405
      %v409 = vshrl.u32 %v331, 16
      %v411 = vrot.slane %v409, 7
      %v412 = vshll.u32 %v331, 16
      %v414 = vor.u32 %v411, %v412
      %v416 = vshrl.u32 %v332, 16
      %v418 = vrot.slane %v416, 7
      %v419 = vshll.u32 %v332, 16
      %v421 = vor.u32 %v418, %v419
      %v423 = vshrl.u32 %v333, 16
      %v425 = vrot.slane %v423, 7
      %v426 = vshll.u32 %v333, 16
      %v428 = vor.u32 %v425, %v426
      %v430 = vshrl.u32 %v334, 16
      %v432 = vrot.slane %v430, 7
      %v433 = vshll.u32 %v334, 16
      %v435 = vor.u32 %v432, %v433
      %v437 = vshrl.u32 %v335, 16
      %v439 = vrot.slane %v437, 7
      %v440 = vshll.u32 %v335, 16
      %v442 = vor.u32 %v439, %v440
      %v444 = vshrl.u32 %v336, 16
      %v446 = vrot.slane %v444, 7
      %v447 = vshll.u32 %v336, 16
      %v449 = vor.u32 %v446, %v447
      %v451 = vshrl.u32 %v337, 16
      %v453 = vrot.slane %v451, 7
      %v454 = vshll.u32 %v337, 16
      %v456 = vor.u32 %v453, %v454
      %vm491 = vcmask 1040384
      %vm492 = vsmask.f32 256
      %vm493 = vmand %vm491, %vm492
      %v494 = vsel %vm493, 0, %v344
      %v495 = vsel %vm493, 0, %v351
      %v496 = vsel %vm493, 0, %v358
      %v497 = vsel %vm493, 0, %v365
      %v498 = vsel %vm493, 0, %v372
      %v499 = vsel %vm493, 0, %v379
      %v500 = vsel %vm493, 0, %v386
      %v501 = vsel %vm493, 0, %v393
      %v502 = vsel %vm493, 0, %v400
      %v503 = vsel %vm493, 0, %v407
      %v504 = vsel %vm493, 0, %v414
      %v505 = vsel %vm493, 0, %v421
      %v506 = vsel %vm493, 0, %v428
      %v507 = vsel %vm493, 0, %v435
      %v508 = vsel %vm493, 0, %v442
      %v509 = vsel %vm493, 0, %v449
      %v510 = vsel %vm493, 0, %v456
      %v511 = vsel %vm493, %v341, 0
      %v512 = vsel %vm493, %v348, 0
      %v513 = vsel %vm493, %v355, 0
      %v514 = vsel %vm493, %v362, 0
      %v515 = vsel %vm493, %v369, 0
      %v516 = vsel %vm493, %v376, 0
      %v517 = vsel %vm493, %v383, 0
      %v518 = vsel %vm493, %v390, 0
      %v519 = vsel %vm493, %v397, 0
      %v520 = vsel %vm493, %v404, 0
      %v521 = vsel %vm493, %v411, 0
      %v522 = vsel %vm493, %v418, 0
      %v523 = vsel %vm493, %v425, 0
      %v524 = vsel %vm493, %v432, 0
      %v525 = vsel %vm493, %v439, 0
      %v526 = vsel %vm493, %v446, 0
      %v527 = vsel %vm493, %v453, 0
      %v528 = vld [vmem:[%s1] sm:$0xf]
      %v529 = vld [vmem:[%s1 + $0x4] sm:$0xf]
      %v530 = vld [vmem:[%s1 + $0x8] sm:$0xf]
      %v531 = vld [vmem:[%s1 + $0xc] sm:$0xf]
      %v532 = vld [vmem:[%s1 + $0x10] sm:$0xf]
      %v533 = vld [vmem:[%s1 + $0x14] sm:$0xf]
      %v534 = vld [vmem:[%s1 + $0x18] sm:$0xf]
      %v535 = vld [vmem:[%s1 + $0x1c] sm:$0xf]
      %v536 = vld [vmem:[%s1 + $0x20] sm:$0xf]
      %v537 = vld [vmem:[%s1 + $0x24] sm:$0xf]
      %v538 = vld [vmem:[%s1 + $0x28] sm:$0xf]
      %v539 = vld [vmem:[%s1 + $0x2c] sm:$0xf]
      %v540 = vld [vmem:[%s1 + $0x30] sm:$0xf]
      %v541 = vld [vmem:[%s1 + $0x34] sm:$0xf]
      %v542 = vld [vmem:[%s1 + $0x38] sm:$0xf]
      %v543 = vld [vmem:[%s1 + $0x3c] sm:$0xf]
      %v544 = vld [vmem:[%s1 + $0x40] sm:$0xf]
      %v545 = vld [vmem:[%s1 + $0x44] sm:$0xf]
      %v546 = vld [vmem:[%s1 + $0x48] sm:$0xf]
      %v547 = vld [vmem:[%s1 + $0x4c] sm:$0xf]
      %v548 = vld [vmem:[%s1 + $0x50] sm:$0xf]
      %v549 = vld [vmem:[%s1 + $0x54] sm:$0xf]
      %v550 = vld [vmem:[%s1 + $0x58] sm:$0xf]
      %v551 = vld [vmem:[%s1 + $0x5c] sm:$0xf]
      %v552 = vld [vmem:[%s1 + $0x60] sm:$0xf]
      %v553 = vld [vmem:[%s1 + $0x64] sm:$0xf]
      %v554 = vld [vmem:[%s1 + $0x68] sm:$0xf]
      %v555 = vld [vmem:[%s1 + $0x6c] sm:$0xf]
      %v556 = vld [vmem:[%s1 + $0x70] sm:$0xf]
      %v557 = vld [vmem:[%s1 + $0x74] sm:$0xf]
      %v558 = vld [vmem:[%s1 + $0x78] sm:$0xf]
      %v559 = vld [vmem:[%s1 + $0x7c] sm:$0xf]
      %v560 = vld [vmem:[%s1 + $0x80] sm:$0xf]
      %v561 = vld [vmem:[%s1 + $0x84] sm:$0xf]
      %v562 = vld [vmem:[%s1 + $0x88] sm:$0xf]
      %v563 = vld [vmem:[%s1 + $0x8c] sm:$0xf]
      %v564 = vld [vmem:[%s1 + $0x90] sm:$0xf]
      %v565 = vld [vmem:[%s1 + $0x94] sm:$0xf]
      %v566 = vld [vmem:[%s1 + $0x98] sm:$0xf]
      %v567 = vld [vmem:[%s1 + $0x9c] sm:$0xf]
      %v568 = vld [vmem:[%s1 + $0xa0] sm:$0xf]
      %v569 = vld [vmem:[%s1 + $0xa4] sm:$0xf]
      %v570 = vld [vmem:[%s1 + $0xa8] sm:$0xf]
      %v571 = vld [vmem:[%s1 + $0xac] sm:$0xf]
      %v572 = vld [vmem:[%s1 + $0xb0] sm:$0xf]
      %v573 = vld [vmem:[%s1 + $0xb4] sm:$0xf]
      %v574 = vld [vmem:[%s1 + $0xb8] sm:$0xf]
      %v575 = vld [vmem:[%s1 + $0xbc] sm:$0xf]
      %vm576 = vsmask.f32 7424
      %v578 = vshrl.u32 %v494, 16
      %v580 = vshll.u32 %v494, 16
      %v582 = vrot.slane %v580, 1
      %v583 = vor.u32 %v578, %v582
      %v585 = vshll.u32 %v511, 16
      %v587 = vrot.slane %v585, 1
      %v588 = vsel %vm576, %v583, %v587
      %v590 = vshrl.u32 %v495, 16
      %v592 = vshll.u32 %v495, 16
      %v594 = vrot.slane %v592, 1
      %v595 = vor.u32 %v590, %v594
      %v597 = vshll.u32 %v512, 16
      %v599 = vrot.slane %v597, 1
      %v600 = vsel %vm576, %v595, %v599
      %v602 = vshrl.u32 %v496, 16
      %v604 = vshll.u32 %v496, 16
      %v606 = vrot.slane %v604, 1
      %v607 = vor.u32 %v602, %v606
      %v609 = vshll.u32 %v513, 16
      %v611 = vrot.slane %v609, 1
      %v612 = vsel %vm576, %v607, %v611
      %v614 = vshrl.u32 %v497, 16
      %v616 = vshll.u32 %v497, 16
      %v618 = vrot.slane %v616, 1
      %v619 = vor.u32 %v614, %v618
      %v621 = vshll.u32 %v514, 16
      %v623 = vrot.slane %v621, 1
      %v624 = vsel %vm576, %v619, %v623
      %v626 = vshrl.u32 %v498, 16
      %v628 = vshll.u32 %v498, 16
      %v630 = vrot.slane %v628, 1
      %v631 = vor.u32 %v626, %v630
      %v633 = vshll.u32 %v515, 16
      %v635 = vrot.slane %v633, 1
      %v636 = vsel %vm576, %v631, %v635
      %v638 = vshrl.u32 %v499, 16
      %v640 = vshll.u32 %v499, 16
      %v642 = vrot.slane %v640, 1
      %v643 = vor.u32 %v638, %v642
      %v645 = vshll.u32 %v516, 16
      %v647 = vrot.slane %v645, 1
      %v648 = vsel %vm576, %v643, %v647
      %v650 = vshrl.u32 %v500, 16
      %v652 = vshll.u32 %v500, 16
      %v654 = vrot.slane %v652, 1
      %v655 = vor.u32 %v650, %v654
      %v657 = vshll.u32 %v517, 16
      %v659 = vrot.slane %v657, 1
      %v660 = vsel %vm576, %v655, %v659
      %v662 = vshrl.u32 %v501, 16
      %v664 = vshll.u32 %v501, 16
      %v666 = vrot.slane %v664, 1
      %v667 = vor.u32 %v662, %v666
      %v669 = vshll.u32 %v518, 16
      %v671 = vrot.slane %v669, 1
      %v672 = vsel %vm576, %v667, %v671
      %v674 = vshrl.u32 %v502, 16
      %v676 = vshll.u32 %v502, 16
      %v678 = vrot.slane %v676, 1
      %v679 = vor.u32 %v674, %v678
      %v681 = vshll.u32 %v519, 16
      %v683 = vrot.slane %v681, 1
      %v684 = vsel %vm576, %v679, %v683
      %v686 = vshrl.u32 %v503, 16
      %v688 = vshll.u32 %v503, 16
      %v690 = vrot.slane %v688, 1
      %v691 = vor.u32 %v686, %v690
      %v693 = vshll.u32 %v520, 16
      %v695 = vrot.slane %v693, 1
      %v696 = vsel %vm576, %v691, %v695
      %v698 = vshrl.u32 %v504, 16
      %v700 = vshll.u32 %v504, 16
      %v702 = vrot.slane %v700, 1
      %v703 = vor.u32 %v698, %v702
      %v705 = vshll.u32 %v521, 16
      %v707 = vrot.slane %v705, 1
      %v708 = vsel %vm576, %v703, %v707
      %v710 = vshrl.u32 %v505, 16
      %v712 = vshll.u32 %v505, 16
      %v714 = vrot.slane %v712, 1
      %v715 = vor.u32 %v710, %v714
      %v717 = vshll.u32 %v522, 16
      %v719 = vrot.slane %v717, 1
      %v720 = vsel %vm576, %v715, %v719
      %v722 = vshrl.u32 %v506, 16
      %v724 = vshll.u32 %v506, 16
      %v726 = vrot.slane %v724, 1
      %v727 = vor.u32 %v722, %v726
      %v729 = vshll.u32 %v523, 16
      %v731 = vrot.slane %v729, 1
      %v732 = vsel %vm576, %v727, %v731
      %v734 = vshrl.u32 %v507, 16
      %v736 = vshll.u32 %v507, 16
      %v738 = vrot.slane %v736, 1
      %v739 = vor.u32 %v734, %v738
      %v741 = vshll.u32 %v524, 16
      %v743 = vrot.slane %v741, 1
      %v744 = vsel %vm576, %v739, %v743
      %v746 = vshrl.u32 %v508, 16
      %v748 = vshll.u32 %v508, 16
      %v750 = vrot.slane %v748, 1
      %v751 = vor.u32 %v746, %v750
      %v753 = vshll.u32 %v525, 16
      %v755 = vrot.slane %v753, 1
      %v756 = vsel %vm576, %v751, %v755
      %v758 = vshrl.u32 %v509, 16
      %v760 = vshll.u32 %v509, 16
      %v762 = vrot.slane %v760, 1
      %v763 = vor.u32 %v758, %v762
      %v765 = vshll.u32 %v526, 16
      %v767 = vrot.slane %v765, 1
      %v768 = vsel %vm576, %v763, %v767
      %v770 = vshrl.u32 %v510, 16
      %v772 = vshll.u32 %v510, 16
      %v774 = vrot.slane %v772, 1
      %v775 = vor.u32 %v770, %v774
      %v777 = vshll.u32 %v527, 16
      %v779 = vrot.slane %v777, 1
      %v780 = vsel %vm576, %v775, %v779
      %v798 = vld [vmem:[%s2] sm:$0xf]
      %v799 = vld [vmem:[%s2 + $0x4] sm:$0xf]
      %v800 = vld [vmem:[%s2 + $0x8] sm:$0xf]
      %v801 = vld [vmem:[%s2 + $0xc] sm:$0xf]
      %v802 = vld [vmem:[%s2 + $0x10] sm:$0xf]
      %v803 = vld [vmem:[%s2 + $0x14] sm:$0xf]
      %v804 = vld [vmem:[%s2 + $0x18] sm:$0xf]
      %v805 = vld [vmem:[%s2 + $0x1c] sm:$0xf]
      %v806 = vld [vmem:[%s2 + $0x20] sm:$0xf]
      %v807 = vld [vmem:[%s2 + $0x24] sm:$0xf]
      %v808 = vld [vmem:[%s2 + $0x28] sm:$0xf]
      %v809 = vld [vmem:[%s2 + $0x2c] sm:$0xf]
      %v810 = vld [vmem:[%s2 + $0x30] sm:$0xf]
      %v811 = vld [vmem:[%s2 + $0x34] sm:$0xf]
      %v812 = vld [vmem:[%s2 + $0x38] sm:$0xf]
      %v813 = vld [vmem:[%s2 + $0x3c] sm:$0xf]
      %v814 = vld [vmem:[%s2 + $0x40] sm:$0xf]
      %v815 = vld [vmem:[%s2 + $0x44] sm:$0xf]
      %v816 = vld [vmem:[%s2 + $0x48] sm:$0xf]
      %v817 = vld [vmem:[%s2 + $0x4c] sm:$0xf]
      %v818 = vld [vmem:[%s2 + $0x50] sm:$0xf]
      %v819 = vld [vmem:[%s2 + $0x54] sm:$0xf]
      %v820 = vld [vmem:[%s2 + $0x58] sm:$0xf]
      %v821 = vld [vmem:[%s2 + $0x5c] sm:$0xf]
      %v822 = vld [vmem:[%s2 + $0x60] sm:$0xf]
      %v823 = vld [vmem:[%s2 + $0x64] sm:$0xf]
      %v824 = vld [vmem:[%s2 + $0x68] sm:$0xf]
      %v825 = vld [vmem:[%s2 + $0x6c] sm:$0xf]
      %v826 = vld [vmem:[%s2 + $0x70] sm:$0xf]
      %v827 = vld [vmem:[%s2 + $0x74] sm:$0xf]
      %v828 = vld [vmem:[%s2 + $0x78] sm:$0xf]
      %v829 = vld [vmem:[%s2 + $0x7c] sm:$0xf]
      %v830 = vld [vmem:[%s2 + $0x80] sm:$0xf]
      %v831 = vld [vmem:[%s2 + $0x84] sm:$0xf]
      %v832 = vld [vmem:[%s2 + $0x88] sm:$0xf]
      %v833 = vld [vmem:[%s2 + $0x8c] sm:$0xf]
      %v834 = vld [vmem:[%s2 + $0x90] sm:$0xf]
      %v835 = vld [vmem:[%s2 + $0x94] sm:$0xf]
      %v836 = vld [vmem:[%s2 + $0x98] sm:$0xf]
      %v837 = vld [vmem:[%s2 + $0x9c] sm:$0xf]
      %v838 = vld [vmem:[%s2 + $0xa0] sm:$0xf]
      %v839 = vld [vmem:[%s2 + $0xa4] sm:$0xf]
      %v840 = vld [vmem:[%s2 + $0xa8] sm:$0xf]
      %v841 = vld [vmem:[%s2 + $0xac] sm:$0xf]
      %v842 = vld [vmem:[%s2 + $0xb0] sm:$0xf]
      %v843 = vld [vmem:[%s2 + $0xb4] sm:$0xf]
      %v844 = vld [vmem:[%s2 + $0xb8] sm:$0xf]
      %v845 = vld [vmem:[%s2 + $0xbc] sm:$0xf]
      %v894 = vunpack.c.l.b16 %v798
      %v895 = vunpack.c.l.b16 %v799
      %v896 = vunpack.c.l.b16 %v800
      %v897 = vunpack.c.l.b16 %v801
      %v898 = vunpack.c.l.b16 %v802
      %v899 = vunpack.c.l.b16 %v803
      %v900 = vunpack.c.l.b16 %v804
      %v901 = vunpack.c.l.b16 %v805
      %v902 = vunpack.c.l.b16 %v806
      %v903 = vunpack.c.l.b16 %v807
      %v904 = vunpack.c.l.b16 %v808
      %v905 = vunpack.c.l.b16 %v809
      %v906 = vunpack.c.l.b16 %v810
      %v907 = vunpack.c.l.b16 %v811
      %v908 = vunpack.c.l.b16 %v812
      %v909 = vunpack.c.l.b16 %v813
      %v910 = vunpack.c.l.b16 %v814
      %v911 = vunpack.c.l.b16 %v815
      %v912 = vunpack.c.l.b16 %v816
      %v913 = vunpack.c.l.b16 %v817
      %v914 = vunpack.c.l.b16 %v818
      %v915 = vunpack.c.l.b16 %v819
      %v916 = vunpack.c.l.b16 %v820
      %v917 = vunpack.c.l.b16 %v821
      %v918 = vunpack.c.l.b16 %v822
      %v919 = vunpack.c.l.b16 %v823
      %v920 = vunpack.c.l.b16 %v824
      %v921 = vunpack.c.l.b16 %v825
      %v922 = vunpack.c.l.b16 %v826
      %v923 = vunpack.c.l.b16 %v827
      %v924 = vunpack.c.l.b16 %v828
      %v925 = vunpack.c.l.b16 %v829
      %v926 = vunpack.c.l.b16 %v830
      %v927 = vunpack.c.l.b16 %v831
      %v928 = vunpack.c.l.b16 %v832
      %v929 = vunpack.c.l.b16 %v833
      %v930 = vunpack.c.l.b16 %v834
      %v931 = vunpack.c.l.b16 %v835
      %v932 = vunpack.c.l.b16 %v836
      %v933 = vunpack.c.l.b16 %v837
      %v934 = vunpack.c.l.b16 %v838
      %v935 = vunpack.c.l.b16 %v839
      %v936 = vunpack.c.l.b16 %v840
      %v937 = vunpack.c.l.b16 %v841
      %v938 = vunpack.c.l.b16 %v842
      %v939 = vunpack.c.l.b16 %v843
      %v940 = vunpack.c.l.b16 %v844
      %v941 = vunpack.c.l.b16 %v845
      %v942 = vpack.c.b16 %v895, %v894
      %v943 = vpack.c.b16 %v897, %v896
      %v944 = vpack.c.b16 %v899, %v898
      %v945 = vpack.c.b16 %v901, %v900
      %v946 = vpack.c.b16 %v903, %v902
      %v947 = vpack.c.b16 %v905, %v904
      %v948 = vpack.c.b16 %v907, %v906
      %v949 = vpack.c.b16 %v909, %v908
      %v950 = vpack.c.b16 %v911, %v910
      %v951 = vpack.c.b16 %v913, %v912
      %v952 = vpack.c.b16 %v915, %v914
      %v953 = vpack.c.b16 %v917, %v916
      %v954 = vpack.c.b16 %v919, %v918
      %v955 = vpack.c.b16 %v921, %v920
      %v956 = vpack.c.b16 %v923, %v922
      %v957 = vpack.c.b16 %v925, %v924
      %v958 = vpack.c.b16 %v927, %v926
      %v959 = vpack.c.b16 %v929, %v928
      %v960 = vpack.c.b16 %v931, %v930
      %v961 = vpack.c.b16 %v933, %v932
      %v962 = vpack.c.b16 %v935, %v934
      %v963 = vpack.c.b16 %v937, %v936
      %v964 = vpack.c.b16 %v939, %v938
      %v965 = vpack.c.b16 %v941, %v940
      %990 = vmatprep.subr.bf16.mxu0 0
      %991 = vmatpush1.bf16.msra.mxu0 %v949
      %992 = vmatprep.subr.bf16.mxu0 0
      %993 = vmatpush1.bf16.msra.mxu0 %v948
      %994 = vmatprep.subr.bf16.mxu0 0
      %995 = vmatpush1.bf16.msra.mxu0 %v947
      %996 = vmatprep.subr.bf16.mxu0 0
      %997 = vmatpush1.bf16.msra.mxu0 %v946
      %998 = vmatprep.subr.bf16.mxu0 0
      %999 = vmatpush1.bf16.msra.mxu0 %v945
      %1000 = vmatprep.subr.bf16.mxu0 0
      %1001 = vmatpush1.bf16.msra.mxu0 %v944
      %1002 = vmatprep.subr.bf16.mxu0 0
      %1003 = vmatpush1.bf16.msra.mxu0 %v943
      %1004 = vmatprep.subr.bf16.mxu0 0
      %1005 = vmatpush1.bf16.msra.mxu0 %v942
      %1006 = vmatprep.subr.bf16.mxu0 0
      %1007 = vmatpush2.bf16.msra.mxu0 %v957
      %1008 = vmatprep.subr.bf16.mxu0 0
      %1009 = vmatpush2.bf16.msra.mxu0 %v956
      %1010 = vmatprep.subr.bf16.mxu0 0
      %1011 = vmatpush2.bf16.msra.mxu0 %v955
      %1012 = vmatprep.subr.bf16.mxu0 0
      %1013 = vmatpush2.bf16.msra.mxu0 %v954
      %1014 = vmatprep.subr.bf16.mxu0 0
      %1015 = vmatpush2.bf16.msra.mxu0 %v953
      %1016 = vmatprep.subr.bf16.mxu0 0
      %1017 = vmatpush2.bf16.msra.mxu0 %v952
      %1018 = vmatprep.subr.bf16.mxu0 0
      %1019 = vmatpush2.bf16.msra.mxu0 %v951
      %1020 = vmatprep.subr.bf16.mxu0 0
      %1021 = vmatpush2.bf16.msra.mxu0 %v950
      %1022 = vmatprep.mubr.bf16.mxu0 %v600
      %1023 = vmatmul.mubr.bf16.gmra.mxu0 %v588
      %v1024 = vpop.f32.mrf.mxu0
      %v1025 = vadd.f32 0.0, %v1024
      %v1026 = vpop.f32.mrf.mxu0
      %v1027 = vpop.f32.mrf.mxu0
      %v1028 = vadd.f32 0.0, %v1027
      %v1029 = vpop.f32.mrf.mxu0
      %1030 = vmatprep.mubr.bf16.mxu0 %v612
      %1031 = vmatmul.mubr.bf16.gmra.mxu0 %v600
      %v1032 = vpop.f32.mrf.mxu0
      %v1033 = vadd.f32 0.0, %v1032
      %v1034 = vpop.f32.mrf.mxu0
      %v1035 = vpop.f32.mrf.mxu0
      %v1036 = vadd.f32 0.0, %v1035
      %v1037 = vpop.f32.mrf.mxu0
      %1038 = vmatprep.mubr.bf16.mxu0 %v624
      %1039 = vmatmul.mubr.bf16.gmra.mxu0 %v612
      %v1040 = vpop.f32.mrf.mxu0
      %v1041 = vadd.f32 0.0, %v1040
      %v1042 = vpop.f32.mrf.mxu0
      %v1043 = vpop.f32.mrf.mxu0
      %v1044 = vadd.f32 0.0, %v1043
      %v1045 = vpop.f32.mrf.mxu0
      %1046 = vmatprep.mubr.bf16.mxu0 %v636
      %1047 = vmatmul.mubr.bf16.gmra.mxu0 %v624
      %v1048 = vpop.f32.mrf.mxu0
      %v1049 = vadd.f32 0.0, %v1048
      %v1050 = vpop.f32.mrf.mxu0
      %v1051 = vpop.f32.mrf.mxu0
      %v1052 = vadd.f32 0.0, %v1051
      %v1053 = vpop.f32.mrf.mxu0
      %1054 = vmatprep.mubr.bf16.mxu0 %v648
      %1055 = vmatmul.mubr.bf16.gmra.mxu0 %v636
      %v1056 = vpop.f32.mrf.mxu0
      %v1057 = vadd.f32 0.0, %v1056
      %v1058 = vpop.f32.mrf.mxu0
      %v1059 = vpop.f32.mrf.mxu0
      %v1060 = vadd.f32 0.0, %v1059
      %v1061 = vpop.f32.mrf.mxu0
      %1062 = vmatprep.mubr.bf16.mxu0 %v660
      %1063 = vmatmul.mubr.bf16.gmra.mxu0 %v648
      %v1064 = vpop.f32.mrf.mxu0
      %v1065 = vadd.f32 0.0, %v1064
      %v1066 = vpop.f32.mrf.mxu0
      %v1067 = vpop.f32.mrf.mxu0
      %v1068 = vadd.f32 0.0, %v1067
      %v1069 = vpop.f32.mrf.mxu0
      %1070 = vmatprep.mubr.bf16.mxu0 %v672
      %1071 = vmatmul.mubr.bf16.gmra.mxu0 %v660
      %v1072 = vpop.f32.mrf.mxu0
      %v1073 = vadd.f32 0.0, %v1072
      %v1074 = vpop.f32.mrf.mxu0
      %v1075 = vpop.f32.mrf.mxu0
      %v1076 = vadd.f32 0.0, %v1075
      %v1077 = vpop.f32.mrf.mxu0
      %1078 = vmatprep.mubr.bf16.mxu0 %v684
      %1079 = vmatmul.mubr.bf16.gmra.mxu0 %v672
      %v1080 = vpop.f32.mrf.mxu0
      %v1081 = vadd.f32 0.0, %v1080
      %v1082 = vpop.f32.mrf.mxu0
      %v1083 = vpop.f32.mrf.mxu0
      %v1084 = vadd.f32 0.0, %v1083
      %v1085 = vpop.f32.mrf.mxu0
      %1086 = vmatprep.mubr.bf16.mxu0 %v696
      %1087 = vmatmul.mubr.bf16.gmra.mxu0 %v684
      %v1088 = vpop.f32.mrf.mxu0
      %v1089 = vadd.f32 0.0, %v1088
      %v1090 = vpop.f32.mrf.mxu0
      %v1091 = vpop.f32.mrf.mxu0
      %v1092 = vadd.f32 0.0, %v1091
      %v1093 = vpop.f32.mrf.mxu0
      %1094 = vmatprep.mubr.bf16.mxu0 %v708
      %1095 = vmatmul.mubr.bf16.gmra.mxu0 %v696
      %v1096 = vpop.f32.mrf.mxu0
      %v1097 = vadd.f32 0.0, %v1096
      %v1098 = vpop.f32.mrf.mxu0
      %v1099 = vpop.f32.mrf.mxu0
      %v1100 = vadd.f32 0.0, %v1099
      %v1101 = vpop.f32.mrf.mxu0
      %1102 = vmatprep.mubr.bf16.mxu0 %v720
      %1103 = vmatmul.mubr.bf16.gmra.mxu0 %v708
      %v1104 = vpop.f32.mrf.mxu0
      %v1105 = vadd.f32 0.0, %v1104
      %v1106 = vpop.f32.mrf.mxu0
      %v1107 = vpop.f32.mrf.mxu0
      %v1108 = vadd.f32 0.0, %v1107
      %v1109 = vpop.f32.mrf.mxu0
      %1110 = vmatprep.mubr.bf16.mxu0 %v732
      %1111 = vmatmul.mubr.bf16.gmra.mxu0 %v720
      %v1112 = vpop.f32.mrf.mxu0
      %v1113 = vadd.f32 0.0, %v1112
      %v1114 = vpop.f32.mrf.mxu0
      %v1115 = vpop.f32.mrf.mxu0
      %v1116 = vadd.f32 0.0, %v1115
      %v1117 = vpop.f32.mrf.mxu0
      %1118 = vmatprep.mubr.bf16.mxu0 %v744
      %1119 = vmatmul.mubr.bf16.gmra.mxu0 %v732
      %v1120 = vpop.f32.mrf.mxu0
      %v1121 = vadd.f32 0.0, %v1120
      %v1122 = vpop.f32.mrf.mxu0
      %v1123 = vpop.f32.mrf.mxu0
      %v1124 = vadd.f32 0.0, %v1123
      %v1125 = vpop.f32.mrf.mxu0
      %1126 = vmatprep.mubr.bf16.mxu0 %v756
      %1127 = vmatmul.mubr.bf16.gmra.mxu0 %v744
      %v1128 = vpop.f32.mrf.mxu0
      %v1129 = vadd.f32 0.0, %v1128
      %v1130 = vpop.f32.mrf.mxu0
      %v1131 = vpop.f32.mrf.mxu0
      %v1132 = vadd.f32 0.0, %v1131
      %v1133 = vpop.f32.mrf.mxu0
      %1134 = vmatprep.mubr.bf16.mxu0 %v768
      %1135 = vmatmul.mubr.bf16.gmra.mxu0 %v756
      %v1136 = vpop.f32.mrf.mxu0
      %v1137 = vadd.f32 0.0, %v1136
      %v1138 = vpop.f32.mrf.mxu0
      %v1139 = vpop.f32.mrf.mxu0
      %v1140 = vadd.f32 0.0, %v1139
      %v1141 = vpop.f32.mrf.mxu0
      %1142 = vmatprep.mubr.bf16.mxu0 %v780
      %1143 = vmatmul.mubr.bf16.gmra.mxu0 %v768
      %v1144 = vpop.f32.mrf.mxu0
      %v1145 = vadd.f32 0.0, %v1144
      %v1146 = vpop.f32.mrf.mxu0
      %v1147 = vpop.f32.mrf.mxu0
      %v1148 = vadd.f32 0.0, %v1147
      %v1149 = vpop.f32.mrf.mxu0
      %1150 = vdwg.mxu0
      %1151 = vmatprep.subr.bf16.mxu0 0
      %1152 = vmatpush1.bf16.msra.mxu0 %v965
      %1153 = vmatprep.subr.bf16.mxu0 0
      %1154 = vmatpush1.bf16.msra.mxu0 %v964
      %1155 = vmatprep.subr.bf16.mxu0 0
      %1156 = vmatpush1.bf16.msra.mxu0 %v963
      %1157 = vmatprep.subr.bf16.mxu0 0
      %1158 = vmatpush1.bf16.msra.mxu0 %v962
      %1159 = vmatprep.subr.bf16.mxu0 0
      %1160 = vmatpush1.bf16.msra.mxu0 %v961
      %1161 = vmatprep.subr.bf16.mxu0 0
      %1162 = vmatpush1.bf16.msra.mxu0 %v960
      %1163 = vmatprep.subr.bf16.mxu0 0
      %1164 = vmatpush1.bf16.msra.mxu0 %v959
      %1165 = vmatprep.subr.bf16.mxu0 0
      %1166 = vmatpush1.bf16.msra.mxu0 %v958
      %1167 = vmatprep.subr.bf16.mxu0 0
      %1168 = vmatpush2.bf16.msra.mxu0 0
      %1169 = vmatprep.subr.bf16.mxu0 0
      %1170 = vmatpush2.bf16.msra.mxu0 0
      %1171 = vmatprep.subr.bf16.mxu0 0
      %1172 = vmatpush2.bf16.msra.mxu0 0
      %1173 = vmatprep.subr.bf16.mxu0 0
      %1174 = vmatpush2.bf16.msra.mxu0 0
      %1175 = vmatprep.subr.bf16.mxu0 0
      %1176 = vmatpush2.bf16.msra.mxu0 0
      %1177 = vmatprep.subr.bf16.mxu0 0
      %1178 = vmatpush2.bf16.msra.mxu0 0
      %1179 = vmatprep.subr.bf16.mxu0 0
      %1180 = vmatpush2.bf16.msra.mxu0 0
      %1181 = vmatprep.subr.bf16.mxu0 0
      %1182 = vmatpush2.bf16.msra.mxu0 0
      %1183 = vmatprep.mubr.bf16.mxu0 0
      %1184 = vmatmul.mubr.bf16.gmra.mxu0 %v612
      %v1185 = vpop.f32.mrf.mxu0
      %v1186 = vadd.f32 %v1025, %v1185
      %v1187 = vpop.f32.mrf.mxu0
      %v1188 = vpop.f32.mrf.mxu0
      %v1189 = vadd.f32 %v1028, %v1188
      %v1190 = vpop.f32.mrf.mxu0
      %1191 = vmatprep.mubr.bf16.mxu0 0
      %1192 = vmatmul.mubr.bf16.gmra.mxu0 %v624
      %v1193 = vpop.f32.mrf.mxu0
      %v1194 = vadd.f32 %v1033, %v1193
      %v1195 = vpop.f32.mrf.mxu0
      %v1196 = vpop.f32.mrf.mxu0
      %v1197 = vadd.f32 %v1036, %v1196
      %v1198 = vpop.f32.mrf.mxu0
      %1199 = vmatprep.mubr.bf16.mxu0 0
      %1200 = vmatmul.mubr.bf16.gmra.mxu0 %v636
      %v1201 = vpop.f32.mrf.mxu0
      %v1202 = vadd.f32 %v1041, %v1201
      %v1203 = vpop.f32.mrf.mxu0
      %v1204 = vpop.f32.mrf.mxu0
      %v1205 = vadd.f32 %v1044, %v1204
      %v1206 = vpop.f32.mrf.mxu0
      %1207 = vmatprep.mubr.bf16.mxu0 0
      %1208 = vmatmul.mubr.bf16.gmra.mxu0 %v648
      %v1209 = vpop.f32.mrf.mxu0
      %v1210 = vadd.f32 %v1049, %v1209
      %v1211 = vpop.f32.mrf.mxu0
      %v1212 = vpop.f32.mrf.mxu0
      %v1213 = vadd.f32 %v1052, %v1212
      %v1214 = vpop.f32.mrf.mxu0
      %1215 = vmatprep.mubr.bf16.mxu0 0
      %1216 = vmatmul.mubr.bf16.gmra.mxu0 %v660
      %v1217 = vpop.f32.mrf.mxu0
      %v1218 = vadd.f32 %v1057, %v1217
      %v1219 = vpop.f32.mrf.mxu0
      %v1220 = vpop.f32.mrf.mxu0
      %v1221 = vadd.f32 %v1060, %v1220
      %v1222 = vpop.f32.mrf.mxu0
      %1223 = vmatprep.mubr.bf16.mxu0 0
      %1224 = vmatmul.mubr.bf16.gmra.mxu0 %v672
      %v1225 = vpop.f32.mrf.mxu0
      %v1226 = vadd.f32 %v1065, %v1225
      %v1227 = vpop.f32.mrf.mxu0
      %v1228 = vpop.f32.mrf.mxu0
      %v1229 = vadd.f32 %v1068, %v1228
      %v1230 = vpop.f32.mrf.mxu0
      %1231 = vmatprep.mubr.bf16.mxu0 0
      %1232 = vmatmul.mubr.bf16.gmra.mxu0 %v684
      %v1233 = vpop.f32.mrf.mxu0
      %v1234 = vadd.f32 %v1073, %v1233
      %v1235 = vpop.f32.mrf.mxu0
      %v1236 = vpop.f32.mrf.mxu0
      %v1237 = vadd.f32 %v1076, %v1236
      %v1238 = vpop.f32.mrf.mxu0
      %1239 = vmatprep.mubr.bf16.mxu0 0
      %1240 = vmatmul.mubr.bf16.gmra.mxu0 %v696
      %v1241 = vpop.f32.mrf.mxu0
      %v1242 = vadd.f32 %v1081, %v1241
      %v1243 = vpop.f32.mrf.mxu0
      %v1244 = vpop.f32.mrf.mxu0
      %v1245 = vadd.f32 %v1084, %v1244
      %v1246 = vpop.f32.mrf.mxu0
      %1247 = vmatprep.mubr.bf16.mxu0 0
      %1248 = vmatmul.mubr.bf16.gmra.mxu0 %v708
      %v1249 = vpop.f32.mrf.mxu0
      %v1250 = vadd.f32 %v1089, %v1249
      %v1251 = vpop.f32.mrf.mxu0
      %v1252 = vpop.f32.mrf.mxu0
      %v1253 = vadd.f32 %v1092, %v1252
      %v1254 = vpop.f32.mrf.mxu0
      %1255 = vmatprep.mubr.bf16.mxu0 0
      %1256 = vmatmul.mubr.bf16.gmra.mxu0 %v720
      %v1257 = vpop.f32.mrf.mxu0
      %v1258 = vadd.f32 %v1097, %v1257
      %v1259 = vpop.f32.mrf.mxu0
      %v1260 = vpop.f32.mrf.mxu0
      %v1261 = vadd.f32 %v1100, %v1260
      %v1262 = vpop.f32.mrf.mxu0
      %1263 = vmatprep.mubr.bf16.mxu0 0
      %1264 = vmatmul.mubr.bf16.gmra.mxu0 %v732
      %v1265 = vpop.f32.mrf.mxu0
      %v1266 = vadd.f32 %v1105, %v1265
      %v1267 = vpop.f32.mrf.mxu0
      %v1268 = vpop.f32.mrf.mxu0
      %v1269 = vadd.f32 %v1108, %v1268
      %v1270 = vpop.f32.mrf.mxu0
      %1271 = vmatprep.mubr.bf16.mxu0 0
      %1272 = vmatmul.mubr.bf16.gmra.mxu0 %v744
      %v1273 = vpop.f32.mrf.mxu0
      %v1274 = vadd.f32 %v1113, %v1273
      %v1275 = vpop.f32.mrf.mxu0
      %v1276 = vpop.f32.mrf.mxu0
      %v1277 = vadd.f32 %v1116, %v1276
      %v1278 = vpop.f32.mrf.mxu0
      %1279 = vmatprep.mubr.bf16.mxu0 0
      %1280 = vmatmul.mubr.bf16.gmra.mxu0 %v756
      %v1281 = vpop.f32.mrf.mxu0
      %v1282 = vadd.f32 %v1121, %v1281
      %v1283 = vpop.f32.mrf.mxu0
      %v1284 = vpop.f32.mrf.mxu0
      %v1285 = vadd.f32 %v1124, %v1284
      %v1286 = vpop.f32.mrf.mxu0
      %1287 = vmatprep.mubr.bf16.mxu0 0
      %1288 = vmatmul.mubr.bf16.gmra.mxu0 %v768
      %v1289 = vpop.f32.mrf.mxu0
      %v1290 = vadd.f32 %v1129, %v1289
      %v1291 = vpop.f32.mrf.mxu0
      %v1292 = vpop.f32.mrf.mxu0
      %v1293 = vadd.f32 %v1132, %v1292
      %v1294 = vpop.f32.mrf.mxu0
      %1295 = vmatprep.mubr.bf16.mxu0 0
      %1296 = vmatmul.mubr.bf16.gmra.mxu0 %v780
      %v1297 = vpop.f32.mrf.mxu0
      %v1298 = vadd.f32 %v1137, %v1297
      %v1299 = vpop.f32.mrf.mxu0
      %v1300 = vpop.f32.mrf.mxu0
      %v1301 = vadd.f32 %v1140, %v1300
      %v1302 = vpop.f32.mrf.mxu0
      %1303 = vmatprep.mubr.bf16.mxu0 0
      %1304 = vmatmul.mubr.bf16.gmra.mxu0 %v588
      %v1305 = vpop.f32.mrf.mxu0
      %v1306 = vadd.f32 %v1145, %v1305
      %v1307 = vpop.f32.mrf.mxu0
      %v1308 = vpop.f32.mrf.mxu0
      %v1309 = vadd.f32 %v1148, %v1308
      %v1310 = vpop.f32.mrf.mxu0
      %1311 = vdwg.mxu0
      %v1360 = vunpack.c.l.b16 %v528
      %v1361 = vunpack.c.l.b16 %v529
      %v1362 = vunpack.c.l.b16 %v530
      %v1363 = vunpack.c.l.b16 %v531
      %v1364 = vunpack.c.l.b16 %v532
      %v1365 = vunpack.c.l.b16 %v533
      %v1366 = vunpack.c.l.b16 %v534
      %v1367 = vunpack.c.l.b16 %v535
      %v1368 = vunpack.c.l.b16 %v536
      %v1369 = vunpack.c.l.b16 %v537
      %v1370 = vunpack.c.l.b16 %v538
      %v1371 = vunpack.c.l.b16 %v539
      %v1372 = vunpack.c.l.b16 %v540
      %v1373 = vunpack.c.l.b16 %v541
      %v1374 = vunpack.c.l.b16 %v542
      %v1375 = vunpack.c.l.b16 %v543
      %v1376 = vunpack.c.l.b16 %v544
      %v1377 = vunpack.c.l.b16 %v545
      %v1378 = vunpack.c.l.b16 %v546
      %v1379 = vunpack.c.l.b16 %v547
      %v1380 = vunpack.c.l.b16 %v548
      %v1381 = vunpack.c.l.b16 %v549
      %v1382 = vunpack.c.l.b16 %v550
      %v1383 = vunpack.c.l.b16 %v551
      %v1384 = vunpack.c.l.b16 %v552
      %v1385 = vunpack.c.l.b16 %v553
      %v1386 = vunpack.c.l.b16 %v554
      %v1387 = vunpack.c.l.b16 %v555
      %v1388 = vunpack.c.l.b16 %v556
      %v1389 = vunpack.c.l.b16 %v557
      %v1390 = vunpack.c.l.b16 %v558
      %v1391 = vunpack.c.l.b16 %v559
      %v1392 = vunpack.c.l.b16 %v560
      %v1393 = vunpack.c.l.b16 %v561
      %v1394 = vunpack.c.l.b16 %v562
      %v1395 = vunpack.c.l.b16 %v563
      %v1396 = vunpack.c.l.b16 %v564
      %v1397 = vunpack.c.l.b16 %v565
      %v1398 = vunpack.c.l.b16 %v566
      %v1399 = vunpack.c.l.b16 %v567
      %v1400 = vunpack.c.l.b16 %v568
      %v1401 = vunpack.c.l.b16 %v569
      %v1402 = vunpack.c.l.b16 %v570
      %v1403 = vunpack.c.l.b16 %v571
      %v1404 = vunpack.c.l.b16 %v572
      %v1405 = vunpack.c.l.b16 %v573
      %v1406 = vunpack.c.l.b16 %v574
      %v1407 = vunpack.c.l.b16 %v575
      %v1408 = vpack.c.b16 %v1361, %v1360
      %v1409 = vpack.c.b16 %v1363, %v1362
      %v1410 = vpack.c.b16 %v1365, %v1364
      %v1411 = vpack.c.b16 %v1367, %v1366
      %v1412 = vpack.c.b16 %v1369, %v1368
      %v1413 = vpack.c.b16 %v1371, %v1370
      %v1414 = vpack.c.b16 %v1373, %v1372
      %v1415 = vpack.c.b16 %v1375, %v1374
      %v1416 = vpack.c.b16 %v1377, %v1376
      %v1417 = vpack.c.b16 %v1379, %v1378
      %v1418 = vpack.c.b16 %v1381, %v1380
      %v1419 = vpack.c.b16 %v1383, %v1382
      %v1420 = vpack.c.b16 %v1385, %v1384
      %v1421 = vpack.c.b16 %v1387, %v1386
      %v1422 = vpack.c.b16 %v1389, %v1388
      %v1423 = vpack.c.b16 %v1391, %v1390
      %v1424 = vpack.c.b16 %v1393, %v1392
      %v1425 = vpack.c.b16 %v1395, %v1394
      %v1426 = vpack.c.b16 %v1397, %v1396
      %v1427 = vpack.c.b16 %v1399, %v1398
      %v1428 = vpack.c.b16 %v1401, %v1400
      %v1429 = vpack.c.b16 %v1403, %v1402
      %v1430 = vpack.c.b16 %v1405, %v1404
      %v1431 = vpack.c.b16 %v1407, %v1406
      %1456 = vmatprep.subr.bf16.mxu0 0
      %1457 = vmatpush1.bf16.msra.mxu0 %v1415
      %1458 = vmatprep.subr.bf16.mxu0 0
      %1459 = vmatpush1.bf16.msra.mxu0 %v1414
      %1460 = vmatprep.subr.bf16.mxu0 0
      %1461 = vmatpush1.bf16.msra.mxu0 %v1413
      %1462 = vmatprep.subr.bf16.mxu0 0
      %1463 = vmatpush1.bf16.msra.mxu0 %v1412
      %1464 = vmatprep.subr.bf16.mxu0 0
      %1465 = vmatpush1.bf16.msra.mxu0 %v1411
      %1466 = vmatprep.subr.bf16.mxu0 0
      %1467 = vmatpush1.bf16.msra.mxu0 %v1410
      %1468 = vmatprep.subr.bf16.mxu0 0
      %1469 = vmatpush1.bf16.msra.mxu0 %v1409
      %1470 = vmatprep.subr.bf16.mxu0 0
      %1471 = vmatpush1.bf16.msra.mxu0 %v1408
      %1472 = vmatprep.subr.bf16.mxu0 0
      %1473 = vmatpush2.bf16.msra.mxu0 %v1423
      %1474 = vmatprep.subr.bf16.mxu0 0
      %1475 = vmatpush2.bf16.msra.mxu0 %v1422
      %1476 = vmatprep.subr.bf16.mxu0 0
      %1477 = vmatpush2.bf16.msra.mxu0 %v1421
      %1478 = vmatprep.subr.bf16.mxu0 0
      %1479 = vmatpush2.bf16.msra.mxu0 %v1420
      %1480 = vmatprep.subr.bf16.mxu0 0
      %1481 = vmatpush2.bf16.msra.mxu0 %v1419
      %1482 = vmatprep.subr.bf16.mxu0 0
      %1483 = vmatpush2.bf16.msra.mxu0 %v1418
      %1484 = vmatprep.subr.bf16.mxu0 0
      %1485 = vmatpush2.bf16.msra.mxu0 %v1417
      %1486 = vmatprep.subr.bf16.mxu0 0
      %1487 = vmatpush2.bf16.msra.mxu0 %v1416
      %1488 = vmatprep.mubr.bf16.mxu0 %v495
      %1489 = vmatmul.mubr.bf16.gmra.mxu0 %v494
      %v1490 = vpop.f32.mrf.mxu0
      %v1491 = vadd.f32 %v1186, %v1490
      %v1492 = vpop.f32.mrf.mxu0
      %v1493 = vpop.f32.mrf.mxu0
      %v1494 = vadd.f32 %v1189, %v1493
      %v1495 = vpop.f32.mrf.mxu0
      %1496 = vmatprep.mubr.bf16.mxu0 %v496
      %1497 = vmatmul.mubr.bf16.gmra.mxu0 %v495
      %v1498 = vpop.f32.mrf.mxu0
      %v1499 = vadd.f32 %v1194, %v1498
      %v1500 = vpop.f32.mrf.mxu0
      %v1501 = vpop.f32.mrf.mxu0
      %v1502 = vadd.f32 %v1197, %v1501
      %v1503 = vpop.f32.mrf.mxu0
      %1504 = vmatprep.mubr.bf16.mxu0 %v497
      %1505 = vmatmul.mubr.bf16.gmra.mxu0 %v496
      %v1506 = vpop.f32.mrf.mxu0
      %v1507 = vadd.f32 %v1202, %v1506
      %v1508 = vpop.f32.mrf.mxu0
      %v1509 = vpop.f32.mrf.mxu0
      %v1510 = vadd.f32 %v1205, %v1509
      %v1511 = vpop.f32.mrf.mxu0
      %1512 = vmatprep.mubr.bf16.mxu0 %v498
      %1513 = vmatmul.mubr.bf16.gmra.mxu0 %v497
      %v1514 = vpop.f32.mrf.mxu0
      %v1515 = vadd.f32 %v1210, %v1514
      %v1516 = vpop.f32.mrf.mxu0
      %v1517 = vpop.f32.mrf.mxu0
      %v1518 = vadd.f32 %v1213, %v1517
      %v1519 = vpop.f32.mrf.mxu0
      %1520 = vmatprep.mubr.bf16.mxu0 %v499
      %1521 = vmatmul.mubr.bf16.gmra.mxu0 %v498
      %v1522 = vpop.f32.mrf.mxu0
      %v1523 = vadd.f32 %v1218, %v1522
      %v1524 = vpop.f32.mrf.mxu0
      %v1525 = vpop.f32.mrf.mxu0
      %v1526 = vadd.f32 %v1221, %v1525
      %v1527 = vpop.f32.mrf.mxu0
      %1528 = vmatprep.mubr.bf16.mxu0 %v500
      %1529 = vmatmul.mubr.bf16.gmra.mxu0 %v499
      %v1530 = vpop.f32.mrf.mxu0
      %v1531 = vadd.f32 %v1226, %v1530
      %v1532 = vpop.f32.mrf.mxu0
      %v1533 = vpop.f32.mrf.mxu0
      %v1534 = vadd.f32 %v1229, %v1533
      %v1535 = vpop.f32.mrf.mxu0
      %1536 = vmatprep.mubr.bf16.mxu0 %v501
      %1537 = vmatmul.mubr.bf16.gmra.mxu0 %v500
      %v1538 = vpop.f32.mrf.mxu0
      %v1539 = vadd.f32 %v1234, %v1538
      %v1540 = vpop.f32.mrf.mxu0
      %v1541 = vpop.f32.mrf.mxu0
      %v1542 = vadd.f32 %v1237, %v1541
      %v1543 = vpop.f32.mrf.mxu0
      %1544 = vmatprep.mubr.bf16.mxu0 %v502
      %1545 = vmatmul.mubr.bf16.gmra.mxu0 %v501
      %v1546 = vpop.f32.mrf.mxu0
      %v1547 = vadd.f32 %v1242, %v1546
      %v1548 = vpop.f32.mrf.mxu0
      %v1549 = vpop.f32.mrf.mxu0
      %v1550 = vadd.f32 %v1245, %v1549
      %v1551 = vpop.f32.mrf.mxu0
      %1552 = vmatprep.mubr.bf16.mxu0 %v503
      %1553 = vmatmul.mubr.bf16.gmra.mxu0 %v502
      %v1554 = vpop.f32.mrf.mxu0
      %v1555 = vadd.f32 %v1250, %v1554
      %v1556 = vpop.f32.mrf.mxu0
      %v1557 = vpop.f32.mrf.mxu0
      %v1558 = vadd.f32 %v1253, %v1557
      %v1559 = vpop.f32.mrf.mxu0
      %1560 = vmatprep.mubr.bf16.mxu0 %v504
      %1561 = vmatmul.mubr.bf16.gmra.mxu0 %v503
      %v1562 = vpop.f32.mrf.mxu0
      %v1563 = vadd.f32 %v1258, %v1562
      %v1564 = vpop.f32.mrf.mxu0
      %v1565 = vpop.f32.mrf.mxu0
      %v1566 = vadd.f32 %v1261, %v1565
      %v1567 = vpop.f32.mrf.mxu0
      %1568 = vmatprep.mubr.bf16.mxu0 %v505
      %1569 = vmatmul.mubr.bf16.gmra.mxu0 %v504
      %v1570 = vpop.f32.mrf.mxu0
      %v1571 = vadd.f32 %v1266, %v1570
      %v1572 = vpop.f32.mrf.mxu0
      %v1573 = vpop.f32.mrf.mxu0
      %v1574 = vadd.f32 %v1269, %v1573
      %v1575 = vpop.f32.mrf.mxu0
      %1576 = vmatprep.mubr.bf16.mxu0 %v506
      %1577 = vmatmul.mubr.bf16.gmra.mxu0 %v505
      %v1578 = vpop.f32.mrf.mxu0
      %v1579 = vadd.f32 %v1274, %v1578
      %v1580 = vpop.f32.mrf.mxu0
      %v1581 = vpop.f32.mrf.mxu0
      %v1582 = vadd.f32 %v1277, %v1581
      %v1583 = vpop.f32.mrf.mxu0
      %1584 = vmatprep.mubr.bf16.mxu0 %v507
      %1585 = vmatmul.mubr.bf16.gmra.mxu0 %v506
      %v1586 = vpop.f32.mrf.mxu0
      %v1587 = vadd.f32 %v1282, %v1586
      %v1588 = vpop.f32.mrf.mxu0
      %v1589 = vpop.f32.mrf.mxu0
      %v1590 = vadd.f32 %v1285, %v1589
      %v1591 = vpop.f32.mrf.mxu0
      %1592 = vmatprep.mubr.bf16.mxu0 %v508
      %1593 = vmatmul.mubr.bf16.gmra.mxu0 %v507
      %v1594 = vpop.f32.mrf.mxu0
      %v1595 = vadd.f32 %v1290, %v1594
      %v1596 = vpop.f32.mrf.mxu0
      %v1597 = vpop.f32.mrf.mxu0
      %v1598 = vadd.f32 %v1293, %v1597
      %v1599 = vpop.f32.mrf.mxu0
      %1600 = vmatprep.mubr.bf16.mxu0 %v509
      %1601 = vmatmul.mubr.bf16.gmra.mxu0 %v508
      %v1602 = vpop.f32.mrf.mxu0
      %v1603 = vadd.f32 %v1298, %v1602
      %v1604 = vpop.f32.mrf.mxu0
      %v1605 = vpop.f32.mrf.mxu0
      %v1606 = vadd.f32 %v1301, %v1605
      %v1607 = vpop.f32.mrf.mxu0
      %1608 = vmatprep.mubr.bf16.mxu0 %v510
      %1609 = vmatmul.mubr.bf16.gmra.mxu0 %v509
      %v1610 = vpop.f32.mrf.mxu0
      %v1611 = vadd.f32 %v1306, %v1610
      %v1612 = vpop.f32.mrf.mxu0
      %v1613 = vpop.f32.mrf.mxu0
      %v1614 = vadd.f32 %v1309, %v1613
      %v1615 = vpop.f32.mrf.mxu0
      %1616 = vdwg.mxu0
      %1617 = vmatprep.subr.bf16.mxu0 0
      %1618 = vmatpush1.bf16.msra.mxu0 %v1431
      %1619 = vmatprep.subr.bf16.mxu0 0
      %1620 = vmatpush1.bf16.msra.mxu0 %v1430
      %1621 = vmatprep.subr.bf16.mxu0 0
      %1622 = vmatpush1.bf16.msra.mxu0 %v1429
      %1623 = vmatprep.subr.bf16.mxu0 0
      %1624 = vmatpush1.bf16.msra.mxu0 %v1428
      %1625 = vmatprep.subr.bf16.mxu0 0
      %1626 = vmatpush1.bf16.msra.mxu0 %v1427
      %1627 = vmatprep.subr.bf16.mxu0 0
      %1628 = vmatpush1.bf16.msra.mxu0 %v1426
      %1629 = vmatprep.subr.bf16.mxu0 0
      %1630 = vmatpush1.bf16.msra.mxu0 %v1425
      %1631 = vmatprep.subr.bf16.mxu0 0
      %1632 = vmatpush1.bf16.msra.mxu0 %v1424
      %1633 = vmatprep.subr.bf16.mxu0 0
      %1634 = vmatpush2.bf16.msra.mxu0 0
      %1635 = vmatprep.subr.bf16.mxu0 0
      %1636 = vmatpush2.bf16.msra.mxu0 0
      %1637 = vmatprep.subr.bf16.mxu0 0
      %1638 = vmatpush2.bf16.msra.mxu0 0
      %1639 = vmatprep.subr.bf16.mxu0 0
      %1640 = vmatpush2.bf16.msra.mxu0 0
      %1641 = vmatprep.subr.bf16.mxu0 0
      %1642 = vmatpush2.bf16.msra.mxu0 0
      %1643 = vmatprep.subr.bf16.mxu0 0
      %1644 = vmatpush2.bf16.msra.mxu0 0
      %1645 = vmatprep.subr.bf16.mxu0 0
      %1646 = vmatpush2.bf16.msra.mxu0 0
      %1647 = vmatprep.subr.bf16.mxu0 0
      %1648 = vmatpush2.bf16.msra.mxu0 0
      %1649 = vmatprep.mubr.bf16.mxu0 0
      %1650 = vmatmul.mubr.bf16.gmra.mxu0 %v496
      %v1651 = vpop.f32.mrf.mxu0
      %v1652 = vadd.f32 %v1491, %v1651
      %v1653 = vpop.f32.mrf.mxu0
      %v1654 = vpop.f32.mrf.mxu0
      %v1655 = vadd.f32 %v1494, %v1654
      %v1656 = vpop.f32.mrf.mxu0
      %1657 = vmatprep.mubr.bf16.mxu0 0
      %1658 = vmatmul.mubr.bf16.gmra.mxu0 %v497
      %v1659 = vpop.f32.mrf.mxu0
      %v1660 = vadd.f32 %v1499, %v1659
      %v1661 = vpop.f32.mrf.mxu0
      %v1662 = vpop.f32.mrf.mxu0
      %v1663 = vadd.f32 %v1502, %v1662
      %v1664 = vpop.f32.mrf.mxu0
      %1665 = vmatprep.mubr.bf16.mxu0 0
      %1666 = vmatmul.mubr.bf16.gmra.mxu0 %v498
      %v1667 = vpop.f32.mrf.mxu0
      %v1668 = vadd.f32 %v1507, %v1667
      %v1669 = vpop.f32.mrf.mxu0
      %v1670 = vpop.f32.mrf.mxu0
      %v1671 = vadd.f32 %v1510, %v1670
      %v1672 = vpop.f32.mrf.mxu0
      %1673 = vmatprep.mubr.bf16.mxu0 0
      %1674 = vmatmul.mubr.bf16.gmra.mxu0 %v499
      %v1675 = vpop.f32.mrf.mxu0
      %v1676 = vadd.f32 %v1515, %v1675
      %v1677 = vpop.f32.mrf.mxu0
      %v1678 = vpop.f32.mrf.mxu0
      %v1679 = vadd.f32 %v1518, %v1678
      %v1680 = vpop.f32.mrf.mxu0
      %1681 = vmatprep.mubr.bf16.mxu0 0
      %1682 = vmatmul.mubr.bf16.gmra.mxu0 %v500
      %v1683 = vpop.f32.mrf.mxu0
      %v1684 = vadd.f32 %v1523, %v1683
      %v1685 = vpop.f32.mrf.mxu0
      %v1686 = vpop.f32.mrf.mxu0
      %v1687 = vadd.f32 %v1526, %v1686
      %v1688 = vpop.f32.mrf.mxu0
      %1689 = vmatprep.mubr.bf16.mxu0 0
      %1690 = vmatmul.mubr.bf16.gmra.mxu0 %v501
      %v1691 = vpop.f32.mrf.mxu0
      %v1692 = vadd.f32 %v1531, %v1691
      %v1693 = vpop.f32.mrf.mxu0
      %v1694 = vpop.f32.mrf.mxu0
      %v1695 = vadd.f32 %v1534, %v1694
      %v1696 = vpop.f32.mrf.mxu0
      %1697 = vmatprep.mubr.bf16.mxu0 0
      %1698 = vmatmul.mubr.bf16.gmra.mxu0 %v502
      %v1699 = vpop.f32.mrf.mxu0
      %v1700 = vadd.f32 %v1539, %v1699
      %v1701 = vpop.f32.mrf.mxu0
      %v1702 = vpop.f32.mrf.mxu0
      %v1703 = vadd.f32 %v1542, %v1702
      %v1704 = vpop.f32.mrf.mxu0
      %1705 = vmatprep.mubr.bf16.mxu0 0
      %1706 = vmatmul.mubr.bf16.gmra.mxu0 %v503
      %v1707 = vpop.f32.mrf.mxu0
      %v1708 = vadd.f32 %v1547, %v1707
      %v1709 = vpop.f32.mrf.mxu0
      %v1710 = vpop.f32.mrf.mxu0
      %v1711 = vadd.f32 %v1550, %v1710
      %v1712 = vpop.f32.mrf.mxu0
      %1713 = vmatprep.mubr.bf16.mxu0 0
      %1714 = vmatmul.mubr.bf16.gmra.mxu0 %v504
      %v1715 = vpop.f32.mrf.mxu0
      %v1716 = vadd.f32 %v1555, %v1715
      %v1717 = vpop.f32.mrf.mxu0
      %v1718 = vpop.f32.mrf.mxu0
      %v1719 = vadd.f32 %v1558, %v1718
      %v1720 = vpop.f32.mrf.mxu0
      %1721 = vmatprep.mubr.bf16.mxu0 0
      %1722 = vmatmul.mubr.bf16.gmra.mxu0 %v505
      %v1723 = vpop.f32.mrf.mxu0
      %v1724 = vadd.f32 %v1563, %v1723
      %v1725 = vpop.f32.mrf.mxu0
      %v1726 = vpop.f32.mrf.mxu0
      %v1727 = vadd.f32 %v1566, %v1726
      %v1728 = vpop.f32.mrf.mxu0
      %1729 = vmatprep.mubr.bf16.mxu0 0
      %1730 = vmatmul.mubr.bf16.gmra.mxu0 %v506
      %v1731 = vpop.f32.mrf.mxu0
      %v1732 = vadd.f32 %v1571, %v1731
      %v1733 = vpop.f32.mrf.mxu0
      %v1734 = vpop.f32.mrf.mxu0
      %v1735 = vadd.f32 %v1574, %v1734
      %v1736 = vpop.f32.mrf.mxu0
      %1737 = vmatprep.mubr.bf16.mxu0 0
      %1738 = vmatmul.mubr.bf16.gmra.mxu0 %v507
      %v1739 = vpop.f32.mrf.mxu0
      %v1740 = vadd.f32 %v1579, %v1739
      %v1741 = vpop.f32.mrf.mxu0
      %v1742 = vpop.f32.mrf.mxu0
      %v1743 = vadd.f32 %v1582, %v1742
      %v1744 = vpop.f32.mrf.mxu0
      %1745 = vmatprep.mubr.bf16.mxu0 0
      %1746 = vmatmul.mubr.bf16.gmra.mxu0 %v508
      %v1747 = vpop.f32.mrf.mxu0
      %v1748 = vadd.f32 %v1587, %v1747
      %v1749 = vpop.f32.mrf.mxu0
      %v1750 = vpop.f32.mrf.mxu0
      %v1751 = vadd.f32 %v1590, %v1750
      %v1752 = vpop.f32.mrf.mxu0
      %1753 = vmatprep.mubr.bf16.mxu0 0
      %1754 = vmatmul.mubr.bf16.gmra.mxu0 %v509
      %v1755 = vpop.f32.mrf.mxu0
      %v1756 = vadd.f32 %v1595, %v1755
      %v1757 = vpop.f32.mrf.mxu0
      %v1758 = vpop.f32.mrf.mxu0
      %v1759 = vadd.f32 %v1598, %v1758
      %v1760 = vpop.f32.mrf.mxu0
      %1761 = vmatprep.mubr.bf16.mxu0 0
      %1762 = vmatmul.mubr.bf16.gmra.mxu0 %v510
      %v1763 = vpop.f32.mrf.mxu0
      %v1764 = vadd.f32 %v1603, %v1763
      %v1765 = vpop.f32.mrf.mxu0
      %v1766 = vpop.f32.mrf.mxu0
      %v1767 = vadd.f32 %v1606, %v1766
      %v1768 = vpop.f32.mrf.mxu0
      %1769 = vmatprep.mubr.bf16.mxu0 0
      %1770 = vmatmul.mubr.bf16.gmra.mxu0 %v494
      %v1771 = vpop.f32.mrf.mxu0
      %v1772 = vadd.f32 %v1611, %v1771
      %v1773 = vpop.f32.mrf.mxu0
      %v1774 = vpop.f32.mrf.mxu0
      %v1775 = vadd.f32 %v1614, %v1774
      %v1776 = vpop.f32.mrf.mxu0
      %1777 = vdwg.mxu0
      %vm1812 = vcmask 1046528
      %v1813 = vrot.slane %v494, 1
      %v1814 = vrot.slane %v511, 1
      %v1815 = vsel %vm1812, %v1813, %v1814
      %v1816 = vrot.slane %v495, 1
      %v1817 = vrot.slane %v512, 1
      %v1818 = vsel %vm1812, %v1816, %v1817
      %v1819 = vrot.slane %v496, 1
      %v1820 = vrot.slane %v513, 1
      %v1821 = vsel %vm1812, %v1819, %v1820
      %v1822 = vrot.slane %v497, 1
      %v1823 = vrot.slane %v514, 1
      %v1824 = vsel %vm1812, %v1822, %v1823
      %v1825 = vrot.slane %v498, 1
      %v1826 = vrot.slane %v515, 1
      %v1827 = vsel %vm1812, %v1825, %v1826
      %v1828 = vrot.slane %v499, 1
      %v1829 = vrot.slane %v516, 1
      %v1830 = vsel %vm1812, %v1828, %v1829
      %v1831 = vrot.slane %v500, 1
      %v1832 = vrot.slane %v517, 1
      %v1833 = vsel %vm1812, %v1831, %v1832
      %v1834 = vrot.slane %v501, 1
      %v1835 = vrot.slane %v518, 1
      %v1836 = vsel %vm1812, %v1834, %v1835
      %v1837 = vrot.slane %v502, 1
      %v1838 = vrot.slane %v519, 1
      %v1839 = vsel %vm1812, %v1837, %v1838
      %v1840 = vrot.slane %v503, 1
      %v1841 = vrot.slane %v520, 1
      %v1842 = vsel %vm1812, %v1840, %v1841
      %v1843 = vrot.slane %v504, 1
      %v1844 = vrot.slane %v521, 1
      %v1845 = vsel %vm1812, %v1843, %v1844
      %v1846 = vrot.slane %v505, 1
      %v1847 = vrot.slane %v522, 1
      %v1848 = vsel %vm1812, %v1846, %v1847
      %v1849 = vrot.slane %v506, 1
      %v1850 = vrot.slane %v523, 1
      %v1851 = vsel %vm1812, %v1849, %v1850
      %v1852 = vrot.slane %v507, 1
      %v1853 = vrot.slane %v524, 1
      %v1854 = vsel %vm1812, %v1852, %v1853
      %v1855 = vrot.slane %v508, 1
      %v1856 = vrot.slane %v525, 1
      %v1857 = vsel %vm1812, %v1855, %v1856
      %v1858 = vrot.slane %v509, 1
      %v1859 = vrot.slane %v526, 1
      %v1860 = vsel %vm1812, %v1858, %v1859
      %v1861 = vrot.slane %v510, 1
      %v1862 = vrot.slane %v527, 1
      %v1863 = vsel %vm1812, %v1861, %v1862
      %v1881 = vld [vmem:[%s3] sm:$0xf]
      %v1882 = vld [vmem:[%s3 + $0x4] sm:$0xf]
      %v1883 = vld [vmem:[%s3 + $0x8] sm:$0xf]
      %v1884 = vld [vmem:[%s3 + $0xc] sm:$0xf]
      %v1885 = vld [vmem:[%s3 + $0x10] sm:$0xf]
      %v1886 = vld [vmem:[%s3 + $0x14] sm:$0xf]
      %v1887 = vld [vmem:[%s3 + $0x18] sm:$0xf]
      %v1888 = vld [vmem:[%s3 + $0x1c] sm:$0xf]
      %v1889 = vld [vmem:[%s3 + $0x20] sm:$0xf]
      %v1890 = vld [vmem:[%s3 + $0x24] sm:$0xf]
      %v1891 = vld [vmem:[%s3 + $0x28] sm:$0xf]
      %v1892 = vld [vmem:[%s3 + $0x2c] sm:$0xf]
      %v1893 = vld [vmem:[%s3 + $0x30] sm:$0xf]
      %v1894 = vld [vmem:[%s3 + $0x34] sm:$0xf]
      %v1895 = vld [vmem:[%s3 + $0x38] sm:$0xf]
      %v1896 = vld [vmem:[%s3 + $0x3c] sm:$0xf]
      %v1897 = vld [vmem:[%s3 + $0x40] sm:$0xf]
      %v1898 = vld [vmem:[%s3 + $0x44] sm:$0xf]
      %v1899 = vld [vmem:[%s3 + $0x48] sm:$0xf]
      %v1900 = vld [vmem:[%s3 + $0x4c] sm:$0xf]
      %v1901 = vld [vmem:[%s3 + $0x50] sm:$0xf]
      %v1902 = vld [vmem:[%s3 + $0x54] sm:$0xf]
      %v1903 = vld [vmem:[%s3 + $0x58] sm:$0xf]
      %v1904 = vld [vmem:[%s3 + $0x5c] sm:$0xf]
      %v1905 = vld [vmem:[%s3 + $0x60] sm:$0xf]
      %v1906 = vld [vmem:[%s3 + $0x64] sm:$0xf]
      %v1907 = vld [vmem:[%s3 + $0x68] sm:$0xf]
      %v1908 = vld [vmem:[%s3 + $0x6c] sm:$0xf]
      %v1909 = vld [vmem:[%s3 + $0x70] sm:$0xf]
      %v1910 = vld [vmem:[%s3 + $0x74] sm:$0xf]
      %v1911 = vld [vmem:[%s3 + $0x78] sm:$0xf]
      %v1912 = vld [vmem:[%s3 + $0x7c] sm:$0xf]
      %v1913 = vld [vmem:[%s3 + $0x80] sm:$0xf]
      %v1914 = vld [vmem:[%s3 + $0x84] sm:$0xf]
      %v1915 = vld [vmem:[%s3 + $0x88] sm:$0xf]
      %v1916 = vld [vmem:[%s3 + $0x8c] sm:$0xf]
      %v1917 = vld [vmem:[%s3 + $0x90] sm:$0xf]
      %v1918 = vld [vmem:[%s3 + $0x94] sm:$0xf]
      %v1919 = vld [vmem:[%s3 + $0x98] sm:$0xf]
      %v1920 = vld [vmem:[%s3 + $0x9c] sm:$0xf]
      %v1921 = vld [vmem:[%s3 + $0xa0] sm:$0xf]
      %v1922 = vld [vmem:[%s3 + $0xa4] sm:$0xf]
      %v1923 = vld [vmem:[%s3 + $0xa8] sm:$0xf]
      %v1924 = vld [vmem:[%s3 + $0xac] sm:$0xf]
      %v1925 = vld [vmem:[%s3 + $0xb0] sm:$0xf]
      %v1926 = vld [vmem:[%s3 + $0xb4] sm:$0xf]
      %v1927 = vld [vmem:[%s3 + $0xb8] sm:$0xf]
      %v1928 = vld [vmem:[%s3 + $0xbc] sm:$0xf]
      %v1977 = vunpack.c.l.b16 %v1881
      %v1978 = vunpack.c.l.b16 %v1882
      %v1979 = vunpack.c.l.b16 %v1883
      %v1980 = vunpack.c.l.b16 %v1884
      %v1981 = vunpack.c.l.b16 %v1885
      %v1982 = vunpack.c.l.b16 %v1886
      %v1983 = vunpack.c.l.b16 %v1887
      %v1984 = vunpack.c.l.b16 %v1888
      %v1985 = vunpack.c.l.b16 %v1889
      %v1986 = vunpack.c.l.b16 %v1890
      %v1987 = vunpack.c.l.b16 %v1891
      %v1988 = vunpack.c.l.b16 %v1892
      %v1989 = vunpack.c.l.b16 %v1893
      %v1990 = vunpack.c.l.b16 %v1894
      %v1991 = vunpack.c.l.b16 %v1895
      %v1992 = vunpack.c.l.b16 %v1896
      %v1993 = vunpack.c.l.b16 %v1897
      %v1994 = vunpack.c.l.b16 %v1898
      %v1995 = vunpack.c.l.b16 %v1899
      %v1996 = vunpack.c.l.b16 %v1900
      %v1997 = vunpack.c.l.b16 %v1901
      %v1998 = vunpack.c.l.b16 %v1902
      %v1999 = vunpack.c.l.b16 %v1903
      %v2000 = vunpack.c.l.b16 %v1904
      %v2001 = vunpack.c.l.b16 %v1905
      %v2002 = vunpack.c.l.b16 %v1906
      %v2003 = vunpack.c.l.b16 %v1907
      %v2004 = vunpack.c.l.b16 %v1908
      %v2005 = vunpack.c.l.b16 %v1909
      %v2006 = vunpack.c.l.b16 %v1910
      %v2007 = vunpack.c.l.b16 %v1911
      %v2008 = vunpack.c.l.b16 %v1912
      %v2009 = vunpack.c.l.b16 %v1913
      %v2010 = vunpack.c.l.b16 %v1914
      %v2011 = vunpack.c.l.b16 %v1915
      %v2012 = vunpack.c.l.b16 %v1916
      %v2013 = vunpack.c.l.b16 %v1917
      %v2014 = vunpack.c.l.b16 %v1918
      %v2015 = vunpack.c.l.b16 %v1919
      %v2016 = vunpack.c.l.b16 %v1920
      %v2017 = vunpack.c.l.b16 %v1921
      %v2018 = vunpack.c.l.b16 %v1922
      %v2019 = vunpack.c.l.b16 %v1923
      %v2020 = vunpack.c.l.b16 %v1924
      %v2021 = vunpack.c.l.b16 %v1925
      %v2022 = vunpack.c.l.b16 %v1926
      %v2023 = vunpack.c.l.b16 %v1927
      %v2024 = vunpack.c.l.b16 %v1928
      %v2025 = vpack.c.b16 %v1978, %v1977
      %v2026 = vpack.c.b16 %v1980, %v1979
      %v2027 = vpack.c.b16 %v1982, %v1981
      %v2028 = vpack.c.b16 %v1984, %v1983
      %v2029 = vpack.c.b16 %v1986, %v1985
      %v2030 = vpack.c.b16 %v1988, %v1987
      %v2031 = vpack.c.b16 %v1990, %v1989
      %v2032 = vpack.c.b16 %v1992, %v1991
      %v2033 = vpack.c.b16 %v1994, %v1993
      %v2034 = vpack.c.b16 %v1996, %v1995
      %v2035 = vpack.c.b16 %v1998, %v1997
      %v2036 = vpack.c.b16 %v2000, %v1999
      %v2037 = vpack.c.b16 %v2002, %v2001
      %v2038 = vpack.c.b16 %v2004, %v2003
      %v2039 = vpack.c.b16 %v2006, %v2005
      %v2040 = vpack.c.b16 %v2008, %v2007
      %v2041 = vpack.c.b16 %v2010, %v2009
      %v2042 = vpack.c.b16 %v2012, %v2011
      %v2043 = vpack.c.b16 %v2014, %v2013
      %v2044 = vpack.c.b16 %v2016, %v2015
      %v2045 = vpack.c.b16 %v2018, %v2017
      %v2046 = vpack.c.b16 %v2020, %v2019
      %v2047 = vpack.c.b16 %v2022, %v2021
      %v2048 = vpack.c.b16 %v2024, %v2023
      %2073 = vmatprep.subr.bf16.mxu0 0
      %2074 = vmatpush1.bf16.msra.mxu0 %v2032
      %2075 = vmatprep.subr.bf16.mxu0 0
      %2076 = vmatpush1.bf16.msra.mxu0 %v2031
      %2077 = vmatprep.subr.bf16.mxu0 0
      %2078 = vmatpush1.bf16.msra.mxu0 %v2030
      %2079 = vmatprep.subr.bf16.mxu0 0
      %2080 = vmatpush1.bf16.msra.mxu0 %v2029
      %2081 = vmatprep.subr.bf16.mxu0 0
      %2082 = vmatpush1.bf16.msra.mxu0 %v2028
      %2083 = vmatprep.subr.bf16.mxu0 0
      %2084 = vmatpush1.bf16.msra.mxu0 %v2027
      %2085 = vmatprep.subr.bf16.mxu0 0
      %2086 = vmatpush1.bf16.msra.mxu0 %v2026
      %2087 = vmatprep.subr.bf16.mxu0 0
      %2088 = vmatpush1.bf16.msra.mxu0 %v2025
      %2089 = vmatprep.subr.bf16.mxu0 0
      %2090 = vmatpush2.bf16.msra.mxu0 %v2040
      %2091 = vmatprep.subr.bf16.mxu0 0
      %2092 = vmatpush2.bf16.msra.mxu0 %v2039
      %2093 = vmatprep.subr.bf16.mxu0 0
      %2094 = vmatpush2.bf16.msra.mxu0 %v2038
      %2095 = vmatprep.subr.bf16.mxu0 0
      %2096 = vmatpush2.bf16.msra.mxu0 %v2037
      %2097 = vmatprep.subr.bf16.mxu0 0
      %2098 = vmatpush2.bf16.msra.mxu0 %v2036
      %2099 = vmatprep.subr.bf16.mxu0 0
      %2100 = vmatpush2.bf16.msra.mxu0 %v2035
      %2101 = vmatprep.subr.bf16.mxu0 0
      %2102 = vmatpush2.bf16.msra.mxu0 %v2034
      %2103 = vmatprep.subr.bf16.mxu0 0
      %2104 = vmatpush2.bf16.msra.mxu0 %v2033
      %2105 = vmatprep.mubr.bf16.mxu0 %v1818
      %2106 = vmatmul.mubr.bf16.gmra.mxu0 %v1815
      %v2107 = vpop.f32.mrf.mxu0
      %v2108 = vadd.f32 0.0, %v2107
      %v2109 = vpop.f32.mrf.mxu0
      %v2110 = vpop.f32.mrf.mxu0
      %v2111 = vadd.f32 0.0, %v2110
      %v2112 = vpop.f32.mrf.mxu0
      %2113 = vmatprep.mubr.bf16.mxu0 %v1821
      %2114 = vmatmul.mubr.bf16.gmra.mxu0 %v1818
      %v2115 = vpop.f32.mrf.mxu0
      %v2116 = vadd.f32 0.0, %v2115
      %v2117 = vpop.f32.mrf.mxu0
      %v2118 = vpop.f32.mrf.mxu0
      %v2119 = vadd.f32 0.0, %v2118
      %v2120 = vpop.f32.mrf.mxu0
      %2121 = vmatprep.mubr.bf16.mxu0 %v1824
      %2122 = vmatmul.mubr.bf16.gmra.mxu0 %v1821
      %v2123 = vpop.f32.mrf.mxu0
      %v2124 = vadd.f32 0.0, %v2123
      %v2125 = vpop.f32.mrf.mxu0
      %v2126 = vpop.f32.mrf.mxu0
      %v2127 = vadd.f32 0.0, %v2126
      %v2128 = vpop.f32.mrf.mxu0
      %2129 = vmatprep.mubr.bf16.mxu0 %v1827
      %2130 = vmatmul.mubr.bf16.gmra.mxu0 %v1824
      %v2131 = vpop.f32.mrf.mxu0
      %v2132 = vadd.f32 0.0, %v2131
      %v2133 = vpop.f32.mrf.mxu0
      %v2134 = vpop.f32.mrf.mxu0
      %v2135 = vadd.f32 0.0, %v2134
      %v2136 = vpop.f32.mrf.mxu0
      %2137 = vmatprep.mubr.bf16.mxu0 %v1830
      %2138 = vmatmul.mubr.bf16.gmra.mxu0 %v1827
      %v2139 = vpop.f32.mrf.mxu0
      %v2140 = vadd.f32 0.0, %v2139
      %v2141 = vpop.f32.mrf.mxu0
      %v2142 = vpop.f32.mrf.mxu0
      %v2143 = vadd.f32 0.0, %v2142
      %v2144 = vpop.f32.mrf.mxu0
      %2145 = vmatprep.mubr.bf16.mxu0 %v1833
      %2146 = vmatmul.mubr.bf16.gmra.mxu0 %v1830
      %v2147 = vpop.f32.mrf.mxu0
      %v2148 = vadd.f32 0.0, %v2147
      %v2149 = vpop.f32.mrf.mxu0
      %v2150 = vpop.f32.mrf.mxu0
      %v2151 = vadd.f32 0.0, %v2150
      %v2152 = vpop.f32.mrf.mxu0
      %2153 = vmatprep.mubr.bf16.mxu0 %v1836
      %2154 = vmatmul.mubr.bf16.gmra.mxu0 %v1833
      %v2155 = vpop.f32.mrf.mxu0
      %v2156 = vadd.f32 0.0, %v2155
      %v2157 = vpop.f32.mrf.mxu0
      %v2158 = vpop.f32.mrf.mxu0
      %v2159 = vadd.f32 0.0, %v2158
      %v2160 = vpop.f32.mrf.mxu0
      %2161 = vmatprep.mubr.bf16.mxu0 %v1839
      %2162 = vmatmul.mubr.bf16.gmra.mxu0 %v1836
      %v2163 = vpop.f32.mrf.mxu0
      %v2164 = vadd.f32 0.0, %v2163
      %v2165 = vpop.f32.mrf.mxu0
      %v2166 = vpop.f32.mrf.mxu0
      %v2167 = vadd.f32 0.0, %v2166
      %v2168 = vpop.f32.mrf.mxu0
      %2169 = vmatprep.mubr.bf16.mxu0 %v1842
      %2170 = vmatmul.mubr.bf16.gmra.mxu0 %v1839
      %v2171 = vpop.f32.mrf.mxu0
      %v2172 = vadd.f32 0.0, %v2171
      %v2173 = vpop.f32.mrf.mxu0
      %v2174 = vpop.f32.mrf.mxu0
      %v2175 = vadd.f32 0.0, %v2174
      %v2176 = vpop.f32.mrf.mxu0
      %2177 = vmatprep.mubr.bf16.mxu0 %v1845
      %2178 = vmatmul.mubr.bf16.gmra.mxu0 %v1842
      %v2179 = vpop.f32.mrf.mxu0
      %v2180 = vadd.f32 0.0, %v2179
      %v2181 = vpop.f32.mrf.mxu0
      %v2182 = vpop.f32.mrf.mxu0
      %v2183 = vadd.f32 0.0, %v2182
      %v2184 = vpop.f32.mrf.mxu0
      %2185 = vmatprep.mubr.bf16.mxu0 %v1848
      %2186 = vmatmul.mubr.bf16.gmra.mxu0 %v1845
      %v2187 = vpop.f32.mrf.mxu0
      %v2188 = vadd.f32 0.0, %v2187
      %v2189 = vpop.f32.mrf.mxu0
      %v2190 = vpop.f32.mrf.mxu0
      %v2191 = vadd.f32 0.0, %v2190
      %v2192 = vpop.f32.mrf.mxu0
      %2193 = vmatprep.mubr.bf16.mxu0 %v1851
      %2194 = vmatmul.mubr.bf16.gmra.mxu0 %v1848
      %v2195 = vpop.f32.mrf.mxu0
      %v2196 = vadd.f32 0.0, %v2195
      %v2197 = vpop.f32.mrf.mxu0
      %v2198 = vpop.f32.mrf.mxu0
      %v2199 = vadd.f32 0.0, %v2198
      %v2200 = vpop.f32.mrf.mxu0
      %2201 = vmatprep.mubr.bf16.mxu0 %v1854
      %2202 = vmatmul.mubr.bf16.gmra.mxu0 %v1851
      %v2203 = vpop.f32.mrf.mxu0
      %v2204 = vadd.f32 0.0, %v2203
      %v2205 = vpop.f32.mrf.mxu0
      %v2206 = vpop.f32.mrf.mxu0
      %v2207 = vadd.f32 0.0, %v2206
      %v2208 = vpop.f32.mrf.mxu0
      %2209 = vmatprep.mubr.bf16.mxu0 %v1857
      %2210 = vmatmul.mubr.bf16.gmra.mxu0 %v1854
      %v2211 = vpop.f32.mrf.mxu0
      %v2212 = vadd.f32 0.0, %v2211
      %v2213 = vpop.f32.mrf.mxu0
      %v2214 = vpop.f32.mrf.mxu0
      %v2215 = vadd.f32 0.0, %v2214
      %v2216 = vpop.f32.mrf.mxu0
      %2217 = vmatprep.mubr.bf16.mxu0 %v1860
      %2218 = vmatmul.mubr.bf16.gmra.mxu0 %v1857
      %v2219 = vpop.f32.mrf.mxu0
      %v2220 = vadd.f32 0.0, %v2219
      %v2221 = vpop.f32.mrf.mxu0
      %v2222 = vpop.f32.mrf.mxu0
      %v2223 = vadd.f32 0.0, %v2222
      %v2224 = vpop.f32.mrf.mxu0
      %2225 = vmatprep.mubr.bf16.mxu0 %v1863
      %2226 = vmatmul.mubr.bf16.gmra.mxu0 %v1860
      %v2227 = vpop.f32.mrf.mxu0
      %v2228 = vadd.f32 0.0, %v2227
      %v2229 = vpop.f32.mrf.mxu0
      %v2230 = vpop.f32.mrf.mxu0
      %v2231 = vadd.f32 0.0, %v2230
      %v2232 = vpop.f32.mrf.mxu0
      %2233 = vdwg.mxu0
      %2234 = vmatprep.subr.bf16.mxu0 0
      %2235 = vmatpush1.bf16.msra.mxu0 %v2048
      %2236 = vmatprep.subr.bf16.mxu0 0
      %2237 = vmatpush1.bf16.msra.mxu0 %v2047
      %2238 = vmatprep.subr.bf16.mxu0 0
      %2239 = vmatpush1.bf16.msra.mxu0 %v2046
      %2240 = vmatprep.subr.bf16.mxu0 0
      %2241 = vmatpush1.bf16.msra.mxu0 %v2045
      %2242 = vmatprep.subr.bf16.mxu0 0
      %2243 = vmatpush1.bf16.msra.mxu0 %v2044
      %2244 = vmatprep.subr.bf16.mxu0 0
      %2245 = vmatpush1.bf16.msra.mxu0 %v2043
      %2246 = vmatprep.subr.bf16.mxu0 0
      %2247 = vmatpush1.bf16.msra.mxu0 %v2042
      %2248 = vmatprep.subr.bf16.mxu0 0
      %2249 = vmatpush1.bf16.msra.mxu0 %v2041
      %2250 = vmatprep.subr.bf16.mxu0 0
      %2251 = vmatpush2.bf16.msra.mxu0 0
      %2252 = vmatprep.subr.bf16.mxu0 0
      %2253 = vmatpush2.bf16.msra.mxu0 0
      %2254 = vmatprep.subr.bf16.mxu0 0
      %2255 = vmatpush2.bf16.msra.mxu0 0
      %2256 = vmatprep.subr.bf16.mxu0 0
      %2257 = vmatpush2.bf16.msra.mxu0 0
      %2258 = vmatprep.subr.bf16.mxu0 0
      %2259 = vmatpush2.bf16.msra.mxu0 0
      %2260 = vmatprep.subr.bf16.mxu0 0
      %2261 = vmatpush2.bf16.msra.mxu0 0
      %2262 = vmatprep.subr.bf16.mxu0 0
      %2263 = vmatpush2.bf16.msra.mxu0 0
      %2264 = vmatprep.subr.bf16.mxu0 0
      %2265 = vmatpush2.bf16.msra.mxu0 0
      %2266 = vmatprep.mubr.bf16.mxu0 0
      %2267 = vmatmul.mubr.bf16.gmra.mxu0 %v1821
      %v2268 = vpop.f32.mrf.mxu0
      %v2269 = vadd.f32 %v2108, %v2268
      %v2270 = vpop.f32.mrf.mxu0
      %v2271 = vpop.f32.mrf.mxu0
      %v2272 = vadd.f32 %v2111, %v2271
      %v2273 = vpop.f32.mrf.mxu0
      %2274 = vmatprep.mubr.bf16.mxu0 0
      %2275 = vmatmul.mubr.bf16.gmra.mxu0 %v1824
      %v2276 = vpop.f32.mrf.mxu0
      %v2277 = vadd.f32 %v2116, %v2276
      %v2278 = vpop.f32.mrf.mxu0
      %v2279 = vpop.f32.mrf.mxu0
      %v2280 = vadd.f32 %v2119, %v2279
      %v2281 = vpop.f32.mrf.mxu0
      %2282 = vmatprep.mubr.bf16.mxu0 0
      %2283 = vmatmul.mubr.bf16.gmra.mxu0 %v1827
      %v2284 = vpop.f32.mrf.mxu0
      %v2285 = vadd.f32 %v2124, %v2284
      %v2286 = vpop.f32.mrf.mxu0
      %v2287 = vpop.f32.mrf.mxu0
      %v2288 = vadd.f32 %v2127, %v2287
      %v2289 = vpop.f32.mrf.mxu0
      %2290 = vmatprep.mubr.bf16.mxu0 0
      %2291 = vmatmul.mubr.bf16.gmra.mxu0 %v1830
      %v2292 = vpop.f32.mrf.mxu0
      %v2293 = vadd.f32 %v2132, %v2292
      %v2294 = vpop.f32.mrf.mxu0
      %v2295 = vpop.f32.mrf.mxu0
      %v2296 = vadd.f32 %v2135, %v2295
      %v2297 = vpop.f32.mrf.mxu0
      %2298 = vmatprep.mubr.bf16.mxu0 0
      %2299 = vmatmul.mubr.bf16.gmra.mxu0 %v1833
      %v2300 = vpop.f32.mrf.mxu0
      %v2301 = vadd.f32 %v2140, %v2300
      %v2302 = vpop.f32.mrf.mxu0
      %v2303 = vpop.f32.mrf.mxu0
      %v2304 = vadd.f32 %v2143, %v2303
      %v2305 = vpop.f32.mrf.mxu0
      %2306 = vmatprep.mubr.bf16.mxu0 0
      %2307 = vmatmul.mubr.bf16.gmra.mxu0 %v1836
      %v2308 = vpop.f32.mrf.mxu0
      %v2309 = vadd.f32 %v2148, %v2308
      %v2310 = vpop.f32.mrf.mxu0
      %v2311 = vpop.f32.mrf.mxu0
      %v2312 = vadd.f32 %v2151, %v2311
      %v2313 = vpop.f32.mrf.mxu0
      %2314 = vmatprep.mubr.bf16.mxu0 0
      %2315 = vmatmul.mubr.bf16.gmra.mxu0 %v1839
      %v2316 = vpop.f32.mrf.mxu0
      %v2317 = vadd.f32 %v2156, %v2316
      %v2318 = vpop.f32.mrf.mxu0
      %v2319 = vpop.f32.mrf.mxu0
      %v2320 = vadd.f32 %v2159, %v2319
      %v2321 = vpop.f32.mrf.mxu0
      %2322 = vmatprep.mubr.bf16.mxu0 0
      %2323 = vmatmul.mubr.bf16.gmra.mxu0 %v1842
      %v2324 = vpop.f32.mrf.mxu0
      %v2325 = vadd.f32 %v2164, %v2324
      %v2326 = vpop.f32.mrf.mxu0
      %v2327 = vpop.f32.mrf.mxu0
      %v2328 = vadd.f32 %v2167, %v2327
      %v2329 = vpop.f32.mrf.mxu0
      %2330 = vmatprep.mubr.bf16.mxu0 0
      %2331 = vmatmul.mubr.bf16.gmra.mxu0 %v1845
      %v2332 = vpop.f32.mrf.mxu0
      %v2333 = vadd.f32 %v2172, %v2332
      %v2334 = vpop.f32.mrf.mxu0
      %v2335 = vpop.f32.mrf.mxu0
      %v2336 = vadd.f32 %v2175, %v2335
      %v2337 = vpop.f32.mrf.mxu0
      %2338 = vmatprep.mubr.bf16.mxu0 0
      %2339 = vmatmul.mubr.bf16.gmra.mxu0 %v1848
      %v2340 = vpop.f32.mrf.mxu0
      %v2341 = vadd.f32 %v2180, %v2340
      %v2342 = vpop.f32.mrf.mxu0
      %v2343 = vpop.f32.mrf.mxu0
      %v2344 = vadd.f32 %v2183, %v2343
      %v2345 = vpop.f32.mrf.mxu0
      %2346 = vmatprep.mubr.bf16.mxu0 0
      %2347 = vmatmul.mubr.bf16.gmra.mxu0 %v1851
      %v2348 = vpop.f32.mrf.mxu0
      %v2349 = vadd.f32 %v2188, %v2348
      %v2350 = vpop.f32.mrf.mxu0
      %v2351 = vpop.f32.mrf.mxu0
      %v2352 = vadd.f32 %v2191, %v2351
      %v2353 = vpop.f32.mrf.mxu0
      %2354 = vmatprep.mubr.bf16.mxu0 0
      %2355 = vmatmul.mubr.bf16.gmra.mxu0 %v1854
      %v2356 = vpop.f32.mrf.mxu0
      %v2357 = vadd.f32 %v2196, %v2356
      %v2358 = vpop.f32.mrf.mxu0
      %v2359 = vpop.f32.mrf.mxu0
      %v2360 = vadd.f32 %v2199, %v2359
      %v2361 = vpop.f32.mrf.mxu0
      %2362 = vmatprep.mubr.bf16.mxu0 0
      %2363 = vmatmul.mubr.bf16.gmra.mxu0 %v1857
      %v2364 = vpop.f32.mrf.mxu0
      %v2365 = vadd.f32 %v2204, %v2364
      %v2366 = vpop.f32.mrf.mxu0
      %v2367 = vpop.f32.mrf.mxu0
      %v2368 = vadd.f32 %v2207, %v2367
      %v2369 = vpop.f32.mrf.mxu0
      %2370 = vmatprep.mubr.bf16.mxu0 0
      %2371 = vmatmul.mubr.bf16.gmra.mxu0 %v1860
      %v2372 = vpop.f32.mrf.mxu0
      %v2373 = vadd.f32 %v2212, %v2372
      %v2374 = vpop.f32.mrf.mxu0
      %v2375 = vpop.f32.mrf.mxu0
      %v2376 = vadd.f32 %v2215, %v2375
      %v2377 = vpop.f32.mrf.mxu0
      %2378 = vmatprep.mubr.bf16.mxu0 0
      %2379 = vmatmul.mubr.bf16.gmra.mxu0 %v1863
      %v2380 = vpop.f32.mrf.mxu0
      %v2381 = vadd.f32 %v2220, %v2380
      %v2382 = vpop.f32.mrf.mxu0
      %v2383 = vpop.f32.mrf.mxu0
      %v2384 = vadd.f32 %v2223, %v2383
      %v2385 = vpop.f32.mrf.mxu0
      %2386 = vmatprep.mubr.bf16.mxu0 0
      %2387 = vmatmul.mubr.bf16.gmra.mxu0 %v1815
      %v2388 = vpop.f32.mrf.mxu0
      %v2389 = vadd.f32 %v2228, %v2388
      %v2390 = vpop.f32.mrf.mxu0
      %v2391 = vpop.f32.mrf.mxu0
      %v2392 = vadd.f32 %v2231, %v2391
      %v2393 = vpop.f32.mrf.mxu0
      %2394 = vdwg.mxu0
      %v2395 = vadd.f32 %v1652, %v2269
      %v2396 = vadd.f32 %v1655, %v2272
      %v2397 = vadd.f32 %v1660, %v2277
      %v2398 = vadd.f32 %v1663, %v2280
      %v2399 = vadd.f32 %v1668, %v2285
      %v2400 = vadd.f32 %v1671, %v2288
      %v2401 = vadd.f32 %v1676, %v2293
      %v2402 = vadd.f32 %v1679, %v2296
      %v2403 = vadd.f32 %v1684, %v2301
      %v2404 = vadd.f32 %v1687, %v2304
      %v2405 = vadd.f32 %v1692, %v2309
      %v2406 = vadd.f32 %v1695, %v2312
      %v2407 = vadd.f32 %v1700, %v2317
      %v2408 = vadd.f32 %v1703, %v2320
      %v2409 = vadd.f32 %v1708, %v2325
      %v2410 = vadd.f32 %v1711, %v2328
      %v2411 = vadd.f32 %v1716, %v2333
      %v2412 = vadd.f32 %v1719, %v2336
      %v2413 = vadd.f32 %v1724, %v2341
      %v2414 = vadd.f32 %v1727, %v2344
      %v2415 = vadd.f32 %v1732, %v2349
      %v2416 = vadd.f32 %v1735, %v2352
      %v2417 = vadd.f32 %v1740, %v2357
      %v2418 = vadd.f32 %v1743, %v2360
      %v2419 = vadd.f32 %v1748, %v2365
      %v2420 = vadd.f32 %v1751, %v2368
      %v2421 = vadd.f32 %v1756, %v2373
      %v2422 = vadd.f32 %v1759, %v2376
      %v2423 = vadd.f32 %v1764, %v2381
      %v2424 = vadd.f32 %v1767, %v2384
      %v2425 = vadd.f32 %v1772, %v2389
      %v2426 = vadd.f32 %v1775, %v2392
      %v2427 = vld [vmem:[%s4] sm:$0x1]
      %v2429 = vlaneseq
      %v2430 = vshrl.u32 %v2429, 7
      %v2431 = vsub.s32 0, %v2430
      %v2432 = vrot.slane %v2427, %v2431
      %v2434 = vadd.f32 %v2395, %v2432
      %v2435 = vadd.f32 %v2396, %v2432
      %v2436 = vadd.f32 %v2397, %v2432
      %v2437 = vadd.f32 %v2398, %v2432
      %v2438 = vadd.f32 %v2399, %v2432
      %v2439 = vadd.f32 %v2400, %v2432
      %v2440 = vadd.f32 %v2401, %v2432
      %v2441 = vadd.f32 %v2402, %v2432
      %v2442 = vadd.f32 %v2403, %v2432
      %v2443 = vadd.f32 %v2404, %v2432
      %v2444 = vadd.f32 %v2405, %v2432
      %v2445 = vadd.f32 %v2406, %v2432
      %v2446 = vadd.f32 %v2407, %v2432
      %v2447 = vadd.f32 %v2408, %v2432
      %v2448 = vadd.f32 %v2409, %v2432
      %v2449 = vadd.f32 %v2410, %v2432
      %v2450 = vadd.f32 %v2411, %v2432
      %v2451 = vadd.f32 %v2412, %v2432
      %v2452 = vadd.f32 %v2413, %v2432
      %v2453 = vadd.f32 %v2414, %v2432
      %v2454 = vadd.f32 %v2415, %v2432
      %v2455 = vadd.f32 %v2416, %v2432
      %v2456 = vadd.f32 %v2417, %v2432
      %v2457 = vadd.f32 %v2418, %v2432
      %v2458 = vadd.f32 %v2419, %v2432
      %v2459 = vadd.f32 %v2420, %v2432
      %v2460 = vadd.f32 %v2421, %v2432
      %v2461 = vadd.f32 %v2422, %v2432
      %v2462 = vadd.f32 %v2423, %v2432
      %v2463 = vadd.f32 %v2424, %v2432
      %v2464 = vadd.f32 %v2425, %v2432
      %v2465 = vadd.f32 %v2426, %v2432
      %v2466 = vmax.f32 %v2434, 0.0
      %v2467 = vmax.f32 %v2435, 0.0
      %v2468 = vmax.f32 %v2436, 0.0
      %v2469 = vmax.f32 %v2437, 0.0
      %v2470 = vmax.f32 %v2438, 0.0
      %v2471 = vmax.f32 %v2439, 0.0
      %v2472 = vmax.f32 %v2440, 0.0
      %v2473 = vmax.f32 %v2441, 0.0
      %v2474 = vmax.f32 %v2442, 0.0
      %v2475 = vmax.f32 %v2443, 0.0
      %v2476 = vmax.f32 %v2444, 0.0
      %v2477 = vmax.f32 %v2445, 0.0
      %v2478 = vmax.f32 %v2446, 0.0
      %v2479 = vmax.f32 %v2447, 0.0
      %v2480 = vmax.f32 %v2448, 0.0
      %v2481 = vmax.f32 %v2449, 0.0
      %v2482 = vmax.f32 %v2450, 0.0
      %v2483 = vmax.f32 %v2451, 0.0
      %v2484 = vmax.f32 %v2452, 0.0
      %v2485 = vmax.f32 %v2453, 0.0
      %v2486 = vmax.f32 %v2454, 0.0
      %v2487 = vmax.f32 %v2455, 0.0
      %v2488 = vmax.f32 %v2456, 0.0
      %v2489 = vmax.f32 %v2457, 0.0
      %v2490 = vmax.f32 %v2458, 0.0
      %v2491 = vmax.f32 %v2459, 0.0
      %v2492 = vmax.f32 %v2460, 0.0
      %v2493 = vmax.f32 %v2461, 0.0
      %v2494 = vmax.f32 %v2462, 0.0
      %v2495 = vmax.f32 %v2463, 0.0
      %v2496 = vmax.f32 %v2464, 0.0
      %v2497 = vmax.f32 %v2465, 0.0
      %v2498 = vpack.c.bf16 %v2467, %v2466
      %v2499 = vpack.c.bf16 %v2469, %v2468
      %v2500 = vpack.c.bf16 %v2471, %v2470
      %v2501 = vpack.c.bf16 %v2473, %v2472
      %v2502 = vpack.c.bf16 %v2475, %v2474
      %v2503 = vpack.c.bf16 %v2477, %v2476
      %v2504 = vpack.c.bf16 %v2479, %v2478
      %v2505 = vpack.c.bf16 %v2481, %v2480
      %v2506 = vpack.c.bf16 %v2483, %v2482
      %v2507 = vpack.c.bf16 %v2485, %v2484
      %v2508 = vpack.c.bf16 %v2487, %v2486
      %v2509 = vpack.c.bf16 %v2489, %v2488
      %v2510 = vpack.c.bf16 %v2491, %v2490
      %v2511 = vpack.c.bf16 %v2493, %v2492
      %v2512 = vpack.c.bf16 %v2495, %v2494
      %v2513 = vpack.c.bf16 %v2497, %v2496
      %v2530 = vunpack.c.l.b16 %v2498
      %v2531 = vunpack.c.h.b16 %v2498
      %v2532 = vunpack.c.l.b16 %v2499
      %v2533 = vunpack.c.h.b16 %v2499
      %v2534 = vunpack.c.l.b16 %v2500
      %v2535 = vunpack.c.h.b16 %v2500
      %v2536 = vunpack.c.l.b16 %v2501
      %v2537 = vunpack.c.h.b16 %v2501
      %v2538 = vunpack.c.l.b16 %v2502
      %v2539 = vunpack.c.h.b16 %v2502
      %v2540 = vunpack.c.l.b16 %v2503
      %v2541 = vunpack.c.h.b16 %v2503
      %v2542 = vunpack.c.l.b16 %v2504
      %v2543 = vunpack.c.h.b16 %v2504
      %v2544 = vunpack.c.l.b16 %v2505
      %v2545 = vunpack.c.h.b16 %v2505
      %v2546 = vunpack.c.l.b16 %v2506
      %v2547 = vunpack.c.h.b16 %v2506
      %v2548 = vunpack.c.l.b16 %v2507
      %v2549 = vunpack.c.h.b16 %v2507
      %v2550 = vunpack.c.l.b16 %v2508
      %v2551 = vunpack.c.h.b16 %v2508
      %v2552 = vunpack.c.l.b16 %v2509
      %v2553 = vunpack.c.h.b16 %v2509
      %v2554 = vunpack.c.l.b16 %v2510
      %v2555 = vunpack.c.h.b16 %v2510
      %v2556 = vunpack.c.l.b16 %v2511
      %v2557 = vunpack.c.h.b16 %v2511
      %v2558 = vunpack.c.l.b16 %v2512
      %v2559 = vunpack.c.h.b16 %v2512
      %v2560 = vunpack.c.l.b16 %v2513
      %v2561 = vunpack.c.h.b16 %v2513
      %v2562 = vpack.c.b16 %v2530, %v2530
      %v2563 = vpack.c.b16 %v2531, %v2531
      %v2564 = vpack.c.b16 %v2532, %v2532
      %v2565 = vpack.c.b16 %v2533, %v2533
      %v2566 = vpack.c.b16 %v2534, %v2534
      %v2567 = vpack.c.b16 %v2535, %v2535
      %v2568 = vpack.c.b16 %v2536, %v2536
      %v2569 = vpack.c.b16 %v2537, %v2537
      %v2570 = vpack.c.b16 %v2538, %v2538
      %v2571 = vpack.c.b16 %v2539, %v2539
      %v2572 = vpack.c.b16 %v2540, %v2540
      %v2573 = vpack.c.b16 %v2541, %v2541
      %v2574 = vpack.c.b16 %v2542, %v2542
      %v2575 = vpack.c.b16 %v2543, %v2543
      %v2576 = vpack.c.b16 %v2544, %v2544
      %v2577 = vpack.c.b16 %v2545, %v2545
      %v2578 = vpack.c.b16 %v2546, %v2546
      %v2579 = vpack.c.b16 %v2547, %v2547
      %v2580 = vpack.c.b16 %v2548, %v2548
      %v2581 = vpack.c.b16 %v2549, %v2549
      %v2582 = vpack.c.b16 %v2550, %v2550
      %v2583 = vpack.c.b16 %v2551, %v2551
      %v2584 = vpack.c.b16 %v2552, %v2552
      %v2585 = vpack.c.b16 %v2553, %v2553
      %v2586 = vpack.c.b16 %v2554, %v2554
      %v2587 = vpack.c.b16 %v2555, %v2555
      %v2588 = vpack.c.b16 %v2556, %v2556
      %v2589 = vpack.c.b16 %v2557, %v2557
      %v2590 = vpack.c.b16 %v2558, %v2558
      %v2591 = vpack.c.b16 %v2559, %v2559
      %v2592 = vpack.c.b16 %v2560, %v2560
      %v2593 = vpack.c.b16 %v2561, %v2561
      %2626 = vst [vmem:[%s224] sm:$0xf] %v2562
      %2627 = vst [vmem:[%s224 + $0x4] sm:$0xf] %v2563
      %2628 = vst [vmem:[%s224 + $0x8] sm:$0xf] %v2564
      %2629 = vst [vmem:[%s224 + $0xc] sm:$0xf] %v2565
      %2630 = vst [vmem:[%s224 + $0x10] sm:$0xf] %v2566
      %2631 = vst [vmem:[%s224 + $0x14] sm:$0xf] %v2567
      %2632 = vst [vmem:[%s224 + $0x18] sm:$0xf] %v2568
      %2633 = vst [vmem:[%s224 + $0x1c] sm:$0xf] %v2569
      %2634 = vst [vmem:[%s224 + $0x20] sm:$0xf] %v2570
      %2635 = vst [vmem:[%s224 + $0x24] sm:$0xf] %v2571
      %2636 = vst [vmem:[%s224 + $0x28] sm:$0xf] %v2572
      %2637 = vst [vmem:[%s224 + $0x2c] sm:$0xf] %v2573
      %2638 = vst [vmem:[%s224 + $0x30] sm:$0xf] %v2574
      %2639 = vst [vmem:[%s224 + $0x34] sm:$0xf] %v2575
      %2640 = vst [vmem:[%s224 + $0x38] sm:$0xf] %v2576
      %2641 = vst [vmem:[%s224 + $0x3c] sm:$0xf] %v2577
      %2642 = vst [vmem:[%s224 + $0x40] sm:$0xf] %v2578
      %2643 = vst [vmem:[%s224 + $0x44] sm:$0xf] %v2579
      %2644 = vst [vmem:[%s224 + $0x48] sm:$0xf] %v2580
      %2645 = vst [vmem:[%s224 + $0x4c] sm:$0xf] %v2581
      %2646 = vst [vmem:[%s224 + $0x50] sm:$0xf] %v2582
      %2647 = vst [vmem:[%s224 + $0x54] sm:$0xf] %v2583
      %2648 = vst [vmem:[%s224 + $0x58] sm:$0xf] %v2584
      %2649 = vst [vmem:[%s224 + $0x5c] sm:$0xf] %v2585
      %2650 = vst [vmem:[%s224 + $0x60] sm:$0xf] %v2586
      %2651 = vst [vmem:[%s224 + $0x64] sm:$0xf] %v2587
      %2652 = vst [vmem:[%s224 + $0x68] sm:$0xf] %v2588
      %2653 = vst [vmem:[%s224 + $0x6c] sm:$0xf] %v2589
      %2654 = vst [vmem:[%s224 + $0x70] sm:$0xf] %v2590
      %2655 = vst [vmem:[%s224 + $0x74] sm:$0xf] %v2591
      %2656 = vst [vmem:[%s224 + $0x78] sm:$0xf] %v2592
      %2657 = vst [vmem:[%s224 + $0x7c] sm:$0xf] %v2593
      %p2658 = scmp.lt.s32.totalorder %s16, 1
      %s2659 = scalar_select %p2658, %s16, 1
      %s2660 = smul.addr %s2659, 32
      %s2661 = smul.addr %s2660, 4
      %s2662 = scalar_lea.vmem %s5, %s2661
      // Predicated region
      $region41: #{bottleneck_forward.4} parent=39 // pred_check
        %p2663 = pneg %p144
      $region42: #{bottleneck_forward.4} parent=39 // pred_check_branch
        %2665 = sbr.rel (%p2663) target = $region44
      $region43: #{bottleneck_forward.4} parent=39 // pred_region
        _
      $region44: #{bottleneck_forward.4} parent=39 // pred_fallthru
        _
    $region40: #{bottleneck_forward.4} parent=5 // pred_fallthru
      _
    %p2666 = scmp.le.s32.totalorder 2, %s11
    // Predicated region
    $region45: #{bottleneck_forward.4} parent=5 // pred_check
      %p2667 = pneg %p2666
    $region46: #{bottleneck_forward.4} parent=5 // pred_check_branch
      %2669 = sbr.rel (%p2667) target = $region48
    $region47: #{bottleneck_forward.4} parent=5 // pred_region
      %s2670 = ssub.s32 %s11, 2
      // Predicated region
      $region49: #{bottleneck_forward.4} parent=47 // pred_check
        %p2671 = pneg %p150
      $region50: #{bottleneck_forward.4} parent=47 // pred_check_branch
        %2673 = sbr.rel (%p2671) target = $region52
      $region51: #{bottleneck_forward.4} parent=47 // pred_region
        %p2674 = scmp.lt.s32.totalorder %s17, 1
        %s2675 = scalar_select %p2674, %s17, 1
        %s2676 = smul.addr %s2675, 32
        %s2677 = smul.addr %s2676, 4
        %s2678 = scalar_lea.vmem %s5, %s2677
      $region52: #{bottleneck_forward.4} parent=47 // pred_fallthru
        _
    $region48: #{bottleneck_forward.4} parent=5 // pred_fallthru
      _
  $region6: #{bottleneck_forward.4} parent=0 // loop_footer
    %s15 = sadd.s32 1, %s11
  $region7: #{bottleneck_forward.4} parent=0 // loop_footer_branch
    %10 = sbr.rel target = $region3
  $region8: #{bottleneck_forward.4} parent=0 // loop_exit
    _

</llo_original>
